<compile_context>
chip_gen: v7x
topology: tpu7x:2x2x1
jax: 0.10.0
libtpu: 0.0.40
codegen_flags: <defaults>
</compile_context>

<pallas_src>
import functools
import numpy as np

import jax
import jax.numpy as jnp
from jax.experimental import pallas as pl
from jax.experimental.pallas import tpu as pltpu

_EPS = 1e-5
# Matmul operand dtype.  Set to jnp.bfloat16 on v6e/v7x for ~2x MXU throughput
# (accumulation stays f32); kept f32 here to preserve reference numerics exactly.
_MM_DTYPE = jnp.float32


# ----------------------------- small helpers -----------------------------

def _cparams(n_grid, vmem=None):
    return pltpu.CompilerParams(
        dimension_semantics=("parallel",) * n_grid,
        vmem_limit_bytes=vmem)


def _row_tile(m):
    # Full-extent blocks for small M (always layout-legal); 512-row tiles otherwise
    # (>=512-row tiles reach ~85% of the HBM roofline per the Pallas tile sweeps).
    return m if m <= 1024 else 512


def _act(y, act):
    if act == "relu":
        return jnp.maximum(y, 0.0)
    if act == "sigmoid":
        return jax.nn.sigmoid(y)
    return y


def _rowify(v, B, C):
    """Normalize a scalar / (C,) / (B,C) / (B,1,C) scale-or-shift to a (B,1,C) row."""
    v = jnp.asarray(v, jnp.float32)
    if v.ndim == 0:
        v = v.reshape(1, 1, 1)
    elif v.ndim == 1:
        v = v.reshape(1, 1, -1)
    elif v.ndim == 2:
        v = v.reshape(v.shape[0], 1, v.shape[1])
    return jnp.broadcast_to(v, (B, 1, C))


# ----------------------------- Pallas kernels -----------------------------

def _mm_kernel(x_ref, w_ref, b_ref, o_ref):
    o_ref[0] = jnp.dot(x_ref[0].astype(_MM_DTYPE), w_ref[...].astype(_MM_DTYPE),
                       preferred_element_type=jnp.float32) + b_ref[0]


def _mm_pre_kernel(x_ref, s_ref, t_ref, w_ref, b_ref, o_ref, *, pre_act):
    a = _act(x_ref[0] * s_ref[0] + t_ref[0], pre_act)
    o_ref[0] = jnp.dot(a.astype(_MM_DTYPE), w_ref[...].astype(_MM_DTYPE),
                       preferred_element_type=jnp.float32) + b_ref[0]


def _mm_gate_kernel(h_ref, s1_ref, t1_ref, s2_ref, t2_ref, w_ref, b_ref,
                    gate_ref, x_ref, o_ref):
    a = jnp.maximum(h_ref[0] * s1_ref[0] + t1_ref[0], 0.0)
    a = a * s2_ref[0] + t2_ref[0]
    y = jnp.dot(a.astype(_MM_DTYPE), w_ref[...].astype(_MM_DTYPE),
                preferred_element_type=jnp.float32) + b_ref[0]
    o_ref[0] = x_ref[0] * jax.nn.sigmoid(y) * gate_ref[0]


def _affine_act_kernel(x_ref, s_ref, t_ref, o_ref, *, act):
    o_ref[0] = _act(x_ref[0] * s_ref[0] + t_ref[0], act)


def _affine_res_act_kernel(x_ref, s_ref, t_ref, r_ref, o_ref, *, act, act_after_res):
    y = x_ref[0] * s_ref[0] + t_ref[0]
    if act_after_res:
        y = _act(y + r_ref[0], act)
    else:
        y = _act(y, act) + r_ref[0]
    o_ref[0] = y


def _pdist_kernel(xi_ref, xa_ref, sqj_ref, o_ref):
    xi = xi_ref[0]                                     # (TI, C)
    xa = xa_ref[0]                                     # (N,  C)
    g = jax.lax.dot_general(xi, xa, (((1,), (1,)), ((), ())),
                            preferred_element_type=jnp.float32)      # <x_i, x_j>
    sqi = jnp.sum(xi * xi, axis=-1, keepdims=True)     # (TI, 1)
    o_ref[0] = 2.0 * g - sqi - sqj_ref[0]              # 2<i,j> - |i|^2 - |j|^2


# ----------------------------- Pallas wrappers -----------------------------

def matmul_conv(x, w, b, pre_scale=None, pre_shift=None, pre_act="none"):
    """Channels-last 1x1 conv: y[b] = act(x[b]*pre_scale[b]+pre_shift[b]) @ w + b.

    x: (B, M, K) f32; w: (K, Cout); b: (Cout,).  pre_scale/pre_shift are per-(batch,
    input-channel) rows (a fused norm-apply prologue)."""
    x = jnp.asarray(x, jnp.float32)
    B, M, K = x.shape
    Cout = w.shape[1]
    TM = _row_tile(M)
    grid = (B, pl.cdiv(M, TM))
    w = jnp.asarray(w, jnp.float32)
    b3 = jnp.asarray(b, jnp.float32).reshape(1, 1, Cout)
    x_spec = pl.BlockSpec((1, TM, K), lambda bi, mi: (bi, mi, 0))
    w_spec = pl.BlockSpec((K, Cout), lambda bi, mi: (0, 0))
    b_spec = pl.BlockSpec((1, 1, Cout), lambda bi, mi: (0, 0, 0))
    o_spec = pl.BlockSpec((1, TM, Cout), lambda bi, mi: (bi, mi, 0))
    out_shape = jax.ShapeDtypeStruct((B, M, Cout), jnp.float32)
    if pre_scale is None:
        return pl.pallas_call(
            _mm_kernel, out_shape=out_shape, grid=grid,
            in_specs=[x_spec, w_spec, b_spec], out_specs=o_spec,
            compiler_params=_cparams(2))(x, w, b3)
    ps = _rowify(pre_scale, B, K)
    pt = _rowify(pre_shift, B, K)
    row_spec = pl.BlockSpec((1, 1, K), lambda bi, mi: (bi, 0, 0))
    return pl.pallas_call(
        functools.partial(_mm_pre_kernel, pre_act=pre_act),
        out_shape=out_shape, grid=grid,
        in_specs=[x_spec, row_spec, row_spec, w_spec, b_spec], out_specs=o_spec,
        compiler_params=_cparams(2))(x, ps, pt, w, b3)


def affine_act(x, scale, shift, act="none", res=None, act_after_res=True):
    """Elementwise y = act(x*scale + shift [+ res]); scale/shift as (B,1,C) rows."""
    x = jnp.asarray(x, jnp.float32)
    B, M, C = x.shape
    TM = _row_tile(M)
    grid = (B, pl.cdiv(M, TM))
    s = _rowify(scale, B, C)
    t = _rowify(shift, B, C)
    x_spec = pl.BlockSpec((1, TM, C), lambda bi, mi: (bi, mi, 0))
    row_spec = pl.BlockSpec((1, 1, C), lambda bi, mi: (bi, 0, 0))
    out_shape = jax.ShapeDtypeStruct((B, M, C), jnp.float32)
    if res is None:
        return pl.pallas_call(
            functools.partial(_affine_act_kernel, act=act),
            out_shape=out_shape, grid=grid,
            in_specs=[x_spec, row_spec, row_spec], out_specs=x_spec,
            compiler_params=_cparams(2))(x, s, t)
    return pl.pallas_call(
        functools.partial(_affine_res_act_kernel, act=act, act_after_res=act_after_res),
        out_shape=out_shape, grid=grid,
        in_specs=[x_spec, row_spec, row_spec, x_spec], out_specs=x_spec,
        compiler_params=_cparams(2))(x, s, t, jnp.asarray(res, jnp.float32))


def gated_conv2_attention(h, bn_s, bn_t, cw, cb, w, bias, gate, x):
    """out1 = x * sigmoid((cw*relu(h*bn_s+bn_t)+cb) @ w + bias) * gate.

    Fuses excavate_feature's BN apply, cweight1/cbias1 affine, conv2, sigmoid and the
    coordinate-attention gating (att_h * att_w) into one MXU pass."""
    h = jnp.asarray(h, jnp.float32)
    B, M, C = h.shape
    TM = _row_tile(M)
    grid = (B, pl.cdiv(M, TM))
    chan = lambda v: jnp.asarray(v, jnp.float32).reshape(1, 1, C)
    full = pl.BlockSpec((1, TM, C), lambda bi, mi: (bi, mi, 0))
    chan_spec = pl.BlockSpec((1, 1, C), lambda bi, mi: (0, 0, 0))
    gate_spec = pl.BlockSpec((1, 1, C), lambda bi, mi: (bi, 0, 0))
    w_spec = pl.BlockSpec((C, C), lambda bi, mi: (0, 0))
    return pl.pallas_call(
        _mm_gate_kernel,
        out_shape=jax.ShapeDtypeStruct((B, M, C), jnp.float32),
        grid=grid,
        in_specs=[full, chan_spec, chan_spec, chan_spec, chan_spec,
                  w_spec, chan_spec, gate_spec, full],
        out_specs=full,
        compiler_params=_cparams(2),
    )(h, chan(bn_s), chan(bn_t), chan(cw), chan(cb),
      jnp.asarray(w, jnp.float32), chan(bias),
      jnp.asarray(gate, jnp.float32), jnp.asarray(x, jnp.float32))


def pairwise_dist(x):
    """Batched pdist[b,i,j] = 2<x_i,x_j> - |x_i|^2 - |x_j|^2 (feature-space kNN metric)."""
    x = jnp.asarray(x, jnp.float32)
    B, N, C = x.shape
    sq_row = jnp.sum(x * x, axis=-1).reshape(B, 1, N)
    TI = _row_tile(N)
    grid = (B, pl.cdiv(N, TI))
    return pl.pallas_call(
        _pdist_kernel,
        out_shape=jax.ShapeDtypeStruct((B, N, N), jnp.float32),
        grid=grid,
        in_specs=[pl.BlockSpec((1, TI, C), lambda bi, ii: (bi, ii, 0)),
                  pl.BlockSpec((1, N, C), lambda bi, ii: (bi, 0, 0)),
                  pl.BlockSpec((1, 1, N), lambda bi, ii: (bi, 0, 0))],
        out_specs=pl.BlockSpec((1, TI, N), lambda bi, ii: (bi, ii, 0)),
        compiler_params=_cparams(2, vmem=48 << 20),
    )(x, x, sq_row)


# ----------------------------- norm statistics (JAX reductions) -----------------------------

def bn_scale_shift(x, eps=_EPS):
    """Training-mode BatchNorm2d (gamma=1, beta=0): batch statistics per channel."""
    m = jnp.mean(x, axis=(0, 1))
    v = jnp.var(x, axis=(0, 1))
    s = jax.lax.rsqrt(v + eps)
    return s, -m * s


def in_bn_scale_shift(x, eps=_EPS):
    """InstanceNorm2d followed by train-mode BatchNorm2d, composed into ONE exact
    per-(batch,channel) scale/shift: the IN output has zero mean per (b,c), so the BN
    batch-mean is exactly 0 and its variance is mean_b[var/(var+eps)]."""
    mu = jnp.mean(x, axis=1, keepdims=True)            # (B,1,C)
    var = jnp.var(x, axis=1, keepdims=True)            # (B,1,C)
    var_bn = jnp.mean(var / (var + eps), axis=0, keepdims=True)
    s = jax.lax.rsqrt(var + eps) * jax.lax.rsqrt(var_bn + eps)
    return s, -mu * s


@functools.lru_cache(maxsize=None)
def _shuffle_inverse_perm(C):
    # c_s(out, 2): out2[:, c'] = out[:, (c'%2)*(C//2) + c'//2].  Folding this channel
    # permutation into the next 1x1-conv weight rows removes the activation relayout.
    src = np.array([(cp % 2) * (C // 2) + cp // 2 for cp in range(C)], np.int32)
    return np.argsort(src)


# ----------------------------- modules -----------------------------

def excavate_feature_fwd(p, x, G=8, eps=_EPS):
    B, N, C = x.shape
    Cg = C // (2 * G)
    x_init = x

    # ---- coordinate attention (pool_h is identity since W==1; pool_w = mean over N)
    x_w = jnp.mean(x, axis=1, keepdims=True)                         # (B,1,C)
    h = matmul_conv(x, p["conv2_w"], p["conv2_b"])                   # conv2 on the N "h" rows
    h_w = x_w @ p["conv2_w"] + p["conv2_b"]                          # (B,1,C) tiny -> XLA
    # bn1 statistics over the concatenated (N+1) rows
    cnt = B * (N + 1)
    mean = (jnp.sum(h, axis=(0, 1)) + jnp.sum(h_w, axis=(0, 1))) / cnt
    msq = (jnp.sum(h * h, axis=(0, 1)) + jnp.sum(h_w * h_w, axis=(0, 1))) / cnt
    bn_s = jax.lax.rsqrt(msq - mean * mean + eps)
    bn_t = -mean * bn_s
    # tiny "w" branch in XLA -> att_w (B,1,C)
    xw_aff = p["sweight2"] * jnp.maximum(h_w * bn_s + bn_t, 0.0) + p["sbias2"]
    att_w = jax.nn.sigmoid(xw_aff @ p["conv2_w"] + p["conv2_b"])
    # fused: out1 = x * sigmoid(conv2(cweight1*relu(bn1(h)) + cbias1)) * att_w
    out1 = gated_conv2_attention(h, bn_s, bn_t, p["cweight1"], p["cbias1"],
                                 p["conv2_w"], p["conv2_b"], att_w, x)

    # ---- split-group channel / spatial gating (Cg=8 channels per half-group is
    #      lane-sparse -> kept in XLA; conv3 is a tiny shared Cg x Cg matmul)
    r = out1.reshape(B, N, G, 2, Cg)
    x0, x1 = r[:, :, :, 0, :], r[:, :, :, 1, :]
    w3, b3 = p["conv3_w"], p["conv3_b"]
    xc = jnp.mean(x0, axis=1, keepdims=True)                         # AdaptiveAvgPool2d(1)
    x_channel = x0 * jax.nn.sigmoid(jnp.einsum("bngi,io->bngo", xc, w3) + b3)
    mu = jnp.mean(x1, axis=1, keepdims=True)                         # GroupNorm(Cg,Cg): per-(b,g,c)
    var = jnp.var(x1, axis=1, keepdims=True)
    xs = (x1 - mu) * jax.lax.rsqrt(var + eps)
    x_spatial = x1 * jax.nn.sigmoid(jnp.einsum("bngi,io->bngo", xs, w3) + b3)
    out = jnp.concatenate([x_channel, x_spatial], axis=-1).reshape(B, N, C)

    # ---- conv1 tail: conv -> IN -> BN -> ReLU -> conv -> IN -> BN ; + x ; ReLU
    wa = p["conv1a_w"][_shuffle_inverse_perm(C)]     # channel shuffle folded into weights
    t1 = matmul_conv(out, wa, p["conv1a_b"])
    s_a, t_a = in_bn_scale_shift(t1, eps)
    t2 = matmul_conv(t1, p["conv1b_w"], p["conv1b_b"],
                     pre_scale=s_a, pre_shift=t_a, pre_act="relu")
    s_b, t_b = in_bn_scale_shift(t2, eps)
    return affine_act(t2, s_b, t_b, act="relu", res=x_init, act_after_res=True)


def dgcnn_fwd(p, x, k=9, eps=_EPS):
    B, N, C = x.shape
    pdist = pairwise_dist(x)                                 # (B,N,N) batched Pallas gram
    idx = jax.lax.top_k(pdist, k)[1]                         # kNN (self included, as in ref)
    # TODO(synk): fuse this gather + concat into the first annular-conv kernel via
    # PrefetchScalarGridSpec row gather for large N; kept in XLA here.
    feat = x[jnp.arange(B)[:, None, None], idx]              # (B,N,k,C)
    xr = jnp.broadcast_to(x[:, :, None, :], (B, N, k, C))
    d = xr - feat
    g = jnp.concatenate([xr, d - jnp.abs(d)], axis=-1)       # cat(x, x - f - |x - f|)
    g = g.reshape(B, N * 3, 3 * 2 * C)                       # (1,3) stride-3 windows

    h = matmul_conv(g, p["w1"].reshape(3 * 2 * C, C), p["b1"])          # (B, N*3, C)
    s, t = bn_scale_shift(h, eps)
    # second (1,3) conv with the BN+ReLU prologue fused; per-channel affine tiles 3x
    o = matmul_conv(h.reshape(B, N, 3 * C), p["w2"].reshape(3 * C, C), p["b2"],
                    pre_scale=jnp.tile(s, 3), pre_shift=jnp.tile(t, 3), pre_act="relu")
    s2, t2 = bn_scale_shift(o, eps)
    return affine_act(o, s2, t2, act="relu")


def gcn_merge_fwd(p, x, w, eps=_EPS):
    """out = x + relu(bn(conv(L @ x))).

    In the reference, bmm(w^T, w) is the per-batch SCALAR a = sum_i relu(tanh(w))_i^2,
    so L = d2*(a*1 + I) with d2 = 1/(N*a+1) and L @ x = d2*a*sum_n(x) + d2*x.  This
    closed form is folded into the conv's affine prologue (no dense (B,N,N) matmul)."""
    B, N, C = x.shape
    ww = jnp.maximum(jnp.tanh(w), 0.0)                       # relu(tanh(w)), (B,N)
    a = jnp.sum(ww * ww, axis=-1)                            # (B,)
    d2 = 1.0 / (N * a + 1.0)
    sum_x = jnp.sum(x, axis=1, keepdims=True)                # (B,1,C)
    pre_scale = jnp.broadcast_to(d2[:, None, None], (B, 1, C))
    pre_shift = (d2 * a)[:, None, None] * sum_x
    graw = matmul_conv(x, p["conv_w"], p["conv_b"],
                       pre_scale=pre_scale, pre_shift=pre_shift, pre_act="none")
    s, t = bn_scale_shift(graw, eps)
    return affine_act(graw, s, t, act="relu", res=x, act_after_res=False)


def sc_block_forward(params, x, y, k_num=9, s_r=0.5):
    B, _, N, _ = x.shape
    feat0 = x[:, 0, :, :].astype(jnp.float32)                # x.transpose(1,3): (B,N,4)
    # conv_inti_cor: Conv2d(4,128,(1,1)) -- K=4 is lane-sparse, left to XLA; BN+ReLU in Pallas
    h0 = feat0 @ jnp.asarray(params["init_w"], jnp.float32) + params["init_b"]
    s0, t0 = bn_scale_shift(h0)
    out = affine_act(h0, s0, t0, act="relu")

    # feature_embed_0: 4x excavate -> DGCNN -> 4x excavate
    for i in range(4):
        out = excavate_feature_fwd(params["ex"][i], out)
    out = dgcnn_fwd(params["dgcnn"], out, k=k_num)
    for i in range(4, 8):
        out = excavate_feature_fwd(params["ex"][i], out)

    w0 = jnp.einsum("bnc,c->bn", out, params["lin0_w"][:, 0]) + params["lin0_b"][0]
    out = gcn_merge_fwd(params["gcn"], out, w0)              # out_graph + out (fused)
    out = excavate_feature_fwd(params["ex"][8], out)
    w1 = jnp.einsum("bnc,c->bn", out, params["lin1_w"][:, 0]) + params["lin1_b"][0]

    # torch.sort(w1, descending=True) + down_sampling (predict=False path)
    indices = jnp.argsort(-w1, axis=-1)
    w1_sorted = jnp.take_along_axis(w1, indices, axis=-1)
    nk = int(N * s_r)
    idx = indices[:, :nk]
    w1_ds = w1_sorted[:, :nk]
    y_ds = jnp.take_along_axis(y, idx, axis=-1)
    w0_ds = jnp.take_along_axis(w0, idx, axis=-1)
    x_ds = jnp.take_along_axis(x[:, :, :, :4], idx[:, None, :, None], axis=2)
    return x_ds, y_ds, [w0, w1], [w0_ds, w1_ds], indices


# ----------------------------- parameter init -----------------------------

def init_params(key, in_channel=4, C=128, G=8):
    keys = iter(jax.random.split(key, 256))

    def w(shape, scale=0.1):
        return jax.random.normal(next(keys), shape, jnp.float32) * scale

    def ex_params():
        Cg = C // (2 * G)
        return dict(
            conv2_w=w((C, C)), conv2_b=w((C,)),
            conv3_w=w((Cg, Cg)), conv3_b=w((Cg,)),
            conv1a_w=w((C, C)), conv1a_b=w((C,)),
            conv1b_w=w((C, C)), conv1b_b=w((C,)),
            # Parameter init as in __init__: zeros / ones
            cweight1=jnp.zeros((C,), jnp.float32), cbias1=jnp.ones((C,), jnp.float32),
            sweight2=jnp.zeros((C,), jnp.float32), sbias2=jnp.ones((C,), jnp.float32),
        )

    return dict(
        init_w=w((in_channel, C)), init_b=w((C,)),
        lin0_w=w((C, 1)), lin0_b=w((1,)),
        lin1_w=w((C, 1)), lin1_b=w((1,)),
        gcn=dict(conv_w=w((C, C)), conv_b=w((C,))),
        dgcnn=dict(w1=w((3, 2 * C, C)), b1=w((C,)),   # w1[t, ci, co] == torch W[co, ci, 0, t]
                   w2=w((3, C, C)), b2=w((C,))),
        ex=[ex_params() for _ in range(9)],
    )


# ----------------------------- main -----------------------------

if __name__ == "__main__":
    key = jax.random.PRNGKey(0)
    kx, ky, kp = jax.random.split(key, 3)
    B, N = 2, 16                                   # N >= k_num=9, N*s_r integer
    x = jax.random.normal(kx, (B, 1, N, 4), jnp.float32)    # correspondences (B,1,N,4)
    y = jax.random.normal(ky, (B, N), jnp.float32)          # per-point labels/residuals
    params = init_params(kp)

    fwd = jax.jit(sc_block_forward)
    outs = fwd(params, x, y)
    for leaf in jax.tree_util.tree_leaves(outs):
        jax.block_until_ready(leaf)
    print("KERNEL_OK")
</pallas_src>

<mosaic_0001>
module attributes {stable_mosaic.version = 11 : i64} {
  func.func @_mm_gate_kernel(%arg0: i32, %arg1: i32, %arg2: memref<1x16x128xf32, #tpu.memory_space<vmem>>, %arg3: memref<1x1x128xf32, #tpu.memory_space<vmem>>, %arg4: memref<1x1x128xf32, #tpu.memory_space<vmem>>, %arg5: memref<1x1x128xf32, #tpu.memory_space<vmem>>, %arg6: memref<1x1x128xf32, #tpu.memory_space<vmem>>, %arg7: memref<128x128xf32, #tpu.memory_space<vmem>>, %arg8: memref<1x1x128xf32, #tpu.memory_space<vmem>>, %arg9: memref<1x1x128xf32, #tpu.memory_space<vmem>>, %arg10: memref<1x16x128xf32, #tpu.memory_space<vmem>>, %arg11: memref<1x16x128xf32, #tpu.memory_space<vmem>>) attributes {dimension_semantics = [#tpu.dimension_semantics<parallel>, #tpu.dimension_semantics<parallel>], iteration_bounds = array<i64: 2, 1>, scalar_prefetch = 0 : i64, scratch_operands = 0 : i64, tpu.core_type = #tpu.core_type<tc>, window_params = [{transform_indices = @transform_0, window_bounds = array<i64: 1, 16, 128>}, {pipeline_mode = #tpu.pipeline_mode<synchronous>, transform_indices = @transform_1, window_bounds = array<i64: 1, 1, 128>}, {pipeline_mode = #tpu.pipeline_mode<synchronous>, transform_indices = @transform_2, window_bounds = array<i64: 1, 1, 128>}, {pipeline_mode = #tpu.pipeline_mode<synchronous>, transform_indices = @transform_3, window_bounds = array<i64: 1, 1, 128>}, {pipeline_mode = #tpu.pipeline_mode<synchronous>, transform_indices = @transform_4, window_bounds = array<i64: 1, 1, 128>}, {pipeline_mode = #tpu.pipeline_mode<synchronous>, transform_indices = @transform_5, window_bounds = array<i64: 128, 128>}, {pipeline_mode = #tpu.pipeline_mode<synchronous>, transform_indices = @transform_6, window_bounds = array<i64: 1, 1, 128>}, {transform_indices = @transform_7, window_bounds = array<i64: 1, 1, 128>}, {transform_indices = @transform_8, window_bounds = array<i64: 1, 16, 128>}, {transform_indices = @transform_9, window_bounds = array<i64: 1, 16, 128>}]} {
    %c0 = arith.constant 0 : index
    %c0_0 = arith.constant 0 : index
    %c0_1 = arith.constant 0 : index
    %0 = vector.load %arg2[%c0, %c0_0, %c0_1] : memref<1x16x128xf32, #tpu.memory_space<vmem>>, vector<1x16x128xf32>
    %1 = vector.shape_cast %0 : vector<1x16x128xf32> to vector<16x128xf32>
    %c0_2 = arith.constant 0 : index
    %c0_3 = arith.constant 0 : index
    %c0_4 = arith.constant 0 : index
    %2 = vector.load %arg3[%c0_2, %c0_3, %c0_4] : memref<1x1x128xf32, #tpu.memory_space<vmem>>, vector<1x1x128xf32>
    %3 = vector.shape_cast %2 : vector<1x1x128xf32> to vector<1x128xf32>
    %4 = vector.broadcast %3 : vector<1x128xf32> to vector<16x128xf32>
    %5 = arith.mulf %1, %4 : vector<16x128xf32>
    %c0_5 = arith.constant 0 : index
    %c0_6 = arith.constant 0 : index
    %c0_7 = arith.constant 0 : index
    %6 = vector.load %arg4[%c0_5, %c0_6, %c0_7] : memref<1x1x128xf32, #tpu.memory_space<vmem>>, vector<1x1x128xf32>
    %7 = vector.shape_cast %6 : vector<1x1x128xf32> to vector<1x128xf32>
    %8 = vector.broadcast %7 : vector<1x128xf32> to vector<16x128xf32>
    %9 = arith.addf %5, %8 : vector<16x128xf32>
    %cst = arith.constant 0.000000e+00 : f32
    %10 = vector.broadcast %cst : f32 to vector<16x128xf32>
    %11 = arith.maximumf %9, %10 : vector<16x128xf32>
    %c0_8 = arith.constant 0 : index
    %c0_9 = arith.constant 0 : index
    %c0_10 = arith.constant 0 : index
    %12 = vector.load %arg5[%c0_8, %c0_9, %c0_10] : memref<1x1x128xf32, #tpu.memory_space<vmem>>, vector<1x1x128xf32>
    %13 = vector.shape_cast %12 : vector<1x1x128xf32> to vector<1x128xf32>
    %14 = vector.broadcast %13 : vector<1x128xf32> to vector<16x128xf32>
    %15 = arith.mulf %11, %14 : vector<16x128xf32>
    %c0_11 = arith.constant 0 : index
    %c0_12 = arith.constant 0 : index
    %c0_13 = arith.constant 0 : index
    %16 = vector.load %arg6[%c0_11, %c0_12, %c0_13] : memref<1x1x128xf32, #tpu.memory_space<vmem>>, vector<1x1x128xf32>
    %17 = vector.shape_cast %16 : vector<1x1x128xf32> to vector<1x128xf32>
    %18 = vector.broadcast %17 : vector<1x128xf32> to vector<16x128xf32>
    %19 = arith.addf %15, %18 : vector<16x128xf32>
    %c0_14 = arith.constant 0 : index
    %c0_15 = arith.constant 0 : index
    %20 = vector.load %arg7[%c0_14, %c0_15] : memref<128x128xf32, #tpu.memory_space<vmem>>, vector<128x128xf32>
    %cst_16 = arith.constant dense<0.000000e+00> : vector<16x128xf32>
    %21 = tpu.matmul %19, %20, %cst_16 {dimension_numbers = #tpu.dot_dimension_numbers<[1], [0], [0], [1], [0, 0, 1, 1], [], []>} : vector<16x128xf32>, vector<128x128xf32>, vector<16x128xf32> -> vector<16x128xf32>
    %c0_17 = arith.constant 0 : index
    %c0_18 = arith.constant 0 : index
    %c0_19 = arith.constant 0 : index
    %22 = vector.load %arg8[%c0_17, %c0_18, %c0_19] : memref<1x1x128xf32, #tpu.memory_space<vmem>>, vector<1x1x128xf32>
    %23 = vector.shape_cast %22 : vector<1x1x128xf32> to vector<1x128xf32>
    %24 = vector.broadcast %23 : vector<1x128xf32> to vector<16x128xf32>
    %25 = arith.addf %21, %24 : vector<16x128xf32>
    %c0_20 = arith.constant 0 : index
    %c0_21 = arith.constant 0 : index
    %c0_22 = arith.constant 0 : index
    %26 = vector.load %arg10[%c0_20, %c0_21, %c0_22] : memref<1x16x128xf32, #tpu.memory_space<vmem>>, vector<1x16x128xf32>
    %27 = vector.shape_cast %26 : vector<1x16x128xf32> to vector<16x128xf32>
    %28 = arith.negf %25 : vector<16x128xf32>
    %29 = math.exp %28 : vector<16x128xf32>
    %cst_23 = arith.constant 1.000000e+00 : f32
    %30 = vector.broadcast %cst_23 : f32 to vector<16x128xf32>
    %31 = arith.addf %30, %29 : vector<16x128xf32>
    %32 = arith.divf %30, %31 : vector<16x128xf32>
    %33 = arith.mulf %27, %32 : vector<16x128xf32>
    %c0_24 = arith.constant 0 : index
    %c0_25 = arith.constant 0 : index
    %c0_26 = arith.constant 0 : index
    %34 = vector.load %arg9[%c0_24, %c0_25, %c0_26] : memref<1x1x128xf32, #tpu.memory_space<vmem>>, vector<1x1x128xf32>
    %35 = vector.shape_cast %34 : vector<1x1x128xf32> to vector<1x128xf32>
    %36 = vector.broadcast %35 : vector<1x128xf32> to vector<16x128xf32>
    %37 = arith.mulf %33, %36 : vector<16x128xf32>
    %c0_27 = arith.constant 0 : index
    %c0_28 = arith.constant 0 : index
    %c0_29 = arith.constant 0 : index
    %38 = vector.load %arg11[%c0_27, %c0_28, %c0_29] : memref<1x16x128xf32, #tpu.memory_space<vmem>>, vector<1x16x128xf32>
    %39 = vector.shape_cast %38 : vector<1x16x128xf32> to vector<16x128xf32>
    %40 = vector.shape_cast %37 : vector<16x128xf32> to vector<1x16x128xf32>
    tpu.vector_store %arg11[%c0_27, %c0_28, %c0_29], %40 {strides = array<i32>} : memref<1x16x128xf32, #tpu.memory_space<vmem>>, vector<1x16x128xf32>,
    return
  }
  func.func @transform_0(%arg0: i32, %arg1: i32) -> (i32, i32, i32) {
    %c0_i32 = arith.constant 0 : i32
    %c0_i32_0 = arith.constant 0 : i32
    return %arg0, %arg1, %c0_i32 : i32, i32, i32
  }
  func.func @transform_1(%arg0: i32, %arg1: i32) -> (i32, i32, i32) {
    %c0_i32 = arith.constant 0 : i32
    %c0_i32_0 = arith.constant 0 : i32
    %c0_i32_1 = arith.constant 0 : i32
    %c0_i32_2 = arith.constant 0 : i32
    return %c0_i32, %c0_i32_0, %c0_i32_1 : i32, i32, i32
  }
  func.func @transform_2(%arg0: i32, %arg1: i32) -> (i32, i32, i32) {
    %c0_i32 = arith.constant 0 : i32
    %c0_i32_0 = arith.constant 0 : i32
    %c0_i32_1 = arith.constant 0 : i32
    %c0_i32_2 = arith.constant 0 : i32
    return %c0_i32, %c0_i32_0, %c0_i32_1 : i32, i32, i32
  }
  func.func @transform_3(%arg0: i32, %arg1: i32) -> (i32, i32, i32) {
    %c0_i32 = arith.constant 0 : i32
    %c0_i32_0 = arith.constant 0 : i32
    %c0_i32_1 = arith.constant 0 : i32
    %c0_i32_2 = arith.constant 0 : i32
    return %c0_i32, %c0_i32_0, %c0_i32_1 : i32, i32, i32
  }
  func.func @transform_4(%arg0: i32, %arg1: i32) -> (i32, i32, i32) {
    %c0_i32 = arith.constant 0 : i32
    %c0_i32_0 = arith.constant 0 : i32
    %c0_i32_1 = arith.constant 0 : i32
    %c0_i32_2 = arith.constant 0 : i32
    return %c0_i32, %c0_i32_0, %c0_i32_1 : i32, i32, i32
  }
  func.func @transform_5(%arg0: i32, %arg1: i32) -> (i32, i32) {
    %c0_i32 = arith.constant 0 : i32
    %c0_i32_0 = arith.constant 0 : i32
    %c0_i32_1 = arith.constant 0 : i32
    return %c0_i32, %c0_i32_0 : i32, i32
  }
  func.func @transform_6(%arg0: i32, %arg1: i32) -> (i32, i32, i32) {
    %c0_i32 = arith.constant 0 : i32
    %c0_i32_0 = arith.constant 0 : i32
    %c0_i32_1 = arith.constant 0 : i32
    %c0_i32_2 = arith.constant 0 : i32
    return %c0_i32, %c0_i32_0, %c0_i32_1 : i32, i32, i32
  }
  func.func @transform_7(%arg0: i32, %arg1: i32) -> (i32, i32, i32) {
    %c0_i32 = arith.constant 0 : i32
    %c0_i32_0 = arith.constant 0 : i32
    %c0_i32_1 = arith.constant 0 : i32
    return %arg0, %c0_i32, %c0_i32_0 : i32, i32, i32
  }
  func.func @transform_8(%arg0: i32, %arg1: i32) -> (i32, i32, i32) {
    %c0_i32 = arith.constant 0 : i32
    %c0_i32_0 = arith.constant 0 : i32
    return %arg0, %arg1, %c0_i32 : i32, i32, i32
  }
  func.func @transform_9(%arg0: i32, %arg1: i32) -> (i32, i32, i32) {
    %c0_i32 = arith.constant 0 : i32
    %c0_i32_0 = arith.constant 0 : i32
    return %arg0, %arg1, %c0_i32 : i32, i32, i32
  }
}

module attributes {stable_mosaic.version = 11 : i64} {
  func.func @_mm_kernel(%arg0: i32, %arg1: i32, %arg2: memref<1x16x128xf32, #tpu.memory_space<vmem>>, %arg3: memref<128x128xf32, #tpu.memory_space<vmem>>, %arg4: memref<1x1x128xf32, #tpu.memory_space<vmem>>, %arg5: memref<1x16x128xf32, #tpu.memory_space<vmem>>) attributes {dimension_semantics = [#tpu.dimension_semantics<parallel>, #tpu.dimension_semantics<parallel>], iteration_bounds = array<i64: 2, 1>, scalar_prefetch = 0 : i64, scratch_operands = 0 : i64, tpu.core_type = #tpu.core_type<tc>, window_params = [{transform_indices = @transform_0, window_bounds = array<i64: 1, 16, 128>}, {pipeline_mode = #tpu.pipeline_mode<synchronous>, transform_indices = @transform_1, window_bounds = array<i64: 128, 128>}, {pipeline_mode = #tpu.pipeline_mode<synchronous>, transform_indices = @transform_2, window_bounds = array<i64: 1, 1, 128>}, {transform_indices = @transform_3, window_bounds = array<i64: 1, 16, 128>}]} {
    %c0 = arith.constant 0 : index
    %c0_0 = arith.constant 0 : index
    %c0_1 = arith.constant 0 : index
    %0 = vector.load %arg2[%c0, %c0_0, %c0_1] : memref<1x16x128xf32, #tpu.memory_space<vmem>>, vector<1x16x128xf32>
    %1 = vector.shape_cast %0 : vector<1x16x128xf32> to vector<16x128xf32>
    %c0_2 = arith.constant 0 : index
    %c0_3 = arith.constant 0 : index
    %2 = vector.load %arg3[%c0_2, %c0_3] : memref<128x128xf32, #tpu.memory_space<vmem>>, vector<128x128xf32>
    %cst = arith.constant dense<0.000000e+00> : vector<16x128xf32>
    %3 = tpu.matmul %1, %2, %cst {dimension_numbers = #tpu.dot_dimension_numbers<[1], [0], [0], [1], [0, 0, 1, 1], [], []>} : vector<16x128xf32>, vector<128x128xf32>, vector<16x128xf32> -> vector<16x128xf32>
    %c0_4 = arith.constant 0 : index
    %c0_5 = arith.constant 0 : index
    %c0_6 = arith.constant 0 : index
    %4 = vector.load %arg4[%c0_4, %c0_5, %c0_6] : memref<1x1x128xf32, #tpu.memory_space<vmem>>, vector<1x1x128xf32>
    %5 = vector.shape_cast %4 : vector<1x1x128xf32> to vector<1x128xf32>
    %6 = vector.broadcast %5 : vector<1x128xf32> to vector<16x128xf32>
    %7 = arith.addf %3, %6 : vector<16x128xf32>
    %c0_7 = arith.constant 0 : index
    %c0_8 = arith.constant 0 : index
    %c0_9 = arith.constant 0 : index
    %8 = vector.load %arg5[%c0_7, %c0_8, %c0_9] : memref<1x16x128xf32, #tpu.memory_space<vmem>>, vector<1x16x128xf32>
    %9 = vector.shape_cast %8 : vector<1x16x128xf32> to vector<16x128xf32>
    %10 = vector.shape_cast %7 : vector<16x128xf32> to vector<1x16x128xf32>
    tpu.vector_store %arg5[%c0_7, %c0_8, %c0_9], %10 {strides = array<i32>} : memref<1x16x128xf32, #tpu.memory_space<vmem>>, vector<1x16x128xf32>,
    return
  }
  func.func @transform_0(%arg0: i32, %arg1: i32) -> (i32, i32, i32) {
    %c0_i32 = arith.constant 0 : i32
    %c0_i32_0 = arith.constant 0 : i32
    return %arg0, %arg1, %c0_i32 : i32, i32, i32
  }
  func.func @transform_1(%arg0: i32, %arg1: i32) -> (i32, i32) {
    %c0_i32 = arith.constant 0 : i32
    %c0_i32_0 = arith.constant 0 : i32
    %c0_i32_1 = arith.constant 0 : i32
    return %c0_i32, %c0_i32_0 : i32, i32
  }
  func.func @transform_2(%arg0: i32, %arg1: i32) -> (i32, i32, i32) {
    %c0_i32 = arith.constant 0 : i32
    %c0_i32_0 = arith.constant 0 : i32
    %c0_i32_1 = arith.constant 0 : i32
    %c0_i32_2 = arith.constant 0 : i32
    return %c0_i32, %c0_i32_0, %c0_i32_1 : i32, i32, i32
  }
  func.func @transform_3(%arg0: i32, %arg1: i32) -> (i32, i32, i32) {
    %c0_i32 = arith.constant 0 : i32
    %c0_i32_0 = arith.constant 0 : i32
    return %arg0, %arg1, %c0_i32 : i32, i32, i32
  }
}

module attributes {stable_mosaic.version = 11 : i64} {
  func.func @_affine_act_kernel(%arg0: i32, %arg1: i32, %arg2: memref<1x16x128xf32, #tpu.memory_space<vmem>>, %arg3: memref<1x1x128xf32, #tpu.memory_space<vmem>>, %arg4: memref<1x1x128xf32, #tpu.memory_space<vmem>>, %arg5: memref<1x16x128xf32, #tpu.memory_space<vmem>>) attributes {dimension_semantics = [#tpu.dimension_semantics<parallel>, #tpu.dimension_semantics<parallel>], iteration_bounds = array<i64: 2, 1>, scalar_prefetch = 0 : i64, scratch_operands = 0 : i64, tpu.core_type = #tpu.core_type<tc>, window_params = [{transform_indices = @transform_0, window_bounds = array<i64: 1, 16, 128>}, {transform_indices = @transform_1, window_bounds = array<i64: 1, 1, 128>}, {transform_indices = @transform_2, window_bounds = array<i64: 1, 1, 128>}, {transform_indices = @transform_3, window_bounds = array<i64: 1, 16, 128>}]} {
    %c0 = arith.constant 0 : index
    %c0_0 = arith.constant 0 : index
    %c0_1 = arith.constant 0 : index
    %0 = vector.load %arg2[%c0, %c0_0, %c0_1] : memref<1x16x128xf32, #tpu.memory_space<vmem>>, vector<1x16x128xf32>
    %1 = vector.shape_cast %0 : vector<1x16x128xf32> to vector<16x128xf32>
    %c0_2 = arith.constant 0 : index
    %c0_3 = arith.constant 0 : index
    %c0_4 = arith.constant 0 : index
    %2 = vector.load %arg3[%c0_2, %c0_3, %c0_4] : memref<1x1x128xf32, #tpu.memory_space<vmem>>, vector<1x1x128xf32>
    %3 = vector.shape_cast %2 : vector<1x1x128xf32> to vector<1x128xf32>
    %4 = vector.broadcast %3 : vector<1x128xf32> to vector<16x128xf32>
    %5 = arith.mulf %1, %4 : vector<16x128xf32>
    %c0_5 = arith.constant 0 : index
    %c0_6 = arith.constant 0 : index
    %c0_7 = arith.constant 0 : index
    %6 = vector.load %arg4[%c0_5, %c0_6, %c0_7] : memref<1x1x128xf32, #tpu.memory_space<vmem>>, vector<1x1x128xf32>
    %7 = vector.shape_cast %6 : vector<1x1x128xf32> to vector<1x128xf32>
    %8 = vector.broadcast %7 : vector<1x128xf32> to vector<16x128xf32>
    %9 = arith.addf %5, %8 : vector<16x128xf32>
    %cst = arith.constant 0.000000e+00 : f32
    %10 = vector.broadcast %cst : f32 to vector<16x128xf32>
    %11 = arith.maximumf %9, %10 : vector<16x128xf32>
    %c0_8 = arith.constant 0 : index
    %c0_9 = arith.constant 0 : index
    %c0_10 = arith.constant 0 : index
    %12 = vector.load %arg5[%c0_8, %c0_9, %c0_10] : memref<1x16x128xf32, #tpu.memory_space<vmem>>, vector<1x16x128xf32>
    %13 = vector.shape_cast %12 : vector<1x16x128xf32> to vector<16x128xf32>
    %14 = vector.shape_cast %11 : vector<16x128xf32> to vector<1x16x128xf32>
    tpu.vector_store %arg5[%c0_8, %c0_9, %c0_10], %14 {strides = array<i32>} : memref<1x16x128xf32, #tpu.memory_space<vmem>>, vector<1x16x128xf32>,
    return
  }
  func.func @transform_0(%arg0: i32, %arg1: i32) -> (i32, i32, i32) {
    %c0_i32 = arith.constant 0 : i32
    %c0_i32_0 = arith.constant 0 : i32
    return %arg0, %arg1, %c0_i32 : i32, i32, i32
  }
  func.func @transform_1(%arg0: i32, %arg1: i32) -> (i32, i32, i32) {
    %c0_i32 = arith.constant 0 : i32
    %c0_i32_0 = arith.constant 0 : i32
    %c0_i32_1 = arith.constant 0 : i32
    return %arg0, %c0_i32, %c0_i32_0 : i32, i32, i32
  }
  func.func @transform_2(%arg0: i32, %arg1: i32) -> (i32, i32, i32) {
    %c0_i32 = arith.constant 0 : i32
    %c0_i32_0 = arith.constant 0 : i32
    %c0_i32_1 = arith.constant 0 : i32
    return %arg0, %c0_i32, %c0_i32_0 : i32, i32, i32
  }
  func.func @transform_3(%arg0: i32, %arg1: i32) -> (i32, i32, i32) {
    %c0_i32 = arith.constant 0 : i32
    %c0_i32_0 = arith.constant 0 : i32
    return %arg0, %arg1, %c0_i32 : i32, i32, i32
  }
}

module attributes {stable_mosaic.version = 11 : i64} {
  func.func @_affine_res_act_kernel(%arg0: i32, %arg1: i32, %arg2: memref<1x16x128xf32, #tpu.memory_space<vmem>>, %arg3: memref<1x1x128xf32, #tpu.memory_space<vmem>>, %arg4: memref<1x1x128xf32, #tpu.memory_space<vmem>>, %arg5: memref<1x16x128xf32, #tpu.memory_space<vmem>>, %arg6: memref<1x16x128xf32, #tpu.memory_space<vmem>>) attributes {dimension_semantics = [#tpu.dimension_semantics<parallel>, #tpu.dimension_semantics<parallel>], iteration_bounds = array<i64: 2, 1>, scalar_prefetch = 0 : i64, scratch_operands = 0 : i64, tpu.core_type = #tpu.core_type<tc>, window_params = [{transform_indices = @transform_0, window_bounds = array<i64: 1, 16, 128>}, {transform_indices = @transform_1, window_bounds = array<i64: 1, 1, 128>}, {transform_indices = @transform_2, window_bounds = array<i64: 1, 1, 128>}, {transform_indices = @transform_3, window_bounds = array<i64: 1, 16, 128>}, {transform_indices = @transform_4, window_bounds = array<i64: 1, 16, 128>}]} {
    %c0 = arith.constant 0 : index
    %c0_0 = arith.constant 0 : index
    %c0_1 = arith.constant 0 : index
    %0 = vector.load %arg2[%c0, %c0_0, %c0_1] : memref<1x16x128xf32, #tpu.memory_space<vmem>>, vector<1x16x128xf32>
    %1 = vector.shape_cast %0 : vector<1x16x128xf32> to vector<16x128xf32>
    %c0_2 = arith.constant 0 : index
    %c0_3 = arith.constant 0 : index
    %c0_4 = arith.constant 0 : index
    %2 = vector.load %arg3[%c0_2, %c0_3, %c0_4] : memref<1x1x128xf32, #tpu.memory_space<vmem>>, vector<1x1x128xf32>
    %3 = vector.shape_cast %2 : vector<1x1x128xf32> to vector<1x128xf32>
    %4 = vector.broadcast %3 : vector<1x128xf32> to vector<16x128xf32>
    %5 = arith.mulf %1, %4 : vector<16x128xf32>
    %c0_5 = arith.constant 0 : index
    %c0_6 = arith.constant 0 : index
    %c0_7 = arith.constant 0 : index
    %6 = vector.load %arg4[%c0_5, %c0_6, %c0_7] : memref<1x1x128xf32, #tpu.memory_space<vmem>>, vector<1x1x128xf32>
    %7 = vector.shape_cast %6 : vector<1x1x128xf32> to vector<1x128xf32>
    %8 = vector.broadcast %7 : vector<1x128xf32> to vector<16x128xf32>
    %9 = arith.addf %5, %8 : vector<16x128xf32>
    %c0_8 = arith.constant 0 : index
    %c0_9 = arith.constant 0 : index
    %c0_10 = arith.constant 0 : index
    %10 = vector.load %arg5[%c0_8, %c0_9, %c0_10] : memref<1x16x128xf32, #tpu.memory_space<vmem>>, vector<1x16x128xf32>
    %11 = vector.shape_cast %10 : vector<1x16x128xf32> to vector<16x128xf32>
    %12 = arith.addf %9, %11 : vector<16x128xf32>
    %cst = arith.constant 0.000000e+00 : f32
    %13 = vector.broadcast %cst : f32 to vector<16x128xf32>
    %14 = arith.maximumf %12, %13 : vector<16x128xf32>
    %c0_11 = arith.constant 0 : index
    %c0_12 = arith.constant 0 : index
    %c0_13 = arith.constant 0 : index
    %15 = vector.load %arg6[%c0_11, %c0_12, %c0_13] : memref<1x16x128xf32, #tpu.memory_space<vmem>>, vector<1x16x128xf32>
    %16 = vector.shape_cast %15 : vector<1x16x128xf32> to vector<16x128xf32>
    %17 = vector.shape_cast %14 : vector<16x128xf32> to vector<1x16x128xf32>
    tpu.vector_store %arg6[%c0_11, %c0_12, %c0_13], %17 {strides = array<i32>} : memref<1x16x128xf32, #tpu.memory_space<vmem>>, vector<1x16x128xf32>,
    return
  }
  func.func @transform_0(%arg0: i32, %arg1: i32) -> (i32, i32, i32) {
    %c0_i32 = arith.constant 0 : i32
    %c0_i32_0 = arith.constant 0 : i32
    return %arg0, %arg1, %c0_i32 : i32, i32, i32
  }
  func.func @transform_1(%arg0: i32, %arg1: i32) -> (i32, i32, i32) {
    %c0_i32 = arith.constant 0 : i32
    %c0_i32_0 = arith.constant 0 : i32
    %c0_i32_1 = arith.constant 0 : i32
    return %arg0, %c0_i32, %c0_i32_0 : i32, i32, i32
  }
  func.func @transform_2(%arg0: i32, %arg1: i32) -> (i32, i32, i32) {
    %c0_i32 = arith.constant 0 : i32
    %c0_i32_0 = arith.constant 0 : i32
    %c0_i32_1 = arith.constant 0 : i32
    return %arg0, %c0_i32, %c0_i32_0 : i32, i32, i32
  }
  func.func @transform_3(%arg0: i32, %arg1: i32) -> (i32, i32, i32) {
    %c0_i32 = arith.constant 0 : i32
    %c0_i32_0 = arith.constant 0 : i32
    return %arg0, %arg1, %c0_i32 : i32, i32, i32
  }
  func.func @transform_4(%arg0: i32, %arg1: i32) -> (i32, i32, i32) {
    %c0_i32 = arith.constant 0 : i32
    %c0_i32_0 = arith.constant 0 : i32
    return %arg0, %arg1, %c0_i32 : i32, i32, i32
  }
}

module attributes {stable_mosaic.version = 11 : i64} {
  func.func @_mm_pre_kernel(%arg0: i32, %arg1: i32, %arg2: memref<1x16x128xf32, #tpu.memory_space<vmem>>, %arg3: memref<1x1x128xf32, #tpu.memory_space<vmem>>, %arg4: memref<1x1x128xf32, #tpu.memory_space<vmem>>, %arg5: memref<128x128xf32, #tpu.memory_space<vmem>>, %arg6: memref<1x1x128xf32, #tpu.memory_space<vmem>>, %arg7: memref<1x16x128xf32, #tpu.memory_space<vmem>>) attributes {dimension_semantics = [#tpu.dimension_semantics<parallel>, #tpu.dimension_semantics<parallel>], iteration_bounds = array<i64: 2, 1>, scalar_prefetch = 0 : i64, scratch_operands = 0 : i64, tpu.core_type = #tpu.core_type<tc>, window_params = [{transform_indices = @transform_0, window_bounds = array<i64: 1, 16, 128>}, {transform_indices = @transform_1, window_bounds = array<i64: 1, 1, 128>}, {transform_indices = @transform_2, window_bounds = array<i64: 1, 1, 128>}, {pipeline_mode = #tpu.pipeline_mode<synchronous>, transform_indices = @transform_3, window_bounds = array<i64: 128, 128>}, {pipeline_mode = #tpu.pipeline_mode<synchronous>, transform_indices = @transform_4, window_bounds = array<i64: 1, 1, 128>}, {transform_indices = @transform_5, window_bounds = array<i64: 1, 16, 128>}]} {
    %c0 = arith.constant 0 : index
    %c0_0 = arith.constant 0 : index
    %c0_1 = arith.constant 0 : index
    %0 = vector.load %arg2[%c0, %c0_0, %c0_1] : memref<1x16x128xf32, #tpu.memory_space<vmem>>, vector<1x16x128xf32>
    %1 = vector.shape_cast %0 : vector<1x16x128xf32> to vector<16x128xf32>
    %c0_2 = arith.constant 0 : index
    %c0_3 = arith.constant 0 : index
    %c0_4 = arith.constant 0 : index
    %2 = vector.load %arg3[%c0_2, %c0_3, %c0_4] : memref<1x1x128xf32, #tpu.memory_space<vmem>>, vector<1x1x128xf32>
    %3 = vector.shape_cast %2 : vector<1x1x128xf32> to vector<1x128xf32>
    %4 = vector.broadcast %3 : vector<1x128xf32> to vector<16x128xf32>
    %5 = arith.mulf %1, %4 : vector<16x128xf32>
    %c0_5 = arith.constant 0 : index
    %c0_6 = arith.constant 0 : index
    %c0_7 = arith.constant 0 : index
    %6 = vector.load %arg4[%c0_5, %c0_6, %c0_7] : memref<1x1x128xf32, #tpu.memory_space<vmem>>, vector<1x1x128xf32>
    %7 = vector.shape_cast %6 : vector<1x1x128xf32> to vector<1x128xf32>
    %8 = vector.broadcast %7 : vector<1x128xf32> to vector<16x128xf32>
    %9 = arith.addf %5, %8 : vector<16x128xf32>
    %cst = arith.constant 0.000000e+00 : f32
    %10 = vector.broadcast %cst : f32 to vector<16x128xf32>
    %11 = arith.maximumf %9, %10 : vector<16x128xf32>
    %c0_8 = arith.constant 0 : index
    %c0_9 = arith.constant 0 : index
    %12 = vector.load %arg5[%c0_8, %c0_9] : memref<128x128xf32, #tpu.memory_space<vmem>>, vector<128x128xf32>
    %cst_10 = arith.constant dense<0.000000e+00> : vector<16x128xf32>
    %13 = tpu.matmul %11, %12, %cst_10 {dimension_numbers = #tpu.dot_dimension_numbers<[1], [0], [0], [1], [0, 0, 1, 1], [], []>} : vector<16x128xf32>, vector<128x128xf32>, vector<16x128xf32> -> vector<16x128xf32>
    %c0_11 = arith.constant 0 : index
    %c0_12 = arith.constant 0 : index
    %c0_13 = arith.constant 0 : index
    %14 = vector.load %arg6[%c0_11, %c0_12, %c0_13] : memref<1x1x128xf32, #tpu.memory_space<vmem>>, vector<1x1x128xf32>
    %15 = vector.shape_cast %14 : vector<1x1x128xf32> to vector<1x128xf32>
    %16 = vector.broadcast %15 : vector<1x128xf32> to vector<16x128xf32>
    %17 = arith.addf %13, %16 : vector<16x128xf32>
    %c0_14 = arith.constant 0 : index
    %c0_15 = arith.constant 0 : index
    %c0_16 = arith.constant 0 : index
    %18 = vector.load %arg7[%c0_14, %c0_15, %c0_16] : memref<1x16x128xf32, #tpu.memory_space<vmem>>, vector<1x16x128xf32>
    %19 = vector.shape_cast %18 : vector<1x16x128xf32> to vector<16x128xf32>
    %20 = vector.shape_cast %17 : vector<16x128xf32> to vector<1x16x128xf32>
    tpu.vector_store %arg7[%c0_14, %c0_15, %c0_16], %20 {strides = array<i32>} : memref<1x16x128xf32, #tpu.memory_space<vmem>>, vector<1x16x128xf32>,
    return
  }
  func.func @transform_0(%arg0: i32, %arg1: i32) -> (i32, i32, i32) {
    %c0_i32 = arith.constant 0 : i32
    %c0_i32_0 = arith.constant 0 : i32
    return %arg0, %arg1, %c0_i32 : i32, i32, i32
  }
  func.func @transform_1(%arg0: i32, %arg1: i32) -> (i32, i32, i32) {
    %c0_i32 = arith.constant 0 : i32
    %c0_i32_0 = arith.constant 0 : i32
    %c0_i32_1 = arith.constant 0 : i32
    return %arg0, %c0_i32, %c0_i32_0 : i32, i32, i32
  }
  func.func @transform_2(%arg0: i32, %arg1: i32) -> (i32, i32, i32) {
    %c0_i32 = arith.constant 0 : i32
    %c0_i32_0 = arith.constant 0 : i32
    %c0_i32_1 = arith.constant 0 : i32
    return %arg0, %c0_i32, %c0_i32_0 : i32, i32, i32
  }
  func.func @transform_3(%arg0: i32, %arg1: i32) -> (i32, i32) {
    %c0_i32 = arith.constant 0 : i32
    %c0_i32_0 = arith.constant 0 : i32
    %c0_i32_1 = arith.constant 0 : i32
    return %c0_i32, %c0_i32_0 : i32, i32
  }
  func.func @transform_4(%arg0: i32, %arg1: i32) -> (i32, i32, i32) {
    %c0_i32 = arith.constant 0 : i32
    %c0_i32_0 = arith.constant 0 : i32
    %c0_i32_1 = arith.constant 0 : i32
    %c0_i32_2 = arith.constant 0 : i32
    return %c0_i32, %c0_i32_0, %c0_i32_1 : i32, i32, i32
  }
  func.func @transform_5(%arg0: i32, %arg1: i32) -> (i32, i32, i32) {
    %c0_i32 = arith.constant 0 : i32
    %c0_i32_0 = arith.constant 0 : i32
    return %arg0, %arg1, %c0_i32 : i32, i32, i32
  }
}

module attributes {stable_mosaic.version = 11 : i64} {
  func.func @_pdist_kernel(%arg0: i32, %arg1: i32, %arg2: memref<1x16x128xf32, #tpu.memory_space<vmem>>, %arg3: memref<1x16x128xf32, #tpu.memory_space<vmem>>, %arg4: memref<1x1x16xf32, #tpu.memory_space<vmem>>, %arg5: memref<1x16x16xf32, #tpu.memory_space<vmem>>) attributes {dimension_semantics = [#tpu.dimension_semantics<parallel>, #tpu.dimension_semantics<parallel>], iteration_bounds = array<i64: 2, 1>, scalar_prefetch = 0 : i64, scratch_operands = 0 : i64, tpu.core_type = #tpu.core_type<tc>, window_params = [{transform_indices = @transform_0, window_bounds = array<i64: 1, 16, 128>}, {transform_indices = @transform_1, window_bounds = array<i64: 1, 16, 128>}, {transform_indices = @transform_2, window_bounds = array<i64: 1, 1, 16>}, {transform_indices = @transform_3, window_bounds = array<i64: 1, 16, 16>}]} {
    %c0 = arith.constant 0 : index
    %c0_0 = arith.constant 0 : index
    %c0_1 = arith.constant 0 : index
    %0 = vector.load %arg2[%c0, %c0_0, %c0_1] : memref<1x16x128xf32, #tpu.memory_space<vmem>>, vector<1x16x128xf32>
    %1 = vector.shape_cast %0 : vector<1x16x128xf32> to vector<16x128xf32>
    %c0_2 = arith.constant 0 : index
    %c0_3 = arith.constant 0 : index
    %c0_4 = arith.constant 0 : index
    %2 = vector.load %arg3[%c0_2, %c0_3, %c0_4] : memref<1x16x128xf32, #tpu.memory_space<vmem>>, vector<1x16x128xf32>
    %3 = vector.shape_cast %2 : vector<1x16x128xf32> to vector<16x128xf32>
    %cst = arith.constant dense<0.000000e+00> : vector<16x16xf32>
    %4 = tpu.matmul %1, %3, %cst {dimension_numbers = #tpu.dot_dimension_numbers<[1], [1], [0], [0], [0, 0, 1, 0], [], []>} : vector<16x128xf32>, vector<16x128xf32>, vector<16x16xf32> -> vector<16x16xf32>
    %5 = arith.mulf %1, %1 : vector<16x128xf32>
    %cst_5 = arith.constant dense<0.000000e+00> : vector<16xf32>
    %6 = vector.multi_reduction <add>, %5, %cst_5 [1] : vector<16x128xf32> to vector<16xf32>
    %7 = vector.shape_cast %6 : vector<16xf32> to vector<16x1xf32>
    %cst_6 = arith.constant 2.000000e+00 : f32
    %8 = vector.broadcast %cst_6 : f32 to vector<16x16xf32>
    %9 = arith.mulf %8, %4 : vector<16x16xf32>
    %10 = vector.broadcast %7 : vector<16x1xf32> to vector<16x16xf32>
    %11 = arith.subf %9, %10 : vector<16x16xf32>
    %c0_7 = arith.constant 0 : index
    %c0_8 = arith.constant 0 : index
    %c0_9 = arith.constant 0 : index
    %12 = vector.load %arg4[%c0_7, %c0_8, %c0_9] : memref<1x1x16xf32, #tpu.memory_space<vmem>>, vector<1x1x16xf32>
    %13 = vector.shape_cast %12 : vector<1x1x16xf32> to vector<1x16xf32>
    %14 = vector.broadcast %13 : vector<1x16xf32> to vector<16x16xf32>
    %15 = arith.subf %11, %14 : vector<16x16xf32>
    %c0_10 = arith.constant 0 : index
    %c0_11 = arith.constant 0 : index
    %c0_12 = arith.constant 0 : index
    %16 = vector.load %arg5[%c0_10, %c0_11, %c0_12] : memref<1x16x16xf32, #tpu.memory_space<vmem>>, vector<1x16x16xf32>
    %17 = vector.shape_cast %16 : vector<1x16x16xf32> to vector<16x16xf32>
    %18 = vector.shape_cast %15 : vector<16x16xf32> to vector<1x16x16xf32>
    tpu.vector_store %arg5[%c0_10, %c0_11, %c0_12], %18 {strides = array<i32>} : memref<1x16x16xf32, #tpu.memory_space<vmem>>, vector<1x16x16xf32>,
    return
  }
  func.func @transform_0(%arg0: i32, %arg1: i32) -> (i32, i32, i32) {
    %c0_i32 = arith.constant 0 : i32
    %c0_i32_0 = arith.constant 0 : i32
    return %arg0, %arg1, %c0_i32 : i32, i32, i32
  }
  func.func @transform_1(%arg0: i32, %arg1: i32) -> (i32, i32, i32) {
    %c0_i32 = arith.constant 0 : i32
    %c0_i32_0 = arith.constant 0 : i32
    %c0_i32_1 = arith.constant 0 : i32
    return %arg0, %c0_i32, %c0_i32_0 : i32, i32, i32
  }
  func.func @transform_2(%arg0: i32, %arg1: i32) -> (i32, i32, i32) {
    %c0_i32 = arith.constant 0 : i32
    %c0_i32_0 = arith.constant 0 : i32
    %c0_i32_1 = arith.constant 0 : i32
    return %arg0, %c0_i32, %c0_i32_0 : i32, i32, i32
  }
  func.func @transform_3(%arg0: i32, %arg1: i32) -> (i32, i32, i32) {
    %c0_i32 = arith.constant 0 : i32
    %c0_i32_0 = arith.constant 0 : i32
    return %arg0, %arg1, %c0_i32 : i32, i32, i32
  }
}

module attributes {stable_mosaic.version = 11 : i64} {
  func.func @_mm_kernel(%arg0: i32, %arg1: i32, %arg2: memref<1x48x768xf32, #tpu.memory_space<vmem>>, %arg3: memref<768x128xf32, #tpu.memory_space<vmem>>, %arg4: memref<1x1x128xf32, #tpu.memory_space<vmem>>, %arg5: memref<1x48x128xf32, #tpu.memory_space<vmem>>) attributes {dimension_semantics = [#tpu.dimension_semantics<parallel>, #tpu.dimension_semantics<parallel>], iteration_bounds = array<i64: 2, 1>, scalar_prefetch = 0 : i64, scratch_operands = 0 : i64, tpu.core_type = #tpu.core_type<tc>, window_params = [{transform_indices = @transform_0, window_bounds = array<i64: 1, 48, 768>}, {pipeline_mode = #tpu.pipeline_mode<synchronous>, transform_indices = @transform_1, window_bounds = array<i64: 768, 128>}, {pipeline_mode = #tpu.pipeline_mode<synchronous>, transform_indices = @transform_2, window_bounds = array<i64: 1, 1, 128>}, {transform_indices = @transform_3, window_bounds = array<i64: 1, 48, 128>}]} {
    %c0 = arith.constant 0 : index
    %c0_0 = arith.constant 0 : index
    %c0_1 = arith.constant 0 : index
    %0 = vector.load %arg2[%c0, %c0_0, %c0_1] : memref<1x48x768xf32, #tpu.memory_space<vmem>>, vector<1x48x768xf32>
    %1 = vector.shape_cast %0 : vector<1x48x768xf32> to vector<48x768xf32>
    %c0_2 = arith.constant 0 : index
    %c0_3 = arith.constant 0 : index
    %2 = vector.load %arg3[%c0_2, %c0_3] : memref<768x128xf32, #tpu.memory_space<vmem>>, vector<768x128xf32>
    %cst = arith.constant dense<0.000000e+00> : vector<48x128xf32>
    %3 = tpu.matmul %1, %2, %cst {dimension_numbers = #tpu.dot_dimension_numbers<[1], [0], [0], [1], [0, 0, 1, 1], [], []>} : vector<48x768xf32>, vector<768x128xf32>, vector<48x128xf32> -> vector<48x128xf32>
    %c0_4 = arith.constant 0 : index
    %c0_5 = arith.constant 0 : index
    %c0_6 = arith.constant 0 : index
    %4 = vector.load %arg4[%c0_4, %c0_5, %c0_6] : memref<1x1x128xf32, #tpu.memory_space<vmem>>, vector<1x1x128xf32>
    %5 = vector.shape_cast %4 : vector<1x1x128xf32> to vector<1x128xf32>
    %6 = vector.broadcast %5 : vector<1x128xf32> to vector<48x128xf32>
    %7 = arith.addf %3, %6 : vector<48x128xf32>
    %c0_7 = arith.constant 0 : index
    %c0_8 = arith.constant 0 : index
    %c0_9 = arith.constant 0 : index
    %8 = vector.load %arg5[%c0_7, %c0_8, %c0_9] : memref<1x48x128xf32, #tpu.memory_space<vmem>>, vector<1x48x128xf32>
    %9 = vector.shape_cast %8 : vector<1x48x128xf32> to vector<48x128xf32>
    %10 = vector.shape_cast %7 : vector<48x128xf32> to vector<1x48x128xf32>
    tpu.vector_store %arg5[%c0_7, %c0_8, %c0_9], %10 {strides = array<i32>} : memref<1x48x128xf32, #tpu.memory_space<vmem>>, vector<1x48x128xf32>,
    return
  }
  func.func @transform_0(%arg0: i32, %arg1: i32) -> (i32, i32, i32) {
    %c0_i32 = arith.constant 0 : i32
    %c0_i32_0 = arith.constant 0 : i32
    return %arg0, %arg1, %c0_i32 : i32, i32, i32
  }
  func.func @transform_1(%arg0: i32, %arg1: i32) -> (i32, i32) {
    %c0_i32 = arith.constant 0 : i32
    %c0_i32_0 = arith.constant 0 : i32
    %c0_i32_1 = arith.constant 0 : i32
    return %c0_i32, %c0_i32_0 : i32, i32
  }
  func.func @transform_2(%arg0: i32, %arg1: i32) -> (i32, i32, i32) {
    %c0_i32 = arith.constant 0 : i32
    %c0_i32_0 = arith.constant 0 : i32
    %c0_i32_1 = arith.constant 0 : i32
    %c0_i32_2 = arith.constant 0 : i32
    return %c0_i32, %c0_i32_0, %c0_i32_1 : i32, i32, i32
  }
  func.func @transform_3(%arg0: i32, %arg1: i32) -> (i32, i32, i32) {
    %c0_i32 = arith.constant 0 : i32
    %c0_i32_0 = arith.constant 0 : i32
    return %arg0, %arg1, %c0_i32 : i32, i32, i32
  }
}

module attributes {stable_mosaic.version = 11 : i64} {
  func.func @_mm_pre_kernel(%arg0: i32, %arg1: i32, %arg2: memref<1x16x384xf32, #tpu.memory_space<vmem>>, %arg3: memref<1x1x384xf32, #tpu.memory_space<vmem>>, %arg4: memref<1x1x384xf32, #tpu.memory_space<vmem>>, %arg5: memref<384x128xf32, #tpu.memory_space<vmem>>, %arg6: memref<1x1x128xf32, #tpu.memory_space<vmem>>, %arg7: memref<1x16x128xf32, #tpu.memory_space<vmem>>) attributes {dimension_semantics = [#tpu.dimension_semantics<parallel>, #tpu.dimension_semantics<parallel>], iteration_bounds = array<i64: 2, 1>, scalar_prefetch = 0 : i64, scratch_operands = 0 : i64, tpu.core_type = #tpu.core_type<tc>, window_params = [{transform_indices = @transform_0, window_bounds = array<i64: 1, 16, 384>}, {transform_indices = @transform_1, window_bounds = array<i64: 1, 1, 384>}, {transform_indices = @transform_2, window_bounds = array<i64: 1, 1, 384>}, {pipeline_mode = #tpu.pipeline_mode<synchronous>, transform_indices = @transform_3, window_bounds = array<i64: 384, 128>}, {pipeline_mode = #tpu.pipeline_mode<synchronous>, transform_indices = @transform_4, window_bounds = array<i64: 1, 1, 128>}, {transform_indices = @transform_5, window_bounds = array<i64: 1, 16, 128>}]} {
    %c0 = arith.constant 0 : index
    %c0_0 = arith.constant 0 : index
    %c0_1 = arith.constant 0 : index
    %0 = vector.load %arg2[%c0, %c0_0, %c0_1] : memref<1x16x384xf32, #tpu.memory_space<vmem>>, vector<1x16x384xf32>
    %1 = vector.shape_cast %0 : vector<1x16x384xf32> to vector<16x384xf32>
    %c0_2 = arith.constant 0 : index
    %c0_3 = arith.constant 0 : index
    %c0_4 = arith.constant 0 : index
    %2 = vector.load %arg3[%c0_2, %c0_3, %c0_4] : memref<1x1x384xf32, #tpu.memory_space<vmem>>, vector<1x1x384xf32>
    %3 = vector.shape_cast %2 : vector<1x1x384xf32> to vector<1x384xf32>
    %4 = vector.broadcast %3 : vector<1x384xf32> to vector<16x384xf32>
    %5 = arith.mulf %1, %4 : vector<16x384xf32>
    %c0_5 = arith.constant 0 : index
    %c0_6 = arith.constant 0 : index
    %c0_7 = arith.constant 0 : index
    %6 = vector.load %arg4[%c0_5, %c0_6, %c0_7] : memref<1x1x384xf32, #tpu.memory_space<vmem>>, vector<1x1x384xf32>
    %7 = vector.shape_cast %6 : vector<1x1x384xf32> to vector<1x384xf32>
    %8 = vector.broadcast %7 : vector<1x384xf32> to vector<16x384xf32>
    %9 = arith.addf %5, %8 : vector<16x384xf32>
    %cst = arith.constant 0.000000e+00 : f32
    %10 = vector.broadcast %cst : f32 to vector<16x384xf32>
    %11 = arith.maximumf %9, %10 : vector<16x384xf32>
    %c0_8 = arith.constant 0 : index
    %c0_9 = arith.constant 0 : index
    %12 = vector.load %arg5[%c0_8, %c0_9] : memref<384x128xf32, #tpu.memory_space<vmem>>, vector<384x128xf32>
    %cst_10 = arith.constant dense<0.000000e+00> : vector<16x128xf32>
    %13 = tpu.matmul %11, %12, %cst_10 {dimension_numbers = #tpu.dot_dimension_numbers<[1], [0], [0], [1], [0, 0, 1, 1], [], []>} : vector<16x384xf32>, vector<384x128xf32>, vector<16x128xf32> -> vector<16x128xf32>
    %c0_11 = arith.constant 0 : index
    %c0_12 = arith.constant 0 : index
    %c0_13 = arith.constant 0 : index
    %14 = vector.load %arg6[%c0_11, %c0_12, %c0_13] : memref<1x1x128xf32, #tpu.memory_space<vmem>>, vector<1x1x128xf32>
    %15 = vector.shape_cast %14 : vector<1x1x128xf32> to vector<1x128xf32>
    %16 = vector.broadcast %15 : vector<1x128xf32> to vector<16x128xf32>
    %17 = arith.addf %13, %16 : vector<16x128xf32>
    %c0_14 = arith.constant 0 : index
    %c0_15 = arith.constant 0 : index
    %c0_16 = arith.constant 0 : index
    %18 = vector.load %arg7[%c0_14, %c0_15, %c0_16] : memref<1x16x128xf32, #tpu.memory_space<vmem>>, vector<1x16x128xf32>
    %19 = vector.shape_cast %18 : vector<1x16x128xf32> to vector<16x128xf32>
    %20 = vector.shape_cast %17 : vector<16x128xf32> to vector<1x16x128xf32>
    tpu.vector_store %arg7[%c0_14, %c0_15, %c0_16], %20 {strides = array<i32>} : memref<1x16x128xf32, #tpu.memory_space<vmem>>, vector<1x16x128xf32>,
    return
  }
  func.func @transform_0(%arg0: i32, %arg1: i32) -> (i32, i32, i32) {
    %c0_i32 = arith.constant 0 : i32
    %c0_i32_0 = arith.constant 0 : i32
    return %arg0, %arg1, %c0_i32 : i32, i32, i32
  }
  func.func @transform_1(%arg0: i32, %arg1: i32) -> (i32, i32, i32) {
    %c0_i32 = arith.constant 0 : i32
    %c0_i32_0 = arith.constant 0 : i32
    %c0_i32_1 = arith.constant 0 : i32
    return %arg0, %c0_i32, %c0_i32_0 : i32, i32, i32
  }
  func.func @transform_2(%arg0: i32, %arg1: i32) -> (i32, i32, i32) {
    %c0_i32 = arith.constant 0 : i32
    %c0_i32_0 = arith.constant 0 : i32
    %c0_i32_1 = arith.constant 0 : i32
    return %arg0, %c0_i32, %c0_i32_0 : i32, i32, i32
  }
  func.func @transform_3(%arg0: i32, %arg1: i32) -> (i32, i32) {
    %c0_i32 = arith.constant 0 : i32
    %c0_i32_0 = arith.constant 0 : i32
    %c0_i32_1 = arith.constant 0 : i32
    return %c0_i32, %c0_i32_0 : i32, i32
  }
  func.func @transform_4(%arg0: i32, %arg1: i32) -> (i32, i32, i32) {
    %c0_i32 = arith.constant 0 : i32
    %c0_i32_0 = arith.constant 0 : i32
    %c0_i32_1 = arith.constant 0 : i32
    %c0_i32_2 = arith.constant 0 : i32
    return %c0_i32, %c0_i32_0, %c0_i32_1 : i32, i32, i32
  }
  func.func @transform_5(%arg0: i32, %arg1: i32) -> (i32, i32, i32) {
    %c0_i32 = arith.constant 0 : i32
    %c0_i32_0 = arith.constant 0 : i32
    return %arg0, %arg1, %c0_i32 : i32, i32, i32
  }
}

module attributes {stable_mosaic.version = 11 : i64} {
  func.func @_mm_pre_kernel(%arg0: i32, %arg1: i32, %arg2: memref<1x16x128xf32, #tpu.memory_space<vmem>>, %arg3: memref<1x1x128xf32, #tpu.memory_space<vmem>>, %arg4: memref<1x1x128xf32, #tpu.memory_space<vmem>>, %arg5: memref<128x128xf32, #tpu.memory_space<vmem>>, %arg6: memref<1x1x128xf32, #tpu.memory_space<vmem>>, %arg7: memref<1x16x128xf32, #tpu.memory_space<vmem>>) attributes {dimension_semantics = [#tpu.dimension_semantics<parallel>, #tpu.dimension_semantics<parallel>], iteration_bounds = array<i64: 2, 1>, scalar_prefetch = 0 : i64, scratch_operands = 0 : i64, tpu.core_type = #tpu.core_type<tc>, window_params = [{transform_indices = @transform_0, window_bounds = array<i64: 1, 16, 128>}, {transform_indices = @transform_1, window_bounds = array<i64: 1, 1, 128>}, {transform_indices = @transform_2, window_bounds = array<i64: 1, 1, 128>}, {pipeline_mode = #tpu.pipeline_mode<synchronous>, transform_indices = @transform_3, window_bounds = array<i64: 128, 128>}, {pipeline_mode = #tpu.pipeline_mode<synchronous>, transform_indices = @transform_4, window_bounds = array<i64: 1, 1, 128>}, {transform_indices = @transform_5, window_bounds = array<i64: 1, 16, 128>}]} {
    %c0 = arith.constant 0 : index
    %c0_0 = arith.constant 0 : index
    %c0_1 = arith.constant 0 : index
    %0 = vector.load %arg2[%c0, %c0_0, %c0_1] : memref<1x16x128xf32, #tpu.memory_space<vmem>>, vector<1x16x128xf32>
    %1 = vector.shape_cast %0 : vector<1x16x128xf32> to vector<16x128xf32>
    %c0_2 = arith.constant 0 : index
    %c0_3 = arith.constant 0 : index
    %c0_4 = arith.constant 0 : index
    %2 = vector.load %arg3[%c0_2, %c0_3, %c0_4] : memref<1x1x128xf32, #tpu.memory_space<vmem>>, vector<1x1x128xf32>
    %3 = vector.shape_cast %2 : vector<1x1x128xf32> to vector<1x128xf32>
    %4 = vector.broadcast %3 : vector<1x128xf32> to vector<16x128xf32>
    %5 = arith.mulf %1, %4 : vector<16x128xf32>
    %c0_5 = arith.constant 0 : index
    %c0_6 = arith.constant 0 : index
    %c0_7 = arith.constant 0 : index
    %6 = vector.load %arg4[%c0_5, %c0_6, %c0_7] : memref<1x1x128xf32, #tpu.memory_space<vmem>>, vector<1x1x128xf32>
    %7 = vector.shape_cast %6 : vector<1x1x128xf32> to vector<1x128xf32>
    %8 = vector.broadcast %7 : vector<1x128xf32> to vector<16x128xf32>
    %9 = arith.addf %5, %8 : vector<16x128xf32>
    %c0_8 = arith.constant 0 : index
    %c0_9 = arith.constant 0 : index
    %10 = vector.load %arg5[%c0_8, %c0_9] : memref<128x128xf32, #tpu.memory_space<vmem>>, vector<128x128xf32>
    %cst = arith.constant dense<0.000000e+00> : vector<16x128xf32>
    %11 = tpu.matmul %9, %10, %cst {dimension_numbers = #tpu.dot_dimension_numbers<[1], [0], [0], [1], [0, 0, 1, 1], [], []>} : vector<16x128xf32>, vector<128x128xf32>, vector<16x128xf32> -> vector<16x128xf32>
    %c0_10 = arith.constant 0 : index
    %c0_11 = arith.constant 0 : index
    %c0_12 = arith.constant 0 : index
    %12 = vector.load %arg6[%c0_10, %c0_11, %c0_12] : memref<1x1x128xf32, #tpu.memory_space<vmem>>, vector<1x1x128xf32>
    %13 = vector.shape_cast %12 : vector<1x1x128xf32> to vector<1x128xf32>
    %14 = vector.broadcast %13 : vector<1x128xf32> to vector<16x128xf32>
    %15 = arith.addf %11, %14 : vector<16x128xf32>
    %c0_13 = arith.constant 0 : index
    %c0_14 = arith.constant 0 : index
    %c0_15 = arith.constant 0 : index
    %16 = vector.load %arg7[%c0_13, %c0_14, %c0_15] : memref<1x16x128xf32, #tpu.memory_space<vmem>>, vector<1x16x128xf32>
    %17 = vector.shape_cast %16 : vector<1x16x128xf32> to vector<16x128xf32>
    %18 = vector.shape_cast %15 : vector<16x128xf32> to vector<1x16x128xf32>
    tpu.vector_store %arg7[%c0_13, %c0_14, %c0_15], %18 {strides = array<i32>} : memref<1x16x128xf32, #tpu.memory_space<vmem>>, vector<1x16x128xf32>,
    return
  }
  func.func @transform_0(%arg0: i32, %arg1: i32) -> (i32, i32, i32) {
    %c0_i32 = arith.constant 0 : i32
    %c0_i32_0 = arith.constant 0 : i32
    return %arg0, %arg1, %c0_i32 : i32, i32, i32
  }
  func.func @transform_1(%arg0: i32, %arg1: i32) -> (i32, i32, i32) {
    %c0_i32 = arith.constant 0 : i32
    %c0_i32_0 = arith.constant 0 : i32
    %c0_i32_1 = arith.constant 0 : i32
    return %arg0, %c0_i32, %c0_i32_0 : i32, i32, i32
  }
  func.func @transform_2(%arg0: i32, %arg1: i32) -> (i32, i32, i32) {
    %c0_i32 = arith.constant 0 : i32
    %c0_i32_0 = arith.constant 0 : i32
    %c0_i32_1 = arith.constant 0 : i32
    return %arg0, %c0_i32, %c0_i32_0 : i32, i32, i32
  }
  func.func @transform_3(%arg0: i32, %arg1: i32) -> (i32, i32) {
    %c0_i32 = arith.constant 0 : i32
    %c0_i32_0 = arith.constant 0 : i32
    %c0_i32_1 = arith.constant 0 : i32
    return %c0_i32, %c0_i32_0 : i32, i32
  }
  func.func @transform_4(%arg0: i32, %arg1: i32) -> (i32, i32, i32) {
    %c0_i32 = arith.constant 0 : i32
    %c0_i32_0 = arith.constant 0 : i32
    %c0_i32_1 = arith.constant 0 : i32
    %c0_i32_2 = arith.constant 0 : i32
    return %c0_i32, %c0_i32_0, %c0_i32_1 : i32, i32, i32
  }
  func.func @transform_5(%arg0: i32, %arg1: i32) -> (i32, i32, i32) {
    %c0_i32 = arith.constant 0 : i32
    %c0_i32_0 = arith.constant 0 : i32
    return %arg0, %arg1, %c0_i32 : i32, i32, i32
  }
}

module attributes {stable_mosaic.version = 11 : i64} {
  func.func @_affine_res_act_kernel(%arg0: i32, %arg1: i32, %arg2: memref<1x16x128xf32, #tpu.memory_space<vmem>>, %arg3: memref<1x1x128xf32, #tpu.memory_space<vmem>>, %arg4: memref<1x1x128xf32, #tpu.memory_space<vmem>>, %arg5: memref<1x16x128xf32, #tpu.memory_space<vmem>>, %arg6: memref<1x16x128xf32, #tpu.memory_space<vmem>>) attributes {dimension_semantics = [#tpu.dimension_semantics<parallel>, #tpu.dimension_semantics<parallel>], iteration_bounds = array<i64: 2, 1>, scalar_prefetch = 0 : i64, scratch_operands = 0 : i64, tpu.core_type = #tpu.core_type<tc>, window_params = [{transform_indices = @transform_0, window_bounds = array<i64: 1, 16, 128>}, {transform_indices = @transform_1, window_bounds = array<i64: 1, 1, 128>}, {transform_indices = @transform_2, window_bounds = array<i64: 1, 1, 128>}, {transform_indices = @transform_3, window_bounds = array<i64: 1, 16, 128>}, {transform_indices = @transform_4, window_bounds = array<i64: 1, 16, 128>}]} {
    %c0 = arith.constant 0 : index
    %c0_0 = arith.constant 0 : index
    %c0_1 = arith.constant 0 : index
    %0 = vector.load %arg2[%c0, %c0_0, %c0_1] : memref<1x16x128xf32, #tpu.memory_space<vmem>>, vector<1x16x128xf32>
    %1 = vector.shape_cast %0 : vector<1x16x128xf32> to vector<16x128xf32>
    %c0_2 = arith.constant 0 : index
    %c0_3 = arith.constant 0 : index
    %c0_4 = arith.constant 0 : index
    %2 = vector.load %arg3[%c0_2, %c0_3, %c0_4] : memref<1x1x128xf32, #tpu.memory_space<vmem>>, vector<1x1x128xf32>
    %3 = vector.shape_cast %2 : vector<1x1x128xf32> to vector<1x128xf32>
    %4 = vector.broadcast %3 : vector<1x128xf32> to vector<16x128xf32>
    %5 = arith.mulf %1, %4 : vector<16x128xf32>
    %c0_5 = arith.constant 0 : index
    %c0_6 = arith.constant 0 : index
    %c0_7 = arith.constant 0 : index
    %6 = vector.load %arg4[%c0_5, %c0_6, %c0_7] : memref<1x1x128xf32, #tpu.memory_space<vmem>>, vector<1x1x128xf32>
    %7 = vector.shape_cast %6 : vector<1x1x128xf32> to vector<1x128xf32>
    %8 = vector.broadcast %7 : vector<1x128xf32> to vector<16x128xf32>
    %9 = arith.addf %5, %8 : vector<16x128xf32>
    %cst = arith.constant 0.000000e+00 : f32
    %10 = vector.broadcast %cst : f32 to vector<16x128xf32>
    %11 = arith.maximumf %9, %10 : vector<16x128xf32>
    %c0_8 = arith.constant 0 : index
    %c0_9 = arith.constant 0 : index
    %c0_10 = arith.constant 0 : index
    %12 = vector.load %arg5[%c0_8, %c0_9, %c0_10] : memref<1x16x128xf32, #tpu.memory_space<vmem>>, vector<1x16x128xf32>
    %13 = vector.shape_cast %12 : vector<1x16x128xf32> to vector<16x128xf32>
    %14 = arith.addf %11, %13 : vector<16x128xf32>
    %c0_11 = arith.constant 0 : index
    %c0_12 = arith.constant 0 : index
    %c0_13 = arith.constant 0 : index
    %15 = vector.load %arg6[%c0_11, %c0_12, %c0_13] : memref<1x16x128xf32, #tpu.memory_space<vmem>>, vector<1x16x128xf32>
    %16 = vector.shape_cast %15 : vector<1x16x128xf32> to vector<16x128xf32>
    %17 = vector.shape_cast %14 : vector<16x128xf32> to vector<1x16x128xf32>
    tpu.vector_store %arg6[%c0_11, %c0_12, %c0_13], %17 {strides = array<i32>} : memref<1x16x128xf32, #tpu.memory_space<vmem>>, vector<1x16x128xf32>,
    return
  }
  func.func @transform_0(%arg0: i32, %arg1: i32) -> (i32, i32, i32) {
    %c0_i32 = arith.constant 0 : i32
    %c0_i32_0 = arith.constant 0 : i32
    return %arg0, %arg1, %c0_i32 : i32, i32, i32
  }
  func.func @transform_1(%arg0: i32, %arg1: i32) -> (i32, i32, i32) {
    %c0_i32 = arith.constant 0 : i32
    %c0_i32_0 = arith.constant 0 : i32
    %c0_i32_1 = arith.constant 0 : i32
    return %arg0, %c0_i32, %c0_i32_0 : i32, i32, i32
  }
  func.func @transform_2(%arg0: i32, %arg1: i32) -> (i32, i32, i32) {
    %c0_i32 = arith.constant 0 : i32
    %c0_i32_0 = arith.constant 0 : i32
    %c0_i32_1 = arith.constant 0 : i32
    return %arg0, %c0_i32, %c0_i32_0 : i32, i32, i32
  }
  func.func @transform_3(%arg0: i32, %arg1: i32) -> (i32, i32, i32) {
    %c0_i32 = arith.constant 0 : i32
    %c0_i32_0 = arith.constant 0 : i32
    return %arg0, %arg1, %c0_i32 : i32, i32, i32
  }
  func.func @transform_4(%arg0: i32, %arg1: i32) -> (i32, i32, i32) {
    %c0_i32 = arith.constant 0 : i32
    %c0_i32_0 = arith.constant 0 : i32
    return %arg0, %arg1, %c0_i32 : i32, i32, i32
  }
}

</mosaic_0001>

<llo_original>
// kernel: sc_block_forward.52
$region0: #{sc_block_forward.52}
  #allocation0 [shape = 'u32[]', space=smem, size = 0x4, offset = 0x4, fixed_abs, tag = 'smem constant byte address 0x4 - core index']
  #allocation1 [shape = 'u32[144,128]{1,0:T(1,128)}', space=vmem, size = 0x12000, scoped, tag = 'internal scratch']
  %s0 = inlined_call_operand.vmem [shape: f32[2,16,128], index: 0, kind: input, shape index: {}]
  %s1 = inlined_call_operand.vmem [shape: f32[2,1,128], index: 1, kind: input, shape index: {}]
  %s2 = inlined_call_operand.vmem [shape: f32[2,1,128], index: 2, kind: input, shape index: {}]
  %s3 = inlined_call_operand.vmem [shape: f32[2,16,128], index: 3, kind: output, shape index: {}]
  %s4 = sld [smem:[#allocation0]]
  $region45: #{sc_block_forward.52} parent=0
    _
  %s6 = ssub.s32 1, %s4
  %s7 = scalar_select 0, %s6, %s4
  loop: start=0, step=1, limit=4
  $region2: #{sc_block_forward.52} parent=0 // loop_pre_header
    _
  $region3: #{sc_block_forward.52} parent=0 // loop_header
    %s9 = sphi 0, %s13
    %p10 = scmp.ge.s32.totalorder %s9, 4
    %s16 = sphi 0, %s28
    %s17 = sphi 0, %s24
    %s18 = sphi 0, %s16
    %s19 = sphi 0, %s17
    %s20 = sphi 0, %s18
    %s21 = sphi 0, %s19
    %s33 = sphi 0, %s35
    %s36 = sphi 0, %s33
    %s37 = sphi 0, %s36
    %s53 = sphi 0, %s37
    %s59 = sphi 0, %s61
    %s62 = sphi 0, %s59
    %s63 = sphi 0, %s62
    %s79 = sphi 0, %s63
    %s85 = sphi 0, %s87
    %s88 = sphi 0, %s85
    %s89 = sphi 0, %s88
    %s105 = sphi 0, %s89
    %s113 = sphi 0, %s115
    %s116 = sphi 0, %s113
    %s117 = sphi 0, %s116
    %s133 = sphi 0, %s117
  $region4: #{sc_block_forward.52} parent=0 // loop_header_branch
    %12 = sbr.rel (%p10) target = $region8
  $region5: #{sc_block_forward.52} parent=0 // loop_body
    %s14 = ssub.s32 %s9, 1
    %s15 = ssub.s32 %s9, 2
    %s22 = sadd.s32 1, %s17
    %p23 = scmp.ge.s32.totalorder %s22, 1
    %s24 = scalar_select %p23, 0, %s22
    %s25 = sadd.s32 1, %s16
    %s26 = scalar_select %p23, %s25, %s16
    %p27 = scmp.ge.s32.totalorder %s26, 2
    %s28 = scalar_select %p27, 0, %s26
    %s29 = ssub.s32 %s16, %s28
    %s30 = ssub.s32 %s17, %s24
    %s31 = sor.u32 %s29, %s30
    %p32 = scmp.eq.s32.totalorder %s31, 0
    %s34 = sadd.s32 %s33, 1
    %s35 = scalar_select %p32, %s33, %s34
    %p38 = pneg %p32
    %p39 = scmp.eq.s32.totalorder %s9, 1
    %p40 = por %p38, %p39
    %p41 = scmp.ne.s32.totalorder %s33, %s36
    %p42 = scmp.eq.s32.totalorder %s9, 0
    %p43 = por %p41, %p42
    %p44 = scmp.ne.s32.totalorder %s33, %s36
    %p45 = scmp.eq.s32.totalorder %s14, 1
    %p46 = por %p44, %p45
    %p47 = scmp.ne.s32.totalorder %s36, %s37
    %p48 = scmp.eq.s32.totalorder %s14, 0
    %p49 = por %p47, %p48
    %p50 = scmp.ne.s32.totalorder %s36, %s37
    %p51 = scmp.eq.s32.totalorder %s15, 1
    %p52 = por %p50, %p51
    %p54 = scmp.ne.s32.totalorder %s37, %s53
    %p55 = scmp.eq.s32.totalorder %s15, 0
    %p56 = por %p54, %p55
    %s57 = ssub.s32 %s16, %s28
    %p58 = scmp.eq.s32.totalorder %s57, 0
    %s60 = sadd.s32 %s59, 1
    %s61 = scalar_select %p58, %s59, %s60
    %p64 = pneg %p58
    %p65 = scmp.eq.s32.totalorder %s9, 1
    %p66 = por %p64, %p65
    %p67 = scmp.ne.s32.totalorder %s59, %s62
    %p68 = scmp.eq.s32.totalorder %s9, 0
    %p69 = por %p67, %p68
    %p70 = scmp.ne.s32.totalorder %s59, %s62
    %p71 = scmp.eq.s32.totalorder %s14, 1
    %p72 = por %p70, %p71
    %p73 = scmp.ne.s32.totalorder %s62, %s63
    %p74 = scmp.eq.s32.totalorder %s14, 0
    %p75 = por %p73, %p74
    %p76 = scmp.ne.s32.totalorder %s62, %s63
    %p77 = scmp.eq.s32.totalorder %s15, 1
    %p78 = por %p76, %p77
    %p80 = scmp.ne.s32.totalorder %s63, %s79
    %p81 = scmp.eq.s32.totalorder %s15, 0
    %p82 = por %p80, %p81
    %s83 = ssub.s32 %s16, %s28
    %p84 = scmp.eq.s32.totalorder %s83, 0
    %s86 = sadd.s32 %s85, 1
    %s87 = scalar_select %p84, %s85, %s86
    %p90 = pneg %p84
    %p91 = scmp.eq.s32.totalorder %s9, 1
    %p92 = por %p90, %p91
    %p93 = scmp.ne.s32.totalorder %s85, %s88
    %p94 = scmp.eq.s32.totalorder %s9, 0
    %p95 = por %p93, %p94
    %p96 = scmp.ne.s32.totalorder %s85, %s88
    %p97 = scmp.eq.s32.totalorder %s14, 1
    %p98 = por %p96, %p97
    %p99 = scmp.ne.s32.totalorder %s88, %s89
    %p100 = scmp.eq.s32.totalorder %s14, 0
    %p101 = por %p99, %p100
    %p102 = scmp.ne.s32.totalorder %s88, %s89
    %p103 = scmp.eq.s32.totalorder %s15, 1
    %p104 = por %p102, %p103
    %p106 = scmp.ne.s32.totalorder %s89, %s105
    %p107 = scmp.eq.s32.totalorder %s15, 0
    %p108 = por %p106, %p107
    %s109 = ssub.s32 %s16, %s28
    %s110 = ssub.s32 %s17, %s24
    %s111 = sor.u32 %s109, %s110
    %p112 = scmp.eq.s32.totalorder %s111, 0
    %s114 = sadd.s32 %s113, 1
    %s115 = scalar_select %p112, %s113, %s114
    %p118 = pneg %p112
    %p119 = scmp.eq.s32.totalorder %s9, 1
    %p120 = por %p118, %p119
    %p121 = scmp.ne.s32.totalorder %s113, %s116
    %p122 = scmp.eq.s32.totalorder %s9, 0
    %p123 = por %p121, %p122
    %p124 = scmp.ne.s32.totalorder %s113, %s116
    %p125 = scmp.eq.s32.totalorder %s14, 1
    %p126 = por %p124, %p125
    %p127 = scmp.ne.s32.totalorder %s116, %s117
    %p128 = scmp.eq.s32.totalorder %s14, 0
    %p129 = por %p127, %p128
    %p130 = scmp.ne.s32.totalorder %s116, %s117
    %p131 = scmp.eq.s32.totalorder %s15, 1
    %p132 = por %p130, %p131
    %p134 = scmp.ne.s32.totalorder %s117, %s133
    %p135 = scmp.eq.s32.totalorder %s15, 0
    %p136 = por %p134, %p135
    %p137 = scmp.le.s32.totalorder 1, %s9
    %p138 = scmp.lt.s32.totalorder %s9, 3
    %p139 = pnand %p137, %p138
    %p140 = pneg %p139
    // Predicated region
    $region9: #{sc_block_forward.52} parent=5 // pred_check
      _
    $region10: #{sc_block_forward.52} parent=5 // pred_check_branch
      %142 = sbr.rel (%p139) target = $region12
    $region11: #{sc_block_forward.52} parent=5 // pred_region
      %s143 = ssub.s32 %s9, 1
    $region12: #{sc_block_forward.52} parent=5 // pred_fallthru
      _
    %p144 = scmp.lt.s32.totalorder %s9, 2
    // Predicated region
    $region13: #{sc_block_forward.52} parent=5 // pred_check
      %p145 = pneg %p144
    $region14: #{sc_block_forward.52} parent=5 // pred_check_branch
      %147 = sbr.rel (%p145) target = $region16
    $region15: #{sc_block_forward.52} parent=5 // pred_region
      // Predicated region
      $region17: #{sc_block_forward.52} parent=15 // pred_check
        %p148 = pneg %p43
      $region18: #{sc_block_forward.52} parent=15 // pred_check_branch
        %150 = sbr.rel (%p148) target = $region20
      $region19: #{sc_block_forward.52} parent=15 // pred_region
        %s151 = smul.u32 2, %s17
        %p152 = scmp.lt.s32.totalorder %s16, 1
        %s153 = scalar_select %p152, %s16, 1
        %p154 = scmp.lt.s32.totalorder %s151, 1
        %s155 = scalar_select %p154, %s151, 1
        %s156 = smul.addr %s153, 2
        %s157 = sadd.s32 %s155, %s156
        %s158 = smul.addr %s157, 8
        %s159 = scalar_lea.vmem %s0, %s158
        %s160 = smul.u32 2, %s17
      $region20: #{sc_block_forward.52} parent=15 // pred_fallthru
        _
      // Predicated region
      $region21: #{sc_block_forward.52} parent=15 // pred_check
        %p161 = pneg %p69
      $region22: #{sc_block_forward.52} parent=15 // pred_check_branch
        %163 = sbr.rel (%p161) target = $region24
      $region23: #{sc_block_forward.52} parent=15 // pred_region
        %p164 = scmp.lt.s32.totalorder %s16, 1
        %s165 = scalar_select %p164, %s16, 1
        %s166 = scalar_lea.vmem %s1, %s165
      $region24: #{sc_block_forward.52} parent=15 // pred_fallthru
        _
      // Predicated region
      $region25: #{sc_block_forward.52} parent=15 // pred_check
        %p167 = pneg %p95
      $region26: #{sc_block_forward.52} parent=15 // pred_check_branch
        %169 = sbr.rel (%p167) target = $region28
      $region27: #{sc_block_forward.52} parent=15 // pred_region
        %p170 = scmp.lt.s32.totalorder %s16, 1
        %s171 = scalar_select %p170, %s16, 1
        %s172 = scalar_lea.vmem %s2, %s171
      $region28: #{sc_block_forward.52} parent=15 // pred_fallthru
        _
    $region16: #{sc_block_forward.52} parent=5 // pred_fallthru
      _
    %p173 = scmp.le.s32.totalorder 1, %s9
    %p174 = scmp.lt.s32.totalorder %s9, 3
    %p175 = pnand %p173, %p174
    %p176 = pneg %p175
    // Predicated region
    $region29: #{sc_block_forward.52} parent=5 // pred_check
      _
    $region30: #{sc_block_forward.52} parent=5 // pred_check_branch
      %178 = sbr.rel (%p175) target = $region32
    $region31: #{sc_block_forward.52} parent=5 // pred_region
      %s179 = ssub.s32 %s9, 1
      %s180 = smul.u32 2, %s19
      %p181 = scmp.lt.s32.totalorder %s18, 1
      %s182 = scalar_select %p181, %s18, 1
      %p183 = scmp.lt.s32.totalorder %s180, 1
      %s184 = scalar_select %p183, %s180, 1
      %s185 = smul.addr %s182, 2
      %s186 = sadd.s32 %s184, %s185
      %s187 = smul.addr %s186, 8
      %s188 = scalar_lea.vmem %s0, %s187
      %p189 = pneg %p49
      %p190 = pneg %p46
      %p191 = scmp.lt.s32.totalorder %s18, 1
      %s192 = scalar_select %p191, %s18, 1
      %s193 = scalar_lea.vmem %s1, %s192
      %p194 = pneg %p75
      %p195 = pneg %p72
      %p196 = scmp.lt.s32.totalorder %s18, 1
      %s197 = scalar_select %p196, %s18, 1
      %s198 = scalar_lea.vmem %s2, %s197
      %p199 = pneg %p101
      %p200 = pneg %p98
      %p201 = pneg %p129
      %p202 = pneg %p126
      %s203 = smul.u32 2, %s19
      %p204 = scmp.lt.s32.totalorder %s18, 1
      %s205 = scalar_select %p204, %s18, 1
      %p206 = scmp.lt.s32.totalorder %s203, 1
      %s207 = scalar_select %p206, %s203, 1
      %s208 = smul.addr %s205, 2
      %s209 = sadd.s32 %s207, %s208
      %s210 = smul.addr %s209, 8
      %s211 = scalar_lea.vmem %s3, %s210
      %s212 = smul.u32 2, %s19
      %p213 = scmp.lt.s32.totalorder %s18, 1
      %s214 = scalar_select %p213, %s18, 1
      %p215 = scmp.lt.s32.totalorder %s212, 1
      %s216 = scalar_select %p215, %s212, 1
      %s217 = smul.addr %s214, 2
      %s218 = sadd.s32 %s216, %s217
      %s219 = smul.addr %s218, 8
      %s220 = scalar_lea.vmem %s0, %s219
      %s221 = smul.u32 2, %s19
      %p222 = scmp.lt.s32.totalorder %s18, 1
      %s223 = scalar_select %p222, %s18, 1
      %s224 = scalar_lea.vmem %s1, %s223
      %p225 = scmp.lt.s32.totalorder %s18, 1
      %s226 = scalar_select %p225, %s18, 1
      %s227 = scalar_lea.vmem %s2, %s226
      %s228 = smul.u32 2, %s19
      %p229 = scmp.lt.s32.totalorder %s18, 1
      %s230 = scalar_select %p229, %s18, 1
      %p231 = scmp.lt.s32.totalorder %s228, 1
      %s232 = scalar_select %p231, %s228, 1
      %s233 = smul.addr %s230, 2
      %s234 = sadd.s32 %s232, %s233
      %s235 = smul.addr %s234, 8
      %s236 = scalar_lea.vmem %s3, %s235
      %s237 = smul.u32 2, %s19
      %v238 = vld [vmem:[%s220] sm:$0xff]
      %v239 = vld [vmem:[%s220 + $0x8] sm:$0xff]
      %v240 = vld [vmem:[%s224] sm:$0x1]
      %v242 = vlaneseq
      %v243 = vshrl.u32 %v242, 7
      %v244 = vsub.s32 0, %v243
      %v245 = vrot.slane %v240, %v244
      %v247 = vmul.f32 %v238, %v245
      %v248 = vmul.f32 %v239, %v245
      %v249 = vld [vmem:[%s227] sm:$0x1]
      %v251 = vlaneseq
      %v252 = vshrl.u32 %v251, 7
      %v253 = vsub.s32 0, %v252
      %v254 = vrot.slane %v249, %v253
      %v256 = vadd.f32 %v247, %v254
      %v257 = vadd.f32 %v248, %v254
      %v258 = vmax.f32 %v256, 0.0
      %v259 = vmax.f32 %v257, 0.0
      %260 = vst [vmem:[%s236] sm:$0xff] %v258
      %261 = vst [vmem:[%s236 + $0x8] sm:$0xff] %v259
      %s262 = smul.u32 2, %s19
      %p263 = scmp.lt.s32.totalorder %s18, 1
      %s264 = scalar_select %p263, %s18, 1
      %p265 = scmp.lt.s32.totalorder %s262, 1
      %s266 = scalar_select %p265, %s262, 1
      %s267 = smul.addr %s264, 2
      %s268 = sadd.s32 %s266, %s267
      %s269 = smul.addr %s268, 8
      %s270 = scalar_lea.vmem %s3, %s269
      // Predicated region
      $region33: #{sc_block_forward.52} parent=31 // pred_check
        %p271 = pneg %p126
      $region34: #{sc_block_forward.52} parent=31 // pred_check_branch
        %273 = sbr.rel (%p271) target = $region36
      $region35: #{sc_block_forward.52} parent=31 // pred_region
        %s274 = smul.u32 2, %s19
      $region36: #{sc_block_forward.52} parent=31 // pred_fallthru
        _
    $region32: #{sc_block_forward.52} parent=5 // pred_fallthru
      _
    %p275 = scmp.le.s32.totalorder 2, %s9
    // Predicated region
    $region37: #{sc_block_forward.52} parent=5 // pred_check
      %p276 = pneg %p275
    $region38: #{sc_block_forward.52} parent=5 // pred_check_branch
      %278 = sbr.rel (%p276) target = $region40
    $region39: #{sc_block_forward.52} parent=5 // pred_region
      %s279 = ssub.s32 %s9, 2
      // Predicated region
      $region41: #{sc_block_forward.52} parent=39 // pred_check
        %p280 = pneg %p132
      $region42: #{sc_block_forward.52} parent=39 // pred_check_branch
        %282 = sbr.rel (%p280) target = $region44
      $region43: #{sc_block_forward.52} parent=39 // pred_region
        %s283 = smul.u32 2, %s21
        %p284 = scmp.lt.s32.totalorder %s20, 1
        %s285 = scalar_select %p284, %s20, 1
        %p286 = scmp.lt.s32.totalorder %s283, 1
        %s287 = scalar_select %p286, %s283, 1
        %s288 = smul.addr %s285, 2
        %s289 = sadd.s32 %s287, %s288
        %s290 = smul.addr %s289, 8
        %s291 = scalar_lea.vmem %s3, %s290
      $region44: #{sc_block_forward.52} parent=39 // pred_fallthru
        _
    $region40: #{sc_block_forward.52} parent=5 // pred_fallthru
      _
  $region6: #{sc_block_forward.52} parent=0 // loop_footer
    %s13 = sadd.s32 1, %s9
  $region7: #{sc_block_forward.52} parent=0 // loop_footer_branch
    %8 = sbr.rel target = $region3
  $region8: #{sc_block_forward.52} parent=0 // loop_exit
    _

// kernel: sc_block_forward.53
$region0: #{sc_block_forward.53}
  #allocation0 [shape = 'u32[]', space=smem, size = 0x4, offset = 0x4, fixed_abs, tag = 'smem constant byte address 0x4 - core index']
  #allocation1 [shape = 'u32[144,128]{1,0:T(1,128)}', space=vmem, size = 0x12000, scoped, tag = 'internal scratch']
  %s0 = inlined_call_operand.vmem [shape: f32[2,16,128], index: 0, kind: input, shape index: {}]
  %s1 = inlined_call_operand.vmem [shape: f32[128,128], index: 1, kind: input, shape index: {}]
  %s2 = inlined_call_operand.vmem [shape: f32[1,1,128], index: 2, kind: input, shape index: {}]
  %s3 = inlined_call_operand.vmem [shape: f32[2,16,128], index: 3, kind: output, shape index: {}]
  %s4 = sld [smem:[#allocation0]]
  $region45: #{sc_block_forward.53} parent=0
    _
  %s6 = ssub.s32 1, %s4
  %s7 = scalar_select 0, %s6, %s4
  loop: start=0, step=1, limit=4
  $region2: #{sc_block_forward.53} parent=0 // loop_pre_header
    _
  $region3: #{sc_block_forward.53} parent=0 // loop_header
    %s9 = sphi 0, %s13
    %p10 = scmp.ge.s32.totalorder %s9, 4
    %s16 = sphi 0, %s28
    %s17 = sphi 0, %s24
    %s18 = sphi 0, %s16
    %s19 = sphi 0, %s17
    %s20 = sphi 0, %s18
    %s21 = sphi 0, %s19
    %s33 = sphi 0, %s35
    %s36 = sphi 0, %s33
    %s37 = sphi 0, %s36
    %s53 = sphi 0, %s37
    %s57 = sphi 0, %s57
    %s59 = sphi 0, %s57
    %s60 = sphi 0, %s59
    %s74 = sphi 0, %s60
    %s78 = sphi 0, %s78
    %s80 = sphi 0, %s78
    %s81 = sphi 0, %s80
    %s95 = sphi 0, %s81
    %s103 = sphi 0, %s105
    %s106 = sphi 0, %s103
    %s107 = sphi 0, %s106
    %s123 = sphi 0, %s107
  $region4: #{sc_block_forward.53} parent=0 // loop_header_branch
    %12 = sbr.rel (%p10) target = $region8
  $region5: #{sc_block_forward.53} parent=0 // loop_body
    %s14 = ssub.s32 %s9, 1
    %s15 = ssub.s32 %s9, 2
    %s22 = sadd.s32 1, %s17
    %p23 = scmp.ge.s32.totalorder %s22, 1
    %s24 = scalar_select %p23, 0, %s22
    %s25 = sadd.s32 1, %s16
    %s26 = scalar_select %p23, %s25, %s16
    %p27 = scmp.ge.s32.totalorder %s26, 2
    %s28 = scalar_select %p27, 0, %s26
    %s29 = ssub.s32 %s16, %s28
    %s30 = ssub.s32 %s17, %s24
    %s31 = sor.u32 %s29, %s30
    %p32 = scmp.eq.s32.totalorder %s31, 0
    %s34 = sadd.s32 %s33, 1
    %s35 = scalar_select %p32, %s33, %s34
    %p38 = pneg %p32
    %p39 = scmp.eq.s32.totalorder %s9, 1
    %p40 = por %p38, %p39
    %p41 = scmp.ne.s32.totalorder %s33, %s36
    %p42 = scmp.eq.s32.totalorder %s9, 0
    %p43 = por %p41, %p42
    %p44 = scmp.ne.s32.totalorder %s33, %s36
    %p45 = scmp.eq.s32.totalorder %s14, 1
    %p46 = por %p44, %p45
    %p47 = scmp.ne.s32.totalorder %s36, %s37
    %p48 = scmp.eq.s32.totalorder %s14, 0
    %p49 = por %p47, %p48
    %p50 = scmp.ne.s32.totalorder %s36, %s37
    %p51 = scmp.eq.s32.totalorder %s15, 1
    %p52 = por %p50, %p51
    %p54 = scmp.ne.s32.totalorder %s37, %s53
    %p55 = scmp.eq.s32.totalorder %s15, 0
    %p56 = por %p54, %p55
    %s58 = sadd.s32 %s57, 1
    %p61 = scmp.eq.s32.totalorder %s9, 1
    %p62 = scmp.ne.s32.totalorder %s57, %s59
    %p63 = scmp.eq.s32.totalorder %s9, 0
    %p64 = por %p62, %p63
    %p65 = scmp.ne.s32.totalorder %s57, %s59
    %p66 = scmp.eq.s32.totalorder %s14, 1
    %p67 = por %p65, %p66
    %p68 = scmp.ne.s32.totalorder %s59, %s60
    %p69 = scmp.eq.s32.totalorder %s14, 0
    %p70 = por %p68, %p69
    %p71 = scmp.ne.s32.totalorder %s59, %s60
    %p72 = scmp.eq.s32.totalorder %s15, 1
    %p73 = por %p71, %p72
    %p75 = scmp.ne.s32.totalorder %s60, %s74
    %p76 = scmp.eq.s32.totalorder %s15, 0
    %p77 = por %p75, %p76
    %s79 = sadd.s32 %s78, 1
    %p82 = scmp.eq.s32.totalorder %s9, 1
    %p83 = scmp.ne.s32.totalorder %s78, %s80
    %p84 = scmp.eq.s32.totalorder %s9, 0
    %p85 = por %p83, %p84
    %p86 = scmp.ne.s32.totalorder %s78, %s80
    %p87 = scmp.eq.s32.totalorder %s14, 1
    %p88 = por %p86, %p87
    %p89 = scmp.ne.s32.totalorder %s80, %s81
    %p90 = scmp.eq.s32.totalorder %s14, 0
    %p91 = por %p89, %p90
    %p92 = scmp.ne.s32.totalorder %s80, %s81
    %p93 = scmp.eq.s32.totalorder %s15, 1
    %p94 = por %p92, %p93
    %p96 = scmp.ne.s32.totalorder %s81, %s95
    %p97 = scmp.eq.s32.totalorder %s15, 0
    %p98 = por %p96, %p97
    %s99 = ssub.s32 %s16, %s28
    %s100 = ssub.s32 %s17, %s24
    %s101 = sor.u32 %s99, %s100
    %p102 = scmp.eq.s32.totalorder %s101, 0
    %s104 = sadd.s32 %s103, 1
    %s105 = scalar_select %p102, %s103, %s104
    %p108 = pneg %p102
    %p109 = scmp.eq.s32.totalorder %s9, 1
    %p110 = por %p108, %p109
    %p111 = scmp.ne.s32.totalorder %s103, %s106
    %p112 = scmp.eq.s32.totalorder %s9, 0
    %p113 = por %p111, %p112
    %p114 = scmp.ne.s32.totalorder %s103, %s106
    %p115 = scmp.eq.s32.totalorder %s14, 1
    %p116 = por %p114, %p115
    %p117 = scmp.ne.s32.totalorder %s106, %s107
    %p118 = scmp.eq.s32.totalorder %s14, 0
    %p119 = por %p117, %p118
    %p120 = scmp.ne.s32.totalorder %s106, %s107
    %p121 = scmp.eq.s32.totalorder %s15, 1
    %p122 = por %p120, %p121
    %p124 = scmp.ne.s32.totalorder %s107, %s123
    %p125 = scmp.eq.s32.totalorder %s15, 0
    %p126 = por %p124, %p125
    %p127 = scmp.le.s32.totalorder 1, %s9
    %p128 = scmp.lt.s32.totalorder %s9, 3
    %p129 = pnand %p127, %p128
    %p130 = pneg %p129
    // Predicated region
    $region9: #{sc_block_forward.53} parent=5 // pred_check
      _
    $region10: #{sc_block_forward.53} parent=5 // pred_check_branch
      %132 = sbr.rel (%p129) target = $region12
    $region11: #{sc_block_forward.53} parent=5 // pred_region
      %s133 = ssub.s32 %s9, 1
      // Predicated region
      $region13: #{sc_block_forward.53} parent=11 // pred_check
        %p134 = pneg %p70
      $region14: #{sc_block_forward.53} parent=11 // pred_check_branch
        %136 = sbr.rel (%p134) target = $region16
      $region15: #{sc_block_forward.53} parent=11 // pred_region
        _
      $region16: #{sc_block_forward.53} parent=11 // pred_fallthru
        _
      // Predicated region
      $region17: #{sc_block_forward.53} parent=11 // pred_check
        %p137 = pneg %p91
      $region18: #{sc_block_forward.53} parent=11 // pred_check_branch
        %139 = sbr.rel (%p137) target = $region20
      $region19: #{sc_block_forward.53} parent=11 // pred_region
        _
      $region20: #{sc_block_forward.53} parent=11 // pred_fallthru
        _
    $region12: #{sc_block_forward.53} parent=5 // pred_fallthru
      _
    %p140 = scmp.lt.s32.totalorder %s9, 2
    // Predicated region
    $region21: #{sc_block_forward.53} parent=5 // pred_check
      %p141 = pneg %p140
    $region22: #{sc_block_forward.53} parent=5 // pred_check_branch
      %143 = sbr.rel (%p141) target = $region24
    $region23: #{sc_block_forward.53} parent=5 // pred_region
      // Predicated region
      $region25: #{sc_block_forward.53} parent=23 // pred_check
        %p144 = pneg %p43
      $region26: #{sc_block_forward.53} parent=23 // pred_check_branch
        %146 = sbr.rel (%p144) target = $region28
      $region27: #{sc_block_forward.53} parent=23 // pred_region
        %s147 = smul.u32 2, %s17
        %p148 = scmp.lt.s32.totalorder %s16, 1
        %s149 = scalar_select %p148, %s16, 1
        %p150 = scmp.lt.s32.totalorder %s147, 1
        %s151 = scalar_select %p150, %s147, 1
        %s152 = smul.addr %s149, 2
        %s153 = sadd.s32 %s151, %s152
        %s154 = smul.addr %s153, 8
        %s155 = scalar_lea.vmem %s0, %s154
        %s156 = smul.u32 2, %s17
      $region28: #{sc_block_forward.53} parent=23 // pred_fallthru
        _
    $region24: #{sc_block_forward.53} parent=5 // pred_fallthru
      _
    %p157 = scmp.le.s32.totalorder 1, %s9
    %p158 = scmp.lt.s32.totalorder %s9, 3
    %p159 = pnand %p157, %p158
    %p160 = pneg %p159
    // Predicated region
    $region29: #{sc_block_forward.53} parent=5 // pred_check
      _
    $region30: #{sc_block_forward.53} parent=5 // pred_check_branch
      %162 = sbr.rel (%p159) target = $region32
    $region31: #{sc_block_forward.53} parent=5 // pred_region
      %s163 = ssub.s32 %s9, 1
      %s164 = smul.u32 2, %s19
      %p165 = scmp.lt.s32.totalorder %s18, 1
      %s166 = scalar_select %p165, %s18, 1
      %p167 = scmp.lt.s32.totalorder %s164, 1
      %s168 = scalar_select %p167, %s164, 1
      %s169 = smul.addr %s166, 2
      %s170 = sadd.s32 %s168, %s169
      %s171 = smul.addr %s170, 8
      %s172 = scalar_lea.vmem %s0, %s171
      %p173 = pneg %p49
      %p174 = pneg %p46
      %p175 = pneg %p70
      %p176 = pneg %p67
      %p177 = pneg %p91
      %p178 = pneg %p88
      %p179 = pneg %p119
      %p180 = pneg %p116
      %s181 = smul.u32 2, %s19
      %p182 = scmp.lt.s32.totalorder %s18, 1
      %s183 = scalar_select %p182, %s18, 1
      %p184 = scmp.lt.s32.totalorder %s181, 1
      %s185 = scalar_select %p184, %s181, 1
      %s186 = smul.addr %s183, 2
      %s187 = sadd.s32 %s185, %s186
      %s188 = smul.addr %s187, 8
      %s189 = scalar_lea.vmem %s3, %s188
      %s190 = smul.u32 2, %s19
      %p191 = scmp.lt.s32.totalorder %s18, 1
      %s192 = scalar_select %p191, %s18, 1
      %p193 = scmp.lt.s32.totalorder %s190, 1
      %s194 = scalar_select %p193, %s190, 1
      %s195 = smul.addr %s192, 2
      %s196 = sadd.s32 %s194, %s195
      %s197 = smul.addr %s196, 8
      %s198 = scalar_lea.vmem %s0, %s197
      %s199 = smul.u32 2, %s19
      %s200 = smul.u32 2, %s19
      %p201 = scmp.lt.s32.totalorder %s18, 1
      %s202 = scalar_select %p201, %s18, 1
      %p203 = scmp.lt.s32.totalorder %s200, 1
      %s204 = scalar_select %p203, %s200, 1
      %s205 = smul.addr %s202, 2
      %s206 = sadd.s32 %s204, %s205
      %s207 = smul.addr %s206, 8
      %s208 = scalar_lea.vmem %s3, %s207
      %s209 = smul.u32 2, %s19
      %v210 = vld [vmem:[%s198] sm:$0xff]
      %v211 = vld [vmem:[%s198 + $0x8] sm:$0xff]
      %v212 = vld [vmem:[%s1] sm:$0xff]
      %v213 = vld [vmem:[%s1 + $0x8] sm:$0xff]
      %v214 = vld [vmem:[%s1 + $0x10] sm:$0xff]
      %v215 = vld [vmem:[%s1 + $0x18] sm:$0xff]
      %v216 = vld [vmem:[%s1 + $0x20] sm:$0xff]
      %v217 = vld [vmem:[%s1 + $0x28] sm:$0xff]
      %v218 = vld [vmem:[%s1 + $0x30] sm:$0xff]
      %v219 = vld [vmem:[%s1 + $0x38] sm:$0xff]
      %v220 = vld [vmem:[%s1 + $0x40] sm:$0xff]
      %v221 = vld [vmem:[%s1 + $0x48] sm:$0xff]
      %v222 = vld [vmem:[%s1 + $0x50] sm:$0xff]
      %v223 = vld [vmem:[%s1 + $0x58] sm:$0xff]
      %v224 = vld [vmem:[%s1 + $0x60] sm:$0xff]
      %v225 = vld [vmem:[%s1 + $0x68] sm:$0xff]
      %v226 = vld [vmem:[%s1 + $0x70] sm:$0xff]
      %v227 = vld [vmem:[%s1 + $0x78] sm:$0xff]
      %v228 = vld [vmem:[%s2] sm:$0x1]
      %v230 = vlaneseq
      %v231 = vshrl.u32 %v230, 7
      %v232 = vsub.s32 0, %v231
      %v233 = vrot.slane %v228, %v232
      %235 = vmatprep.subr.mxu0 0.0
      %236 = vmatpush1.msra.mxu0 %v212
      %237 = vmatprep.subr.mxu0 0.0
      %238 = vmatpush1.msra.mxu0 %v213
      %239 = vmatprep.subr.mxu0 0.0
      %240 = vmatpush1.msra.mxu0 %v214
      %241 = vmatprep.subr.mxu0 0.0
      %242 = vmatpush1.msra.mxu0 %v215
      %243 = vmatprep.subr.mxu0 0.0
      %244 = vmatpush1.msra.mxu0 %v216
      %245 = vmatprep.subr.mxu0 0.0
      %246 = vmatpush1.msra.mxu0 %v217
      %247 = vmatprep.subr.mxu0 0.0
      %248 = vmatpush1.msra.mxu0 %v218
      %249 = vmatprep.subr.mxu0 0.0
      %250 = vmatpush1.msra.mxu0 %v219
      %251 = vmatprep.subr.mxu0 0.0
      %252 = vmatpush1.msra.mxu0 %v220
      %253 = vmatprep.subr.mxu0 0.0
      %254 = vmatpush1.msra.mxu0 %v221
      %255 = vmatprep.subr.mxu0 0.0
      %256 = vmatpush1.msra.mxu0 %v222
      %257 = vmatprep.subr.mxu0 0.0
      %258 = vmatpush1.msra.mxu0 %v223
      %259 = vmatprep.subr.mxu0 0.0
      %260 = vmatpush1.msra.mxu0 %v224
      %261 = vmatprep.subr.mxu0 0.0
      %262 = vmatpush1.msra.mxu0 %v225
      %263 = vmatprep.subr.mxu0 0.0
      %264 = vmatpush1.msra.mxu0 %v226
      %265 = vmatprep.subr.mxu0 0.0
      %266 = vmatpush1.msra.mxu0 %v227
      %267 = vmatprep.subr.mxu0 0.0
      %268 = vmatpush1.msra.mxu0 0.0
      %269 = vmatprep.subr.mxu0 0.0
      %270 = vmatpush1.msra.mxu0 0.0
      %271 = vmatprep.subr.mxu0 0.0
      %272 = vmatpush1.msra.mxu0 0.0
      %273 = vmatprep.subr.mxu0 0.0
      %274 = vmatpush1.msra.mxu0 0.0
      %275 = vmatprep.subr.mxu0 0.0
      %276 = vmatpush1.msra.mxu0 0.0
      %277 = vmatprep.subr.mxu0 0.0
      %278 = vmatpush1.msra.mxu0 0.0
      %279 = vmatprep.subr.mxu0 0.0
      %280 = vmatpush1.msra.mxu0 0.0
      %281 = vmatprep.subr.mxu0 0.0
      %282 = vmatpush1.msra.mxu0 0.0
      %283 = vmatprep.subr.mxu0 0.0
      %284 = vmatpush1.msra.mxu0 0.0
      %285 = vmatprep.subr.mxu0 0.0
      %286 = vmatpush1.msra.mxu0 0.0
      %287 = vmatprep.subr.mxu0 0.0
      %288 = vmatpush1.msra.mxu0 0.0
      %289 = vmatprep.subr.mxu0 0.0
      %290 = vmatpush1.msra.mxu0 0.0
      %291 = vmatprep.subr.mxu0 0.0
      %292 = vmatpush1.msra.mxu0 0.0
      %293 = vmatprep.subr.mxu0 0.0
      %294 = vmatpush1.msra.mxu0 0.0
      %295 = vmatprep.subr.mxu0 0.0
      %296 = vmatpush1.msra.mxu0 0.0
      %297 = vmatprep.subr.mxu0 0.0
      %298 = vmatpush1.msra.mxu0 0.0
      %299 = vmatprep.mubr.f32.mxu0 0.0
      %300 = vmatmul.mubr.f32.gmra.mrb[0].mxu0 %v210
      %v301 = vpop.f32.mrb[0].mxu0
      %v302 = vadd.f32 %v233, %v301
      %v303 = vpop.f32.mrb[0].mxu0
      %304 = vmatprep.mubr.f32.mxu0 0.0
      %305 = vmatmul.mubr.f32.gmra.mrb[0].mxu0 %v211
      %v306 = vpop.f32.mrb[0].mxu0
      %v307 = vadd.f32 %v233, %v306
      %v308 = vpop.f32.mrb[0].mxu0
      %309 = vdwg.mxu0
      %310 = vst [vmem:[%s208] sm:$0xff] %v302
      %311 = vst [vmem:[%s208 + $0x8] sm:$0xff] %v307
      %s312 = smul.u32 2, %s19
      %p313 = scmp.lt.s32.totalorder %s18, 1
      %s314 = scalar_select %p313, %s18, 1
      %p315 = scmp.lt.s32.totalorder %s312, 1
      %s316 = scalar_select %p315, %s312, 1
      %s317 = smul.addr %s314, 2
      %s318 = sadd.s32 %s316, %s317
      %s319 = smul.addr %s318, 8
      %s320 = scalar_lea.vmem %s3, %s319
      // Predicated region
      $region33: #{sc_block_forward.53} parent=31 // pred_check
        %p321 = pneg %p116
      $region34: #{sc_block_forward.53} parent=31 // pred_check_branch
        %323 = sbr.rel (%p321) target = $region36
      $region35: #{sc_block_forward.53} parent=31 // pred_region
        %s324 = smul.u32 2, %s19
      $region36: #{sc_block_forward.53} parent=31 // pred_fallthru
        _
    $region32: #{sc_block_forward.53} parent=5 // pred_fallthru
      _
    %p325 = scmp.le.s32.totalorder 2, %s9
    // Predicated region
    $region37: #{sc_block_forward.53} parent=5 // pred_check
      %p326 = pneg %p325
    $region38: #{sc_block_forward.53} parent=5 // pred_check_branch
      %328 = sbr.rel (%p326) target = $region40
    $region39: #{sc_block_forward.53} parent=5 // pred_region
      %s329 = ssub.s32 %s9, 2
      // Predicated region
      $region41: #{sc_block_forward.53} parent=39 // pred_check
        %p330 = pneg %p122
      $region42: #{sc_block_forward.53} parent=39 // pred_check_branch
        %332 = sbr.rel (%p330) target = $region44
      $region43: #{sc_block_forward.53} parent=39 // pred_region
        %s333 = smul.u32 2, %s21
        %p334 = scmp.lt.s32.totalorder %s20, 1
        %s335 = scalar_select %p334, %s20, 1
        %p336 = scmp.lt.s32.totalorder %s333, 1
        %s337 = scalar_select %p336, %s333, 1
        %s338 = smul.addr %s335, 2
        %s339 = sadd.s32 %s337, %s338
        %s340 = smul.addr %s339, 8
        %s341 = scalar_lea.vmem %s3, %s340
      $region44: #{sc_block_forward.53} parent=39 // pred_fallthru
        _
    $region40: #{sc_block_forward.53} parent=5 // pred_fallthru
      _
  $region6: #{sc_block_forward.53} parent=0 // loop_footer
    %s13 = sadd.s32 1, %s9
  $region7: #{sc_block_forward.53} parent=0 // loop_footer_branch
    %8 = sbr.rel target = $region3
  $region8: #{sc_block_forward.53} parent=0 // loop_exit
    _

// kernel: sc_block_forward.54
$region0: #{sc_block_forward.54}
  #allocation0 [shape = 'u32[]', space=smem, size = 0x4, offset = 0x4, fixed_abs, tag = 'smem constant byte address 0x4 - core index']
  #allocation1 [shape = 'u32[144,128]{1,0:T(1,128)}', space=vmem, size = 0x12000, scoped, tag = 'internal scratch']
  %s0 = inlined_call_operand.vmem [shape: f32[2,16,128], index: 0, kind: input, shape index: {}]
  %s1 = inlined_call_operand.vmem [shape: f32[1,1,128], index: 1, kind: input, shape index: {}]
  %s2 = inlined_call_operand.vmem [shape: f32[1,1,128], index: 2, kind: input, shape index: {}]
  %s3 = inlined_call_operand.vmem [shape: f32[1,1,128], index: 3, kind: input, shape index: {}]
  %s4 = inlined_call_operand.vmem [shape: f32[1,1,128], index: 4, kind: input, shape index: {}]
  %s5 = inlined_call_operand.vmem [shape: f32[128,128], index: 5, kind: input, shape index: {}]
  %s6 = inlined_call_operand.vmem [shape: f32[1,1,128], index: 6, kind: input, shape index: {}]
  %s7 = inlined_call_operand.vmem [shape: f32[2,1,128], index: 7, kind: input, shape index: {}]
  %s8 = inlined_call_operand.vmem [shape: f32[2,16,128], index: 8, kind: input, shape index: {}]
  %s9 = inlined_call_operand.vmem [shape: f32[2,16,128], index: 9, kind: output, shape index: {}]
  %s10 = sld [smem:[#allocation0]]
  $region69: #{sc_block_forward.54} parent=0
    _
  %s12 = ssub.s32 1, %s10
  %s13 = scalar_select 0, %s12, %s10
  loop: start=0, step=1, limit=4
  $region2: #{sc_block_forward.54} parent=0 // loop_pre_header
    _
  $region3: #{sc_block_forward.54} parent=0 // loop_header
    %s15 = sphi 0, %s19
    %p16 = scmp.ge.s32.totalorder %s15, 4
    %s22 = sphi 0, %s34
    %s23 = sphi 0, %s30
    %s24 = sphi 0, %s22
    %s25 = sphi 0, %s23
    %s26 = sphi 0, %s24
    %s27 = sphi 0, %s25
    %s39 = sphi 0, %s41
    %s42 = sphi 0, %s39
    %s43 = sphi 0, %s42
    %s59 = sphi 0, %s43
    %s63 = sphi 0, %s63
    %s65 = sphi 0, %s63
    %s66 = sphi 0, %s65
    %s80 = sphi 0, %s66
    %s84 = sphi 0, %s84
    %s86 = sphi 0, %s84
    %s87 = sphi 0, %s86
    %s101 = sphi 0, %s87
    %s105 = sphi 0, %s105
    %s107 = sphi 0, %s105
    %s108 = sphi 0, %s107
    %s122 = sphi 0, %s108
    %s126 = sphi 0, %s126
    %s128 = sphi 0, %s126
    %s129 = sphi 0, %s128
    %s143 = sphi 0, %s129
    %s147 = sphi 0, %s147
    %s149 = sphi 0, %s147
    %s150 = sphi 0, %s149
    %s164 = sphi 0, %s150
    %s168 = sphi 0, %s168
    %s170 = sphi 0, %s168
    %s171 = sphi 0, %s170
    %s185 = sphi 0, %s171
    %s191 = sphi 0, %s193
    %s194 = sphi 0, %s191
    %s195 = sphi 0, %s194
    %s211 = sphi 0, %s195
    %s219 = sphi 0, %s221
    %s222 = sphi 0, %s219
    %s223 = sphi 0, %s222
    %s239 = sphi 0, %s223
    %s247 = sphi 0, %s249
    %s250 = sphi 0, %s247
    %s251 = sphi 0, %s250
    %s267 = sphi 0, %s251
  $region4: #{sc_block_forward.54} parent=0 // loop_header_branch
    %18 = sbr.rel (%p16) target = $region8
  $region5: #{sc_block_forward.54} parent=0 // loop_body
    %s20 = ssub.s32 %s15, 1
    %s21 = ssub.s32 %s15, 2
    %s28 = sadd.s32 1, %s23
    %p29 = scmp.ge.s32.totalorder %s28, 1
    %s30 = scalar_select %p29, 0, %s28
    %s31 = sadd.s32 1, %s22
    %s32 = scalar_select %p29, %s31, %s22
    %p33 = scmp.ge.s32.totalorder %s32, 2
    %s34 = scalar_select %p33, 0, %s32
    %s35 = ssub.s32 %s22, %s34
    %s36 = ssub.s32 %s23, %s30
    %s37 = sor.u32 %s35, %s36
    %p38 = scmp.eq.s32.totalorder %s37, 0
    %s40 = sadd.s32 %s39, 1
    %s41 = scalar_select %p38, %s39, %s40
    %p44 = pneg %p38
    %p45 = scmp.eq.s32.totalorder %s15, 1
    %p46 = por %p44, %p45
    %p47 = scmp.ne.s32.totalorder %s39, %s42
    %p48 = scmp.eq.s32.totalorder %s15, 0
    %p49 = por %p47, %p48
    %p50 = scmp.ne.s32.totalorder %s39, %s42
    %p51 = scmp.eq.s32.totalorder %s20, 1
    %p52 = por %p50, %p51
    %p53 = scmp.ne.s32.totalorder %s42, %s43
    %p54 = scmp.eq.s32.totalorder %s20, 0
    %p55 = por %p53, %p54
    %p56 = scmp.ne.s32.totalorder %s42, %s43
    %p57 = scmp.eq.s32.totalorder %s21, 1
    %p58 = por %p56, %p57
    %p60 = scmp.ne.s32.totalorder %s43, %s59
    %p61 = scmp.eq.s32.totalorder %s21, 0
    %p62 = por %p60, %p61
    %s64 = sadd.s32 %s63, 1
    %p67 = scmp.eq.s32.totalorder %s15, 1
    %p68 = scmp.ne.s32.totalorder %s63, %s65
    %p69 = scmp.eq.s32.totalorder %s15, 0
    %p70 = por %p68, %p69
    %p71 = scmp.ne.s32.totalorder %s63, %s65
    %p72 = scmp.eq.s32.totalorder %s20, 1
    %p73 = por %p71, %p72
    %p74 = scmp.ne.s32.totalorder %s65, %s66
    %p75 = scmp.eq.s32.totalorder %s20, 0
    %p76 = por %p74, %p75
    %p77 = scmp.ne.s32.totalorder %s65, %s66
    %p78 = scmp.eq.s32.totalorder %s21, 1
    %p79 = por %p77, %p78
    %p81 = scmp.ne.s32.totalorder %s66, %s80
    %p82 = scmp.eq.s32.totalorder %s21, 0
    %p83 = por %p81, %p82
    %s85 = sadd.s32 %s84, 1
    %p88 = scmp.eq.s32.totalorder %s15, 1
    %p89 = scmp.ne.s32.totalorder %s84, %s86
    %p90 = scmp.eq.s32.totalorder %s15, 0
    %p91 = por %p89, %p90
    %p92 = scmp.ne.s32.totalorder %s84, %s86
    %p93 = scmp.eq.s32.totalorder %s20, 1
    %p94 = por %p92, %p93
    %p95 = scmp.ne.s32.totalorder %s86, %s87
    %p96 = scmp.eq.s32.totalorder %s20, 0
    %p97 = por %p95, %p96
    %p98 = scmp.ne.s32.totalorder %s86, %s87
    %p99 = scmp.eq.s32.totalorder %s21, 1
    %p100 = por %p98, %p99
    %p102 = scmp.ne.s32.totalorder %s87, %s101
    %p103 = scmp.eq.s32.totalorder %s21, 0
    %p104 = por %p102, %p103
    %s106 = sadd.s32 %s105, 1
    %p109 = scmp.eq.s32.totalorder %s15, 1
    %p110 = scmp.ne.s32.totalorder %s105, %s107
    %p111 = scmp.eq.s32.totalorder %s15, 0
    %p112 = por %p110, %p111
    %p113 = scmp.ne.s32.totalorder %s105, %s107
    %p114 = scmp.eq.s32.totalorder %s20, 1
    %p115 = por %p113, %p114
    %p116 = scmp.ne.s32.totalorder %s107, %s108
    %p117 = scmp.eq.s32.totalorder %s20, 0
    %p118 = por %p116, %p117
    %p119 = scmp.ne.s32.totalorder %s107, %s108
    %p120 = scmp.eq.s32.totalorder %s21, 1
    %p121 = por %p119, %p120
    %p123 = scmp.ne.s32.totalorder %s108, %s122
    %p124 = scmp.eq.s32.totalorder %s21, 0
    %p125 = por %p123, %p124
    %s127 = sadd.s32 %s126, 1
    %p130 = scmp.eq.s32.totalorder %s15, 1
    %p131 = scmp.ne.s32.totalorder %s126, %s128
    %p132 = scmp.eq.s32.totalorder %s15, 0
    %p133 = por %p131, %p132
    %p134 = scmp.ne.s32.totalorder %s126, %s128
    %p135 = scmp.eq.s32.totalorder %s20, 1
    %p136 = por %p134, %p135
    %p137 = scmp.ne.s32.totalorder %s128, %s129
    %p138 = scmp.eq.s32.totalorder %s20, 0
    %p139 = por %p137, %p138
    %p140 = scmp.ne.s32.totalorder %s128, %s129
    %p141 = scmp.eq.s32.totalorder %s21, 1
    %p142 = por %p140, %p141
    %p144 = scmp.ne.s32.totalorder %s129, %s143
    %p145 = scmp.eq.s32.totalorder %s21, 0
    %p146 = por %p144, %p145
    %s148 = sadd.s32 %s147, 1
    %p151 = scmp.eq.s32.totalorder %s15, 1
    %p152 = scmp.ne.s32.totalorder %s147, %s149
    %p153 = scmp.eq.s32.totalorder %s15, 0
    %p154 = por %p152, %p153
    %p155 = scmp.ne.s32.totalorder %s147, %s149
    %p156 = scmp.eq.s32.totalorder %s20, 1
    %p157 = por %p155, %p156
    %p158 = scmp.ne.s32.totalorder %s149, %s150
    %p159 = scmp.eq.s32.totalorder %s20, 0
    %p160 = por %p158, %p159
    %p161 = scmp.ne.s32.totalorder %s149, %s150
    %p162 = scmp.eq.s32.totalorder %s21, 1
    %p163 = por %p161, %p162
    %p165 = scmp.ne.s32.totalorder %s150, %s164
    %p166 = scmp.eq.s32.totalorder %s21, 0
    %p167 = por %p165, %p166
    %s169 = sadd.s32 %s168, 1
    %p172 = scmp.eq.s32.totalorder %s15, 1
    %p173 = scmp.ne.s32.totalorder %s168, %s170
    %p174 = scmp.eq.s32.totalorder %s15, 0
    %p175 = por %p173, %p174
    %p176 = scmp.ne.s32.totalorder %s168, %s170
    %p177 = scmp.eq.s32.totalorder %s20, 1
    %p178 = por %p176, %p177
    %p179 = scmp.ne.s32.totalorder %s170, %s171
    %p180 = scmp.eq.s32.totalorder %s20, 0
    %p181 = por %p179, %p180
    %p182 = scmp.ne.s32.totalorder %s170, %s171
    %p183 = scmp.eq.s32.totalorder %s21, 1
    %p184 = por %p182, %p183
    %p186 = scmp.ne.s32.totalorder %s171, %s185
    %p187 = scmp.eq.s32.totalorder %s21, 0
    %p188 = por %p186, %p187
    %s189 = ssub.s32 %s22, %s34
    %p190 = scmp.eq.s32.totalorder %s189, 0
    %s192 = sadd.s32 %s191, 1
    %s193 = scalar_select %p190, %s191, %s192
    %p196 = pneg %p190
    %p197 = scmp.eq.s32.totalorder %s15, 1
    %p198 = por %p196, %p197
    %p199 = scmp.ne.s32.totalorder %s191, %s194
    %p200 = scmp.eq.s32.totalorder %s15, 0
    %p201 = por %p199, %p200
    %p202 = scmp.ne.s32.totalorder %s191, %s194
    %p203 = scmp.eq.s32.totalorder %s20, 1
    %p204 = por %p202, %p203
    %p205 = scmp.ne.s32.totalorder %s194, %s195
    %p206 = scmp.eq.s32.totalorder %s20, 0
    %p207 = por %p205, %p206
    %p208 = scmp.ne.s32.totalorder %s194, %s195
    %p209 = scmp.eq.s32.totalorder %s21, 1
    %p210 = por %p208, %p209
    %p212 = scmp.ne.s32.totalorder %s195, %s211
    %p213 = scmp.eq.s32.totalorder %s21, 0
    %p214 = por %p212, %p213
    %s215 = ssub.s32 %s22, %s34
    %s216 = ssub.s32 %s23, %s30
    %s217 = sor.u32 %s215, %s216
    %p218 = scmp.eq.s32.totalorder %s217, 0
    %s220 = sadd.s32 %s219, 1
    %s221 = scalar_select %p218, %s219, %s220
    %p224 = pneg %p218
    %p225 = scmp.eq.s32.totalorder %s15, 1
    %p226 = por %p224, %p225
    %p227 = scmp.ne.s32.totalorder %s219, %s222
    %p228 = scmp.eq.s32.totalorder %s15, 0
    %p229 = por %p227, %p228
    %p230 = scmp.ne.s32.totalorder %s219, %s222
    %p231 = scmp.eq.s32.totalorder %s20, 1
    %p232 = por %p230, %p231
    %p233 = scmp.ne.s32.totalorder %s222, %s223
    %p234 = scmp.eq.s32.totalorder %s20, 0
    %p235 = por %p233, %p234
    %p236 = scmp.ne.s32.totalorder %s222, %s223
    %p237 = scmp.eq.s32.totalorder %s21, 1
    %p238 = por %p236, %p237
    %p240 = scmp.ne.s32.totalorder %s223, %s239
    %p241 = scmp.eq.s32.totalorder %s21, 0
    %p242 = por %p240, %p241
    %s243 = ssub.s32 %s22, %s34
    %s244 = ssub.s32 %s23, %s30
    %s245 = sor.u32 %s243, %s244
    %p246 = scmp.eq.s32.totalorder %s245, 0
    %s248 = sadd.s32 %s247, 1
    %s249 = scalar_select %p246, %s247, %s248
    %p252 = pneg %p246
    %p253 = scmp.eq.s32.totalorder %s15, 1
    %p254 = por %p252, %p253
    %p255 = scmp.ne.s32.totalorder %s247, %s250
    %p256 = scmp.eq.s32.totalorder %s15, 0
    %p257 = por %p255, %p256
    %p258 = scmp.ne.s32.totalorder %s247, %s250
    %p259 = scmp.eq.s32.totalorder %s20, 1
    %p260 = por %p258, %p259
    %p261 = scmp.ne.s32.totalorder %s250, %s251
    %p262 = scmp.eq.s32.totalorder %s20, 0
    %p263 = por %p261, %p262
    %p264 = scmp.ne.s32.totalorder %s250, %s251
    %p265 = scmp.eq.s32.totalorder %s21, 1
    %p266 = por %p264, %p265
    %p268 = scmp.ne.s32.totalorder %s251, %s267
    %p269 = scmp.eq.s32.totalorder %s21, 0
    %p270 = por %p268, %p269
    %p271 = scmp.le.s32.totalorder 1, %s15
    %p272 = scmp.lt.s32.totalorder %s15, 3
    %p273 = pnand %p271, %p272
    %p274 = pneg %p273
    // Predicated region
    $region9: #{sc_block_forward.54} parent=5 // pred_check
      _
    $region10: #{sc_block_forward.54} parent=5 // pred_check_branch
      %276 = sbr.rel (%p273) target = $region12
    $region11: #{sc_block_forward.54} parent=5 // pred_region
      %s277 = ssub.s32 %s15, 1
      // Predicated region
      $region13: #{sc_block_forward.54} parent=11 // pred_check
        %p278 = pneg %p76
      $region14: #{sc_block_forward.54} parent=11 // pred_check_branch
        %280 = sbr.rel (%p278) target = $region16
      $region15: #{sc_block_forward.54} parent=11 // pred_region
        _
      $region16: #{sc_block_forward.54} parent=11 // pred_fallthru
        _
      // Predicated region
      $region17: #{sc_block_forward.54} parent=11 // pred_check
        %p281 = pneg %p97
      $region18: #{sc_block_forward.54} parent=11 // pred_check_branch
        %283 = sbr.rel (%p281) target = $region20
      $region19: #{sc_block_forward.54} parent=11 // pred_region
        _
      $region20: #{sc_block_forward.54} parent=11 // pred_fallthru
        _
      // Predicated region
      $region21: #{sc_block_forward.54} parent=11 // pred_check
        %p284 = pneg %p118
      $region22: #{sc_block_forward.54} parent=11 // pred_check_branch
        %286 = sbr.rel (%p284) target = $region24
      $region23: #{sc_block_forward.54} parent=11 // pred_region
        _
      $region24: #{sc_block_forward.54} parent=11 // pred_fallthru
        _
      // Predicated region
      $region25: #{sc_block_forward.54} parent=11 // pred_check
        %p287 = pneg %p139
      $region26: #{sc_block_forward.54} parent=11 // pred_check_branch
        %289 = sbr.rel (%p287) target = $region28
      $region27: #{sc_block_forward.54} parent=11 // pred_region
        _
      $region28: #{sc_block_forward.54} parent=11 // pred_fallthru
        _
      // Predicated region
      $region29: #{sc_block_forward.54} parent=11 // pred_check
        %p290 = pneg %p160
      $region30: #{sc_block_forward.54} parent=11 // pred_check_branch
        %292 = sbr.rel (%p290) target = $region32
      $region31: #{sc_block_forward.54} parent=11 // pred_region
        _
      $region32: #{sc_block_forward.54} parent=11 // pred_fallthru
        _
      // Predicated region
      $region33: #{sc_block_forward.54} parent=11 // pred_check
        %p293 = pneg %p181
      $region34: #{sc_block_forward.54} parent=11 // pred_check_branch
        %295 = sbr.rel (%p293) target = $region36
      $region35: #{sc_block_forward.54} parent=11 // pred_region
        _
      $region36: #{sc_block_forward.54} parent=11 // pred_fallthru
        _
    $region12: #{sc_block_forward.54} parent=5 // pred_fallthru
      _
    %p296 = scmp.lt.s32.totalorder %s15, 2
    // Predicated region
    $region37: #{sc_block_forward.54} parent=5 // pred_check
      %p297 = pneg %p296
    $region38: #{sc_block_forward.54} parent=5 // pred_check_branch
      %299 = sbr.rel (%p297) target = $region40
    $region39: #{sc_block_forward.54} parent=5 // pred_region
      // Predicated region
      $region41: #{sc_block_forward.54} parent=39 // pred_check
        %p300 = pneg %p49
      $region42: #{sc_block_forward.54} parent=39 // pred_check_branch
        %302 = sbr.rel (%p300) target = $region44
      $region43: #{sc_block_forward.54} parent=39 // pred_region
        %s303 = smul.u32 2, %s23
        %p304 = scmp.lt.s32.totalorder %s22, 1
        %s305 = scalar_select %p304, %s22, 1
        %p306 = scmp.lt.s32.totalorder %s303, 1
        %s307 = scalar_select %p306, %s303, 1
        %s308 = smul.addr %s305, 2
        %s309 = sadd.s32 %s307, %s308
        %s310 = smul.addr %s309, 8
        %s311 = scalar_lea.vmem %s0, %s310
        %s312 = smul.u32 2, %s23
      $region44: #{sc_block_forward.54} parent=39 // pred_fallthru
        _
      // Predicated region
      $region45: #{sc_block_forward.54} parent=39 // pred_check
        %p313 = pneg %p201
      $region46: #{sc_block_forward.54} parent=39 // pred_check_branch
        %315 = sbr.rel (%p313) target = $region48
      $region47: #{sc_block_forward.54} parent=39 // pred_region
        %p316 = scmp.lt.s32.totalorder %s22, 1
        %s317 = scalar_select %p316, %s22, 1
        %s318 = scalar_lea.vmem %s7, %s317
      $region48: #{sc_block_forward.54} parent=39 // pred_fallthru
        _
      // Predicated region
      $region49: #{sc_block_forward.54} parent=39 // pred_check
        %p319 = pneg %p229
      $region50: #{sc_block_forward.54} parent=39 // pred_check_branch
        %321 = sbr.rel (%p319) target = $region52
      $region51: #{sc_block_forward.54} parent=39 // pred_region
        %s322 = smul.u32 2, %s23
        %p323 = scmp.lt.s32.totalorder %s22, 1
        %s324 = scalar_select %p323, %s22, 1
        %p325 = scmp.lt.s32.totalorder %s322, 1
        %s326 = scalar_select %p325, %s322, 1
        %s327 = smul.addr %s324, 2
        %s328 = sadd.s32 %s326, %s327
        %s329 = smul.addr %s328, 8
        %s330 = scalar_lea.vmem %s8, %s329
        %s331 = smul.u32 2, %s23
      $region52: #{sc_block_forward.54} parent=39 // pred_fallthru
        _
    $region40: #{sc_block_forward.54} parent=5 // pred_fallthru
      _
    %p332 = scmp.le.s32.totalorder 1, %s15
    %p333 = scmp.lt.s32.totalorder %s15, 3
    %p334 = pnand %p332, %p333
    %p335 = pneg %p334
    // Predicated region
    $region53: #{sc_block_forward.54} parent=5 // pred_check
      _
    $region54: #{sc_block_forward.54} parent=5 // pred_check_branch
      %337 = sbr.rel (%p334) target = $region56
    $region55: #{sc_block_forward.54} parent=5 // pred_region
      %s338 = ssub.s32 %s15, 1
      %s339 = smul.u32 2, %s25
      %p340 = scmp.lt.s32.totalorder %s24, 1
      %s341 = scalar_select %p340, %s24, 1
      %p342 = scmp.lt.s32.totalorder %s339, 1
      %s343 = scalar_select %p342, %s339, 1
      %s344 = smul.addr %s341, 2
      %s345 = sadd.s32 %s343, %s344
      %s346 = smul.addr %s345, 8
      %s347 = scalar_lea.vmem %s0, %s346
      %p348 = pneg %p55
      %p349 = pneg %p52
      %p350 = pneg %p76
      %p351 = pneg %p73
      %p352 = pneg %p97
      %p353 = pneg %p94
      %p354 = pneg %p118
      %p355 = pneg %p115
      %p356 = pneg %p139
      %p357 = pneg %p136
      %p358 = pneg %p160
      %p359 = pneg %p157
      %p360 = pneg %p181
      %p361 = pneg %p178
      %p362 = scmp.lt.s32.totalorder %s24, 1
      %s363 = scalar_select %p362, %s24, 1
      %s364 = scalar_lea.vmem %s7, %s363
      %p365 = pneg %p207
      %p366 = pneg %p204
      %s367 = smul.u32 2, %s25
      %p368 = scmp.lt.s32.totalorder %s24, 1
      %s369 = scalar_select %p368, %s24, 1
      %p370 = scmp.lt.s32.totalorder %s367, 1
      %s371 = scalar_select %p370, %s367, 1
      %s372 = smul.addr %s369, 2
      %s373 = sadd.s32 %s371, %s372
      %s374 = smul.addr %s373, 8
      %s375 = scalar_lea.vmem %s8, %s374
      %p376 = pneg %p235
      %p377 = pneg %p232
      %p378 = pneg %p263
      %p379 = pneg %p260
      %s380 = smul.u32 2, %s25
      %p381 = scmp.lt.s32.totalorder %s24, 1
      %s382 = scalar_select %p381, %s24, 1
      %p383 = scmp.lt.s32.totalorder %s380, 1
      %s384 = scalar_select %p383, %s380, 1
      %s385 = smul.addr %s382, 2
      %s386 = sadd.s32 %s384, %s385
      %s387 = smul.addr %s386, 8
      %s388 = scalar_lea.vmem %s9, %s387
      %s389 = smul.u32 2, %s25
      %p390 = scmp.lt.s32.totalorder %s24, 1
      %s391 = scalar_select %p390, %s24, 1
      %p392 = scmp.lt.s32.totalorder %s389, 1
      %s393 = scalar_select %p392, %s389, 1
      %s394 = smul.addr %s391, 2
      %s395 = sadd.s32 %s393, %s394
      %s396 = smul.addr %s395, 8
      %s397 = scalar_lea.vmem %s0, %s396
      %s398 = smul.u32 2, %s25
      %p399 = scmp.lt.s32.totalorder %s24, 1
      %s400 = scalar_select %p399, %s24, 1
      %s401 = scalar_lea.vmem %s7, %s400
      %s402 = smul.u32 2, %s25
      %p403 = scmp.lt.s32.totalorder %s24, 1
      %s404 = scalar_select %p403, %s24, 1
      %p405 = scmp.lt.s32.totalorder %s402, 1
      %s406 = scalar_select %p405, %s402, 1
      %s407 = smul.addr %s404, 2
      %s408 = sadd.s32 %s406, %s407
      %s409 = smul.addr %s408, 8
      %s410 = scalar_lea.vmem %s8, %s409
      %s411 = smul.u32 2, %s25
      %s412 = smul.u32 2, %s25
      %p413 = scmp.lt.s32.totalorder %s24, 1
      %s414 = scalar_select %p413, %s24, 1
      %p415 = scmp.lt.s32.totalorder %s412, 1
      %s416 = scalar_select %p415, %s412, 1
      %s417 = smul.addr %s414, 2
      %s418 = sadd.s32 %s416, %s417
      %s419 = smul.addr %s418, 8
      %s420 = scalar_lea.vmem %s9, %s419
      %s421 = smul.u32 2, %s25
      %v422 = vld [vmem:[%s397] sm:$0xff]
      %v423 = vld [vmem:[%s397 + $0x8] sm:$0xff]
      %v424 = vld [vmem:[%s1] sm:$0x1]
      %v426 = vlaneseq
      %v427 = vshrl.u32 %v426, 7
      %v428 = vsub.s32 0, %v427
      %v429 = vrot.slane %v424, %v428
      %v431 = vmul.f32 %v422, %v429
      %v432 = vmul.f32 %v423, %v429
      %v433 = vld [vmem:[%s2] sm:$0x1]
      %v435 = vlaneseq
      %v436 = vshrl.u32 %v435, 7
      %v437 = vsub.s32 0, %v436
      %v438 = vrot.slane %v433, %v437
      %v440 = vadd.f32 %v431, %v438
      %v441 = vadd.f32 %v432, %v438
      %v442 = vmax.f32 %v440, 0.0
      %v443 = vmax.f32 %v441, 0.0
      %v444 = vld [vmem:[%s3] sm:$0x1]
      %v446 = vlaneseq
      %v447 = vshrl.u32 %v446, 7
      %v448 = vsub.s32 0, %v447
      %v449 = vrot.slane %v444, %v448
      %v451 = vmul.f32 %v442, %v449
      %v452 = vmul.f32 %v443, %v449
      %v453 = vld [vmem:[%s4] sm:$0x1]
      %v455 = vlaneseq
      %v456 = vshrl.u32 %v455, 7
      %v457 = vsub.s32 0, %v456
      %v458 = vrot.slane %v453, %v457
      %v460 = vadd.f32 %v451, %v458
      %v461 = vadd.f32 %v452, %v458
      %v462 = vld [vmem:[%s5] sm:$0xff]
      %v463 = vld [vmem:[%s5 + $0x8] sm:$0xff]
      %v464 = vld [vmem:[%s5 + $0x10] sm:$0xff]
      %v465 = vld [vmem:[%s5 + $0x18] sm:$0xff]
      %v466 = vld [vmem:[%s5 + $0x20] sm:$0xff]
      %v467 = vld [vmem:[%s5 + $0x28] sm:$0xff]
      %v468 = vld [vmem:[%s5 + $0x30] sm:$0xff]
      %v469 = vld [vmem:[%s5 + $0x38] sm:$0xff]
      %v470 = vld [vmem:[%s5 + $0x40] sm:$0xff]
      %v471 = vld [vmem:[%s5 + $0x48] sm:$0xff]
      %v472 = vld [vmem:[%s5 + $0x50] sm:$0xff]
      %v473 = vld [vmem:[%s5 + $0x58] sm:$0xff]
      %v474 = vld [vmem:[%s5 + $0x60] sm:$0xff]
      %v475 = vld [vmem:[%s5 + $0x68] sm:$0xff]
      %v476 = vld [vmem:[%s5 + $0x70] sm:$0xff]
      %v477 = vld [vmem:[%s5 + $0x78] sm:$0xff]
      %v478 = vld [vmem:[%s6] sm:$0x1]
      %v480 = vlaneseq
      %v481 = vshrl.u32 %v480, 7
      %v482 = vsub.s32 0, %v481
      %v483 = vrot.slane %v478, %v482
      %485 = vmatprep.subr.mxu0 0.0
      %486 = vmatpush1.msra.mxu0 %v462
      %487 = vmatprep.subr.mxu0 0.0
      %488 = vmatpush1.msra.mxu0 %v463
      %489 = vmatprep.subr.mxu0 0.0
      %490 = vmatpush1.msra.mxu0 %v464
      %491 = vmatprep.subr.mxu0 0.0
      %492 = vmatpush1.msra.mxu0 %v465
      %493 = vmatprep.subr.mxu0 0.0
      %494 = vmatpush1.msra.mxu0 %v466
      %495 = vmatprep.subr.mxu0 0.0
      %496 = vmatpush1.msra.mxu0 %v467
      %497 = vmatprep.subr.mxu0 0.0
      %498 = vmatpush1.msra.mxu0 %v468
      %499 = vmatprep.subr.mxu0 0.0
      %500 = vmatpush1.msra.mxu0 %v469
      %501 = vmatprep.subr.mxu0 0.0
      %502 = vmatpush1.msra.mxu0 %v470
      %503 = vmatprep.subr.mxu0 0.0
      %504 = vmatpush1.msra.mxu0 %v471
      %505 = vmatprep.subr.mxu0 0.0
      %506 = vmatpush1.msra.mxu0 %v472
      %507 = vmatprep.subr.mxu0 0.0
      %508 = vmatpush1.msra.mxu0 %v473
      %509 = vmatprep.subr.mxu0 0.0
      %510 = vmatpush1.msra.mxu0 %v474
      %511 = vmatprep.subr.mxu0 0.0
      %512 = vmatpush1.msra.mxu0 %v475
      %513 = vmatprep.subr.mxu0 0.0
      %514 = vmatpush1.msra.mxu0 %v476
      %515 = vmatprep.subr.mxu0 0.0
      %516 = vmatpush1.msra.mxu0 %v477
      %517 = vmatprep.subr.mxu0 0.0
      %518 = vmatpush1.msra.mxu0 0.0
      %519 = vmatprep.subr.mxu0 0.0
      %520 = vmatpush1.msra.mxu0 0.0
      %521 = vmatprep.subr.mxu0 0.0
      %522 = vmatpush1.msra.mxu0 0.0
      %523 = vmatprep.subr.mxu0 0.0
      %524 = vmatpush1.msra.mxu0 0.0
      %525 = vmatprep.subr.mxu0 0.0
      %526 = vmatpush1.msra.mxu0 0.0
      %527 = vmatprep.subr.mxu0 0.0
      %528 = vmatpush1.msra.mxu0 0.0
      %529 = vmatprep.subr.mxu0 0.0
      %530 = vmatpush1.msra.mxu0 0.0
      %531 = vmatprep.subr.mxu0 0.0
      %532 = vmatpush1.msra.mxu0 0.0
      %533 = vmatprep.subr.mxu0 0.0
      %534 = vmatpush1.msra.mxu0 0.0
      %535 = vmatprep.subr.mxu0 0.0
      %536 = vmatpush1.msra.mxu0 0.0
      %537 = vmatprep.subr.mxu0 0.0
      %538 = vmatpush1.msra.mxu0 0.0
      %539 = vmatprep.subr.mxu0 0.0
      %540 = vmatpush1.msra.mxu0 0.0
      %541 = vmatprep.subr.mxu0 0.0
      %542 = vmatpush1.msra.mxu0 0.0
      %543 = vmatprep.subr.mxu0 0.0
      %544 = vmatpush1.msra.mxu0 0.0
      %545 = vmatprep.subr.mxu0 0.0
      %546 = vmatpush1.msra.mxu0 0.0
      %547 = vmatprep.subr.mxu0 0.0
      %548 = vmatpush1.msra.mxu0 0.0
      %549 = vmatprep.mubr.f32.mxu0 0.0
      %550 = vmatmul.mubr.f32.gmra.mrb[0].mxu0 %v460
      %v551 = vpop.f32.mrb[0].mxu0
      %v552 = vadd.f32 %v483, %v551
      %v553 = vpop.f32.mrb[0].mxu0
      %554 = vmatprep.mubr.f32.mxu0 0.0
      %555 = vmatmul.mubr.f32.gmra.mrb[0].mxu0 %v461
      %v556 = vpop.f32.mrb[0].mxu0
      %v557 = vadd.f32 %v483, %v556
      %v558 = vpop.f32.mrb[0].mxu0
      %559 = vdwg.mxu0
      %v560 = vld [vmem:[%s410] sm:$0xff]
      %v561 = vld [vmem:[%s410 + $0x8] sm:$0xff]
      %v562 = vxor.u32 %v552, 2147483648
      %v563 = vxor.u32 %v557, 2147483648
      %v564 = vmul.f32 %v562, 1.442695
      %v565 = vpow.pop %v564
      %v566 = vmul.f32 %v563, 1.442695
      %v567 = vpow.pop %v566
      %v568 = vadd.f32 %v565, 1.0
      %v569 = vadd.f32 %v567, 1.0
      %v570 = vrcp.pop %v568
      %v571 = vmul.f32 1.0, %v570
      %v572 = vrcp.pop %v569
      %v573 = vmul.f32 1.0, %v572
      %v574 = vmul.f32 %v560, %v571
      %v575 = vmul.f32 %v561, %v573
      %v576 = vld [vmem:[%s401] sm:$0x1]
      %v578 = vlaneseq
      %v579 = vshrl.u32 %v578, 7
      %v580 = vsub.s32 0, %v579
      %v581 = vrot.slane %v576, %v580
      %v583 = vmul.f32 %v574, %v581
      %v584 = vmul.f32 %v575, %v581
      %585 = vst [vmem:[%s420] sm:$0xff] %v583
      %586 = vst [vmem:[%s420 + $0x8] sm:$0xff] %v584
      %s587 = smul.u32 2, %s25
      %p588 = scmp.lt.s32.totalorder %s24, 1
      %s589 = scalar_select %p588, %s24, 1
      %p590 = scmp.lt.s32.totalorder %s587, 1
      %s591 = scalar_select %p590, %s587, 1
      %s592 = smul.addr %s589, 2
      %s593 = sadd.s32 %s591, %s592
      %s594 = smul.addr %s593, 8
      %s595 = scalar_lea.vmem %s9, %s594
      // Predicated region
      $region57: #{sc_block_forward.54} parent=55 // pred_check
        %p596 = pneg %p260
      $region58: #{sc_block_forward.54} parent=55 // pred_check_branch
        %598 = sbr.rel (%p596) target = $region60
      $region59: #{sc_block_forward.54} parent=55 // pred_region
        %s599 = smul.u32 2, %s25
      $region60: #{sc_block_forward.54} parent=55 // pred_fallthru
        _
    $region56: #{sc_block_forward.54} parent=5 // pred_fallthru
      _
    %p600 = scmp.le.s32.totalorder 2, %s15
    // Predicated region
    $region61: #{sc_block_forward.54} parent=5 // pred_check
      %p601 = pneg %p600
    $region62: #{sc_block_forward.54} parent=5 // pred_check_branch
      %603 = sbr.rel (%p601) target = $region64
    $region63: #{sc_block_forward.54} parent=5 // pred_region
      %s604 = ssub.s32 %s15, 2
      // Predicated region
      $region65: #{sc_block_forward.54} parent=63 // pred_check
        %p605 = pneg %p266
      $region66: #{sc_block_forward.54} parent=63 // pred_check_branch
        %607 = sbr.rel (%p605) target = $region68
      $region67: #{sc_block_forward.54} parent=63 // pred_region
        %s608 = smul.u32 2, %s27
        %p609 = scmp.lt.s32.totalorder %s26, 1
        %s610 = scalar_select %p609, %s26, 1
        %p611 = scmp.lt.s32.totalorder %s608, 1
        %s612 = scalar_select %p611, %s608, 1
        %s613 = smul.addr %s610, 2
        %s614 = sadd.s32 %s612, %s613
        %s615 = smul.addr %s614, 8
        %s616 = scalar_lea.vmem %s9, %s615
      $region68: #{sc_block_forward.54} parent=63 // pred_fallthru
        _
    $region64: #{sc_block_forward.54} parent=5 // pred_fallthru
      _
  $region6: #{sc_block_forward.54} parent=0 // loop_footer
    %s19 = sadd.s32 1, %s15
  $region7: #{sc_block_forward.54} parent=0 // loop_footer_branch
    %14 = sbr.rel target = $region3
  $region8: #{sc_block_forward.54} parent=0 // loop_exit
    _

// kernel: sc_block_forward.56
$region0: #{sc_block_forward.56}
  #allocation0 [shape = 'u32[]', space=smem, size = 0x4, offset = 0x4, fixed_abs, tag = 'smem constant byte address 0x4 - core index']
  #allocation1 [shape = 'u32[144,128]{1,0:T(1,128)}', space=vmem, size = 0x12000, scoped, tag = 'internal scratch']
  %s0 = inlined_call_operand.vmem [shape: f32[2,16,128], index: 0, kind: input, shape index: {}]
  %s1 = inlined_call_operand.vmem [shape: f32[2,1,128], index: 1, kind: input, shape index: {}]
  %s2 = inlined_call_operand.vmem [shape: f32[2,1,128], index: 2, kind: input, shape index: {}]
  %s3 = inlined_call_operand.vmem [shape: f32[128,128], index: 3, kind: input, shape index: {}]
  %s4 = inlined_call_operand.vmem [shape: f32[1,1,128], index: 4, kind: input, shape index: {}]
  %s5 = inlined_call_operand.vmem [shape: f32[2,16,128], index: 5, kind: output, shape index: {}]
  %s6 = sld [smem:[#allocation0]]
  $region53: #{sc_block_forward.56} parent=0
    _
  %s8 = ssub.s32 1, %s6
  %s9 = scalar_select 0, %s8, %s6
  loop: start=0, step=1, limit=4
  $region2: #{sc_block_forward.56} parent=0 // loop_pre_header
    _
  $region3: #{sc_block_forward.56} parent=0 // loop_header
    %s11 = sphi 0, %s15
    %p12 = scmp.ge.s32.totalorder %s11, 4
    %s18 = sphi 0, %s30
    %s19 = sphi 0, %s26
    %s20 = sphi 0, %s18
    %s21 = sphi 0, %s19
    %s22 = sphi 0, %s20
    %s23 = sphi 0, %s21
    %s35 = sphi 0, %s37
    %s38 = sphi 0, %s35
    %s39 = sphi 0, %s38
    %s55 = sphi 0, %s39
    %s61 = sphi 0, %s63
    %s64 = sphi 0, %s61
    %s65 = sphi 0, %s64
    %s81 = sphi 0, %s65
    %s87 = sphi 0, %s89
    %s90 = sphi 0, %s87
    %s91 = sphi 0, %s90
    %s107 = sphi 0, %s91
    %s111 = sphi 0, %s111
    %s113 = sphi 0, %s111
    %s114 = sphi 0, %s113
    %s128 = sphi 0, %s114
    %s132 = sphi 0, %s132
    %s134 = sphi 0, %s132
    %s135 = sphi 0, %s134
    %s149 = sphi 0, %s135
    %s157 = sphi 0, %s159
    %s160 = sphi 0, %s157
    %s161 = sphi 0, %s160
    %s177 = sphi 0, %s161
  $region4: #{sc_block_forward.56} parent=0 // loop_header_branch
    %14 = sbr.rel (%p12) target = $region8
  $region5: #{sc_block_forward.56} parent=0 // loop_body
    %s16 = ssub.s32 %s11, 1
    %s17 = ssub.s32 %s11, 2
    %s24 = sadd.s32 1, %s19
    %p25 = scmp.ge.s32.totalorder %s24, 1
    %s26 = scalar_select %p25, 0, %s24
    %s27 = sadd.s32 1, %s18
    %s28 = scalar_select %p25, %s27, %s18
    %p29 = scmp.ge.s32.totalorder %s28, 2
    %s30 = scalar_select %p29, 0, %s28
    %s31 = ssub.s32 %s18, %s30
    %s32 = ssub.s32 %s19, %s26
    %s33 = sor.u32 %s31, %s32
    %p34 = scmp.eq.s32.totalorder %s33, 0
    %s36 = sadd.s32 %s35, 1
    %s37 = scalar_select %p34, %s35, %s36
    %p40 = pneg %p34
    %p41 = scmp.eq.s32.totalorder %s11, 1
    %p42 = por %p40, %p41
    %p43 = scmp.ne.s32.totalorder %s35, %s38
    %p44 = scmp.eq.s32.totalorder %s11, 0
    %p45 = por %p43, %p44
    %p46 = scmp.ne.s32.totalorder %s35, %s38
    %p47 = scmp.eq.s32.totalorder %s16, 1
    %p48 = por %p46, %p47
    %p49 = scmp.ne.s32.totalorder %s38, %s39
    %p50 = scmp.eq.s32.totalorder %s16, 0
    %p51 = por %p49, %p50
    %p52 = scmp.ne.s32.totalorder %s38, %s39
    %p53 = scmp.eq.s32.totalorder %s17, 1
    %p54 = por %p52, %p53
    %p56 = scmp.ne.s32.totalorder %s39, %s55
    %p57 = scmp.eq.s32.totalorder %s17, 0
    %p58 = por %p56, %p57
    %s59 = ssub.s32 %s18, %s30
    %p60 = scmp.eq.s32.totalorder %s59, 0
    %s62 = sadd.s32 %s61, 1
    %s63 = scalar_select %p60, %s61, %s62
    %p66 = pneg %p60
    %p67 = scmp.eq.s32.totalorder %s11, 1
    %p68 = por %p66, %p67
    %p69 = scmp.ne.s32.totalorder %s61, %s64
    %p70 = scmp.eq.s32.totalorder %s11, 0
    %p71 = por %p69, %p70
    %p72 = scmp.ne.s32.totalorder %s61, %s64
    %p73 = scmp.eq.s32.totalorder %s16, 1
    %p74 = por %p72, %p73
    %p75 = scmp.ne.s32.totalorder %s64, %s65
    %p76 = scmp.eq.s32.totalorder %s16, 0
    %p77 = por %p75, %p76
    %p78 = scmp.ne.s32.totalorder %s64, %s65
    %p79 = scmp.eq.s32.totalorder %s17, 1
    %p80 = por %p78, %p79
    %p82 = scmp.ne.s32.totalorder %s65, %s81
    %p83 = scmp.eq.s32.totalorder %s17, 0
    %p84 = por %p82, %p83
    %s85 = ssub.s32 %s18, %s30
    %p86 = scmp.eq.s32.totalorder %s85, 0
    %s88 = sadd.s32 %s87, 1
    %s89 = scalar_select %p86, %s87, %s88
    %p92 = pneg %p86
    %p93 = scmp.eq.s32.totalorder %s11, 1
    %p94 = por %p92, %p93
    %p95 = scmp.ne.s32.totalorder %s87, %s90
    %p96 = scmp.eq.s32.totalorder %s11, 0
    %p97 = por %p95, %p96
    %p98 = scmp.ne.s32.totalorder %s87, %s90
    %p99 = scmp.eq.s32.totalorder %s16, 1
    %p100 = por %p98, %p99
    %p101 = scmp.ne.s32.totalorder %s90, %s91
    %p102 = scmp.eq.s32.totalorder %s16, 0
    %p103 = por %p101, %p102
    %p104 = scmp.ne.s32.totalorder %s90, %s91
    %p105 = scmp.eq.s32.totalorder %s17, 1
    %p106 = por %p104, %p105
    %p108 = scmp.ne.s32.totalorder %s91, %s107
    %p109 = scmp.eq.s32.totalorder %s17, 0
    %p110 = por %p108, %p109
    %s112 = sadd.s32 %s111, 1
    %p115 = scmp.eq.s32.totalorder %s11, 1
    %p116 = scmp.ne.s32.totalorder %s111, %s113
    %p117 = scmp.eq.s32.totalorder %s11, 0
    %p118 = por %p116, %p117
    %p119 = scmp.ne.s32.totalorder %s111, %s113
    %p120 = scmp.eq.s32.totalorder %s16, 1
    %p121 = por %p119, %p120
    %p122 = scmp.ne.s32.totalorder %s113, %s114
    %p123 = scmp.eq.s32.totalorder %s16, 0
    %p124 = por %p122, %p123
    %p125 = scmp.ne.s32.totalorder %s113, %s114
    %p126 = scmp.eq.s32.totalorder %s17, 1
    %p127 = por %p125, %p126
    %p129 = scmp.ne.s32.totalorder %s114, %s128
    %p130 = scmp.eq.s32.totalorder %s17, 0
    %p131 = por %p129, %p130
    %s133 = sadd.s32 %s132, 1
    %p136 = scmp.eq.s32.totalorder %s11, 1
    %p137 = scmp.ne.s32.totalorder %s132, %s134
    %p138 = scmp.eq.s32.totalorder %s11, 0
    %p139 = por %p137, %p138
    %p140 = scmp.ne.s32.totalorder %s132, %s134
    %p141 = scmp.eq.s32.totalorder %s16, 1
    %p142 = por %p140, %p141
    %p143 = scmp.ne.s32.totalorder %s134, %s135
    %p144 = scmp.eq.s32.totalorder %s16, 0
    %p145 = por %p143, %p144
    %p146 = scmp.ne.s32.totalorder %s134, %s135
    %p147 = scmp.eq.s32.totalorder %s17, 1
    %p148 = por %p146, %p147
    %p150 = scmp.ne.s32.totalorder %s135, %s149
    %p151 = scmp.eq.s32.totalorder %s17, 0
    %p152 = por %p150, %p151
    %s153 = ssub.s32 %s18, %s30
    %s154 = ssub.s32 %s19, %s26
    %s155 = sor.u32 %s153, %s154
    %p156 = scmp.eq.s32.totalorder %s155, 0
    %s158 = sadd.s32 %s157, 1
    %s159 = scalar_select %p156, %s157, %s158
    %p162 = pneg %p156
    %p163 = scmp.eq.s32.totalorder %s11, 1
    %p164 = por %p162, %p163
    %p165 = scmp.ne.s32.totalorder %s157, %s160
    %p166 = scmp.eq.s32.totalorder %s11, 0
    %p167 = por %p165, %p166
    %p168 = scmp.ne.s32.totalorder %s157, %s160
    %p169 = scmp.eq.s32.totalorder %s16, 1
    %p170 = por %p168, %p169
    %p171 = scmp.ne.s32.totalorder %s160, %s161
    %p172 = scmp.eq.s32.totalorder %s16, 0
    %p173 = por %p171, %p172
    %p174 = scmp.ne.s32.totalorder %s160, %s161
    %p175 = scmp.eq.s32.totalorder %s17, 1
    %p176 = por %p174, %p175
    %p178 = scmp.ne.s32.totalorder %s161, %s177
    %p179 = scmp.eq.s32.totalorder %s17, 0
    %p180 = por %p178, %p179
    %p181 = scmp.le.s32.totalorder 1, %s11
    %p182 = scmp.lt.s32.totalorder %s11, 3
    %p183 = pnand %p181, %p182
    %p184 = pneg %p183
    // Predicated region
    $region9: #{sc_block_forward.56} parent=5 // pred_check
      _
    $region10: #{sc_block_forward.56} parent=5 // pred_check_branch
      %186 = sbr.rel (%p183) target = $region12
    $region11: #{sc_block_forward.56} parent=5 // pred_region
      %s187 = ssub.s32 %s11, 1
      // Predicated region
      $region13: #{sc_block_forward.56} parent=11 // pred_check
        %p188 = pneg %p124
      $region14: #{sc_block_forward.56} parent=11 // pred_check_branch
        %190 = sbr.rel (%p188) target = $region16
      $region15: #{sc_block_forward.56} parent=11 // pred_region
        _
      $region16: #{sc_block_forward.56} parent=11 // pred_fallthru
        _
      // Predicated region
      $region17: #{sc_block_forward.56} parent=11 // pred_check
        %p191 = pneg %p145
      $region18: #{sc_block_forward.56} parent=11 // pred_check_branch
        %193 = sbr.rel (%p191) target = $region20
      $region19: #{sc_block_forward.56} parent=11 // pred_region
        _
      $region20: #{sc_block_forward.56} parent=11 // pred_fallthru
        _
    $region12: #{sc_block_forward.56} parent=5 // pred_fallthru
      _
    %p194 = scmp.lt.s32.totalorder %s11, 2
    // Predicated region
    $region21: #{sc_block_forward.56} parent=5 // pred_check
      %p195 = pneg %p194
    $region22: #{sc_block_forward.56} parent=5 // pred_check_branch
      %197 = sbr.rel (%p195) target = $region24
    $region23: #{sc_block_forward.56} parent=5 // pred_region
      // Predicated region
      $region25: #{sc_block_forward.56} parent=23 // pred_check
        %p198 = pneg %p45
      $region26: #{sc_block_forward.56} parent=23 // pred_check_branch
        %200 = sbr.rel (%p198) target = $region28
      $region27: #{sc_block_forward.56} parent=23 // pred_region
        %s201 = smul.u32 2, %s19
        %p202 = scmp.lt.s32.totalorder %s18, 1
        %s203 = scalar_select %p202, %s18, 1
        %p204 = scmp.lt.s32.totalorder %s201, 1
        %s205 = scalar_select %p204, %s201, 1
        %s206 = smul.addr %s203, 2
        %s207 = sadd.s32 %s205, %s206
        %s208 = smul.addr %s207, 8
        %s209 = scalar_lea.vmem %s0, %s208
        %s210 = smul.u32 2, %s19
      $region28: #{sc_block_forward.56} parent=23 // pred_fallthru
        _
      // Predicated region
      $region29: #{sc_block_forward.56} parent=23 // pred_check
        %p211 = pneg %p71
      $region30: #{sc_block_forward.56} parent=23 // pred_check_branch
        %213 = sbr.rel (%p211) target = $region32
      $region31: #{sc_block_forward.56} parent=23 // pred_region
        %p214 = scmp.lt.s32.totalorder %s18, 1
        %s215 = scalar_select %p214, %s18, 1
        %s216 = scalar_lea.vmem %s1, %s215
      $region32: #{sc_block_forward.56} parent=23 // pred_fallthru
        _
      // Predicated region
      $region33: #{sc_block_forward.56} parent=23 // pred_check
        %p217 = pneg %p97
      $region34: #{sc_block_forward.56} parent=23 // pred_check_branch
        %219 = sbr.rel (%p217) target = $region36
      $region35: #{sc_block_forward.56} parent=23 // pred_region
        %p220 = scmp.lt.s32.totalorder %s18, 1
        %s221 = scalar_select %p220, %s18, 1
        %s222 = scalar_lea.vmem %s2, %s221
      $region36: #{sc_block_forward.56} parent=23 // pred_fallthru
        _
    $region24: #{sc_block_forward.56} parent=5 // pred_fallthru
      _
    %p223 = scmp.le.s32.totalorder 1, %s11
    %p224 = scmp.lt.s32.totalorder %s11, 3
    %p225 = pnand %p223, %p224
    %p226 = pneg %p225
    // Predicated region
    $region37: #{sc_block_forward.56} parent=5 // pred_check
      _
    $region38: #{sc_block_forward.56} parent=5 // pred_check_branch
      %228 = sbr.rel (%p225) target = $region40
    $region39: #{sc_block_forward.56} parent=5 // pred_region
      %s229 = ssub.s32 %s11, 1
      %s230 = smul.u32 2, %s21
      %p231 = scmp.lt.s32.totalorder %s20, 1
      %s232 = scalar_select %p231, %s20, 1
      %p233 = scmp.lt.s32.totalorder %s230, 1
      %s234 = scalar_select %p233, %s230, 1
      %s235 = smul.addr %s232, 2
      %s236 = sadd.s32 %s234, %s235
      %s237 = smul.addr %s236, 8
      %s238 = scalar_lea.vmem %s0, %s237
      %p239 = pneg %p51
      %p240 = pneg %p48
      %p241 = scmp.lt.s32.totalorder %s20, 1
      %s242 = scalar_select %p241, %s20, 1
      %s243 = scalar_lea.vmem %s1, %s242
      %p244 = pneg %p77
      %p245 = pneg %p74
      %p246 = scmp.lt.s32.totalorder %s20, 1
      %s247 = scalar_select %p246, %s20, 1
      %s248 = scalar_lea.vmem %s2, %s247
      %p249 = pneg %p103
      %p250 = pneg %p100
      %p251 = pneg %p124
      %p252 = pneg %p121
      %p253 = pneg %p145
      %p254 = pneg %p142
      %p255 = pneg %p173
      %p256 = pneg %p170
      %s257 = smul.u32 2, %s21
      %p258 = scmp.lt.s32.totalorder %s20, 1
      %s259 = scalar_select %p258, %s20, 1
      %p260 = scmp.lt.s32.totalorder %s257, 1
      %s261 = scalar_select %p260, %s257, 1
      %s262 = smul.addr %s259, 2
      %s263 = sadd.s32 %s261, %s262
      %s264 = smul.addr %s263, 8
      %s265 = scalar_lea.vmem %s5, %s264
      %s266 = smul.u32 2, %s21
      %p267 = scmp.lt.s32.totalorder %s20, 1
      %s268 = scalar_select %p267, %s20, 1
      %p269 = scmp.lt.s32.totalorder %s266, 1
      %s270 = scalar_select %p269, %s266, 1
      %s271 = smul.addr %s268, 2
      %s272 = sadd.s32 %s270, %s271
      %s273 = smul.addr %s272, 8
      %s274 = scalar_lea.vmem %s0, %s273
      %s275 = smul.u32 2, %s21
      %p276 = scmp.lt.s32.totalorder %s20, 1
      %s277 = scalar_select %p276, %s20, 1
      %s278 = scalar_lea.vmem %s1, %s277
      %p279 = scmp.lt.s32.totalorder %s20, 1
      %s280 = scalar_select %p279, %s20, 1
      %s281 = scalar_lea.vmem %s2, %s280
      %s282 = smul.u32 2, %s21
      %p283 = scmp.lt.s32.totalorder %s20, 1
      %s284 = scalar_select %p283, %s20, 1
      %p285 = scmp.lt.s32.totalorder %s282, 1
      %s286 = scalar_select %p285, %s282, 1
      %s287 = smul.addr %s284, 2
      %s288 = sadd.s32 %s286, %s287
      %s289 = smul.addr %s288, 8
      %s290 = scalar_lea.vmem %s5, %s289
      %s291 = smul.u32 2, %s21
      %v292 = vld [vmem:[%s274] sm:$0xff]
      %v293 = vld [vmem:[%s274 + $0x8] sm:$0xff]
      %v294 = vld [vmem:[%s278] sm:$0x1]
      %v296 = vlaneseq
      %v297 = vshrl.u32 %v296, 7
      %v298 = vsub.s32 0, %v297
      %v299 = vrot.slane %v294, %v298
      %v301 = vmul.f32 %v292, %v299
      %v302 = vmul.f32 %v293, %v299
      %v303 = vld [vmem:[%s281] sm:$0x1]
      %v305 = vlaneseq
      %v306 = vshrl.u32 %v305, 7
      %v307 = vsub.s32 0, %v306
      %v308 = vrot.slane %v303, %v307
      %v310 = vadd.f32 %v301, %v308
      %v311 = vadd.f32 %v302, %v308
      %v312 = vmax.f32 %v310, 0.0
      %v313 = vmax.f32 %v311, 0.0
      %v314 = vld [vmem:[%s3] sm:$0xff]
      %v315 = vld [vmem:[%s3 + $0x8] sm:$0xff]
      %v316 = vld [vmem:[%s3 + $0x10] sm:$0xff]
      %v317 = vld [vmem:[%s3 + $0x18] sm:$0xff]
      %v318 = vld [vmem:[%s3 + $0x20] sm:$0xff]
      %v319 = vld [vmem:[%s3 + $0x28] sm:$0xff]
      %v320 = vld [vmem:[%s3 + $0x30] sm:$0xff]
      %v321 = vld [vmem:[%s3 + $0x38] sm:$0xff]
      %v322 = vld [vmem:[%s3 + $0x40] sm:$0xff]
      %v323 = vld [vmem:[%s3 + $0x48] sm:$0xff]
      %v324 = vld [vmem:[%s3 + $0x50] sm:$0xff]
      %v325 = vld [vmem:[%s3 + $0x58] sm:$0xff]
      %v326 = vld [vmem:[%s3 + $0x60] sm:$0xff]
      %v327 = vld [vmem:[%s3 + $0x68] sm:$0xff]
      %v328 = vld [vmem:[%s3 + $0x70] sm:$0xff]
      %v329 = vld [vmem:[%s3 + $0x78] sm:$0xff]
      %v330 = vld [vmem:[%s4] sm:$0x1]
      %v332 = vlaneseq
      %v333 = vshrl.u32 %v332, 7
      %v334 = vsub.s32 0, %v333
      %v335 = vrot.slane %v330, %v334
      %337 = vmatprep.subr.mxu0 0.0
      %338 = vmatpush1.msra.mxu0 %v314
      %339 = vmatprep.subr.mxu0 0.0
      %340 = vmatpush1.msra.mxu0 %v315
      %341 = vmatprep.subr.mxu0 0.0
      %342 = vmatpush1.msra.mxu0 %v316
      %343 = vmatprep.subr.mxu0 0.0
      %344 = vmatpush1.msra.mxu0 %v317
      %345 = vmatprep.subr.mxu0 0.0
      %346 = vmatpush1.msra.mxu0 %v318
      %347 = vmatprep.subr.mxu0 0.0
      %348 = vmatpush1.msra.mxu0 %v319
      %349 = vmatprep.subr.mxu0 0.0
      %350 = vmatpush1.msra.mxu0 %v320
      %351 = vmatprep.subr.mxu0 0.0
      %352 = vmatpush1.msra.mxu0 %v321
      %353 = vmatprep.subr.mxu0 0.0
      %354 = vmatpush1.msra.mxu0 %v322
      %355 = vmatprep.subr.mxu0 0.0
      %356 = vmatpush1.msra.mxu0 %v323
      %357 = vmatprep.subr.mxu0 0.0
      %358 = vmatpush1.msra.mxu0 %v324
      %359 = vmatprep.subr.mxu0 0.0
      %360 = vmatpush1.msra.mxu0 %v325
      %361 = vmatprep.subr.mxu0 0.0
      %362 = vmatpush1.msra.mxu0 %v326
      %363 = vmatprep.subr.mxu0 0.0
      %364 = vmatpush1.msra.mxu0 %v327
      %365 = vmatprep.subr.mxu0 0.0
      %366 = vmatpush1.msra.mxu0 %v328
      %367 = vmatprep.subr.mxu0 0.0
      %368 = vmatpush1.msra.mxu0 %v329
      %369 = vmatprep.subr.mxu0 0.0
      %370 = vmatpush1.msra.mxu0 0.0
      %371 = vmatprep.subr.mxu0 0.0
      %372 = vmatpush1.msra.mxu0 0.0
      %373 = vmatprep.subr.mxu0 0.0
      %374 = vmatpush1.msra.mxu0 0.0
      %375 = vmatprep.subr.mxu0 0.0
      %376 = vmatpush1.msra.mxu0 0.0
      %377 = vmatprep.subr.mxu0 0.0
      %378 = vmatpush1.msra.mxu0 0.0
      %379 = vmatprep.subr.mxu0 0.0
      %380 = vmatpush1.msra.mxu0 0.0
      %381 = vmatprep.subr.mxu0 0.0
      %382 = vmatpush1.msra.mxu0 0.0
      %383 = vmatprep.subr.mxu0 0.0
      %384 = vmatpush1.msra.mxu0 0.0
      %385 = vmatprep.subr.mxu0 0.0
      %386 = vmatpush1.msra.mxu0 0.0
      %387 = vmatprep.subr.mxu0 0.0
      %388 = vmatpush1.msra.mxu0 0.0
      %389 = vmatprep.subr.mxu0 0.0
      %390 = vmatpush1.msra.mxu0 0.0
      %391 = vmatprep.subr.mxu0 0.0
      %392 = vmatpush1.msra.mxu0 0.0
      %393 = vmatprep.subr.mxu0 0.0
      %394 = vmatpush1.msra.mxu0 0.0
      %395 = vmatprep.subr.mxu0 0.0
      %396 = vmatpush1.msra.mxu0 0.0
      %397 = vmatprep.subr.mxu0 0.0
      %398 = vmatpush1.msra.mxu0 0.0
      %399 = vmatprep.subr.mxu0 0.0
      %400 = vmatpush1.msra.mxu0 0.0
      %401 = vmatprep.mubr.f32.mxu0 0.0
      %402 = vmatmul.mubr.f32.gmra.mrb[0].mxu0 %v312
      %v403 = vpop.f32.mrb[0].mxu0
      %v404 = vadd.f32 %v335, %v403
      %v405 = vpop.f32.mrb[0].mxu0
      %406 = vmatprep.mubr.f32.mxu0 0.0
      %407 = vmatmul.mubr.f32.gmra.mrb[0].mxu0 %v313
      %v408 = vpop.f32.mrb[0].mxu0
      %v409 = vadd.f32 %v335, %v408
      %v410 = vpop.f32.mrb[0].mxu0
      %411 = vdwg.mxu0
      %412 = vst [vmem:[%s290] sm:$0xff] %v404
      %413 = vst [vmem:[%s290 + $0x8] sm:$0xff] %v409
      %s414 = smul.u32 2, %s21
      %p415 = scmp.lt.s32.totalorder %s20, 1
      %s416 = scalar_select %p415, %s20, 1
      %p417 = scmp.lt.s32.totalorder %s414, 1
      %s418 = scalar_select %p417, %s414, 1
      %s419 = smul.addr %s416, 2
      %s420 = sadd.s32 %s418, %s419
      %s421 = smul.addr %s420, 8
      %s422 = scalar_lea.vmem %s5, %s421
      // Predicated region
      $region41: #{sc_block_forward.56} parent=39 // pred_check
        %p423 = pneg %p170
      $region42: #{sc_block_forward.56} parent=39 // pred_check_branch
        %425 = sbr.rel (%p423) target = $region44
      $region43: #{sc_block_forward.56} parent=39 // pred_region
        %s426 = smul.u32 2, %s21
      $region44: #{sc_block_forward.56} parent=39 // pred_fallthru
        _
    $region40: #{sc_block_forward.56} parent=5 // pred_fallthru
      _
    %p427 = scmp.le.s32.totalorder 2, %s11
    // Predicated region
    $region45: #{sc_block_forward.56} parent=5 // pred_check
      %p428 = pneg %p427
    $region46: #{sc_block_forward.56} parent=5 // pred_check_branch
      %430 = sbr.rel (%p428) target = $region48
    $region47: #{sc_block_forward.56} parent=5 // pred_region
      %s431 = ssub.s32 %s11, 2
      // Predicated region
      $region49: #{sc_block_forward.56} parent=47 // pred_check
        %p432 = pneg %p176
      $region50: #{sc_block_forward.56} parent=47 // pred_check_branch
        %434 = sbr.rel (%p432) target = $region52
      $region51: #{sc_block_forward.56} parent=47 // pred_region
        %s435 = smul.u32 2, %s23
        %p436 = scmp.lt.s32.totalorder %s22, 1
        %s437 = scalar_select %p436, %s22, 1
        %p438 = scmp.lt.s32.totalorder %s435, 1
        %s439 = scalar_select %p438, %s435, 1
        %s440 = smul.addr %s437, 2
        %s441 = sadd.s32 %s439, %s440
        %s442 = smul.addr %s441, 8
        %s443 = scalar_lea.vmem %s5, %s442
      $region52: #{sc_block_forward.56} parent=47 // pred_fallthru
        _
    $region48: #{sc_block_forward.56} parent=5 // pred_fallthru
      _
  $region6: #{sc_block_forward.56} parent=0 // loop_footer
    %s15 = sadd.s32 1, %s11
  $region7: #{sc_block_forward.56} parent=0 // loop_footer_branch
    %10 = sbr.rel target = $region3
  $region8: #{sc_block_forward.56} parent=0 // loop_exit
    _

// kernel: sc_block_forward.57
$region0: #{sc_block_forward.57}
  #allocation0 [shape = 'u32[]', space=smem, size = 0x4, offset = 0x4, fixed_abs, tag = 'smem constant byte address 0x4 - core index']
  #allocation1 [shape = 'u32[144,128]{1,0:T(1,128)}', space=vmem, size = 0x12000, scoped, tag = 'internal scratch']
  %s0 = inlined_call_operand.vmem [shape: f32[2,16,128], index: 0, kind: input, shape index: {}]
  %s1 = inlined_call_operand.vmem [shape: f32[2,1,128], index: 1, kind: input, shape index: {}]
  %s2 = inlined_call_operand.vmem [shape: f32[2,1,128], index: 2, kind: input, shape index: {}]
  %s3 = inlined_call_operand.vmem [shape: f32[2,16,128], index: 3, kind: input, shape index: {}]
  %s4 = inlined_call_operand.vmem [shape: f32[2,16,128], index: 4, kind: output, shape index: {}]
  %s5 = sld [smem:[#allocation0]]
  $region49: #{sc_block_forward.57} parent=0
    _
  %s7 = ssub.s32 1, %s5
  %s8 = scalar_select 0, %s7, %s5
  loop: start=0, step=1, limit=4
  $region2: #{sc_block_forward.57} parent=0 // loop_pre_header
    _
  $region3: #{sc_block_forward.57} parent=0 // loop_header
    %s10 = sphi 0, %s14
    %p11 = scmp.ge.s32.totalorder %s10, 4
    %s17 = sphi 0, %s29
    %s18 = sphi 0, %s25
    %s19 = sphi 0, %s17
    %s20 = sphi 0, %s18
    %s21 = sphi 0, %s19
    %s22 = sphi 0, %s20
    %s34 = sphi 0, %s36
    %s37 = sphi 0, %s34
    %s38 = sphi 0, %s37
    %s54 = sphi 0, %s38
    %s60 = sphi 0, %s62
    %s63 = sphi 0, %s60
    %s64 = sphi 0, %s63
    %s80 = sphi 0, %s64
    %s86 = sphi 0, %s88
    %s89 = sphi 0, %s86
    %s90 = sphi 0, %s89
    %s106 = sphi 0, %s90
    %s114 = sphi 0, %s116
    %s117 = sphi 0, %s114
    %s118 = sphi 0, %s117
    %s134 = sphi 0, %s118
    %s142 = sphi 0, %s144
    %s145 = sphi 0, %s142
    %s146 = sphi 0, %s145
    %s162 = sphi 0, %s146
  $region4: #{sc_block_forward.57} parent=0 // loop_header_branch
    %13 = sbr.rel (%p11) target = $region8
  $region5: #{sc_block_forward.57} parent=0 // loop_body
    %s15 = ssub.s32 %s10, 1
    %s16 = ssub.s32 %s10, 2
    %s23 = sadd.s32 1, %s18
    %p24 = scmp.ge.s32.totalorder %s23, 1
    %s25 = scalar_select %p24, 0, %s23
    %s26 = sadd.s32 1, %s17
    %s27 = scalar_select %p24, %s26, %s17
    %p28 = scmp.ge.s32.totalorder %s27, 2
    %s29 = scalar_select %p28, 0, %s27
    %s30 = ssub.s32 %s17, %s29
    %s31 = ssub.s32 %s18, %s25
    %s32 = sor.u32 %s30, %s31
    %p33 = scmp.eq.s32.totalorder %s32, 0
    %s35 = sadd.s32 %s34, 1
    %s36 = scalar_select %p33, %s34, %s35
    %p39 = pneg %p33
    %p40 = scmp.eq.s32.totalorder %s10, 1
    %p41 = por %p39, %p40
    %p42 = scmp.ne.s32.totalorder %s34, %s37
    %p43 = scmp.eq.s32.totalorder %s10, 0
    %p44 = por %p42, %p43
    %p45 = scmp.ne.s32.totalorder %s34, %s37
    %p46 = scmp.eq.s32.totalorder %s15, 1
    %p47 = por %p45, %p46
    %p48 = scmp.ne.s32.totalorder %s37, %s38
    %p49 = scmp.eq.s32.totalorder %s15, 0
    %p50 = por %p48, %p49
    %p51 = scmp.ne.s32.totalorder %s37, %s38
    %p52 = scmp.eq.s32.totalorder %s16, 1
    %p53 = por %p51, %p52
    %p55 = scmp.ne.s32.totalorder %s38, %s54
    %p56 = scmp.eq.s32.totalorder %s16, 0
    %p57 = por %p55, %p56
    %s58 = ssub.s32 %s17, %s29
    %p59 = scmp.eq.s32.totalorder %s58, 0
    %s61 = sadd.s32 %s60, 1
    %s62 = scalar_select %p59, %s60, %s61
    %p65 = pneg %p59
    %p66 = scmp.eq.s32.totalorder %s10, 1
    %p67 = por %p65, %p66
    %p68 = scmp.ne.s32.totalorder %s60, %s63
    %p69 = scmp.eq.s32.totalorder %s10, 0
    %p70 = por %p68, %p69
    %p71 = scmp.ne.s32.totalorder %s60, %s63
    %p72 = scmp.eq.s32.totalorder %s15, 1
    %p73 = por %p71, %p72
    %p74 = scmp.ne.s32.totalorder %s63, %s64
    %p75 = scmp.eq.s32.totalorder %s15, 0
    %p76 = por %p74, %p75
    %p77 = scmp.ne.s32.totalorder %s63, %s64
    %p78 = scmp.eq.s32.totalorder %s16, 1
    %p79 = por %p77, %p78
    %p81 = scmp.ne.s32.totalorder %s64, %s80
    %p82 = scmp.eq.s32.totalorder %s16, 0
    %p83 = por %p81, %p82
    %s84 = ssub.s32 %s17, %s29
    %p85 = scmp.eq.s32.totalorder %s84, 0
    %s87 = sadd.s32 %s86, 1
    %s88 = scalar_select %p85, %s86, %s87
    %p91 = pneg %p85
    %p92 = scmp.eq.s32.totalorder %s10, 1
    %p93 = por %p91, %p92
    %p94 = scmp.ne.s32.totalorder %s86, %s89
    %p95 = scmp.eq.s32.totalorder %s10, 0
    %p96 = por %p94, %p95
    %p97 = scmp.ne.s32.totalorder %s86, %s89
    %p98 = scmp.eq.s32.totalorder %s15, 1
    %p99 = por %p97, %p98
    %p100 = scmp.ne.s32.totalorder %s89, %s90
    %p101 = scmp.eq.s32.totalorder %s15, 0
    %p102 = por %p100, %p101
    %p103 = scmp.ne.s32.totalorder %s89, %s90
    %p104 = scmp.eq.s32.totalorder %s16, 1
    %p105 = por %p103, %p104
    %p107 = scmp.ne.s32.totalorder %s90, %s106
    %p108 = scmp.eq.s32.totalorder %s16, 0
    %p109 = por %p107, %p108
    %s110 = ssub.s32 %s17, %s29
    %s111 = ssub.s32 %s18, %s25
    %s112 = sor.u32 %s110, %s111
    %p113 = scmp.eq.s32.totalorder %s112, 0
    %s115 = sadd.s32 %s114, 1
    %s116 = scalar_select %p113, %s114, %s115
    %p119 = pneg %p113
    %p120 = scmp.eq.s32.totalorder %s10, 1
    %p121 = por %p119, %p120
    %p122 = scmp.ne.s32.totalorder %s114, %s117
    %p123 = scmp.eq.s32.totalorder %s10, 0
    %p124 = por %p122, %p123
    %p125 = scmp.ne.s32.totalorder %s114, %s117
    %p126 = scmp.eq.s32.totalorder %s15, 1
    %p127 = por %p125, %p126
    %p128 = scmp.ne.s32.totalorder %s117, %s118
    %p129 = scmp.eq.s32.totalorder %s15, 0
    %p130 = por %p128, %p129
    %p131 = scmp.ne.s32.totalorder %s117, %s118
    %p132 = scmp.eq.s32.totalorder %s16, 1
    %p133 = por %p131, %p132
    %p135 = scmp.ne.s32.totalorder %s118, %s134
    %p136 = scmp.eq.s32.totalorder %s16, 0
    %p137 = por %p135, %p136
    %s138 = ssub.s32 %s17, %s29
    %s139 = ssub.s32 %s18, %s25
    %s140 = sor.u32 %s138, %s139
    %p141 = scmp.eq.s32.totalorder %s140, 0
    %s143 = sadd.s32 %s142, 1
    %s144 = scalar_select %p141, %s142, %s143
    %p147 = pneg %p141
    %p148 = scmp.eq.s32.totalorder %s10, 1
    %p149 = por %p147, %p148
    %p150 = scmp.ne.s32.totalorder %s142, %s145
    %p151 = scmp.eq.s32.totalorder %s10, 0
    %p152 = por %p150, %p151
    %p153 = scmp.ne.s32.totalorder %s142, %s145
    %p154 = scmp.eq.s32.totalorder %s15, 1
    %p155 = por %p153, %p154
    %p156 = scmp.ne.s32.totalorder %s145, %s146
    %p157 = scmp.eq.s32.totalorder %s15, 0
    %p158 = por %p156, %p157
    %p159 = scmp.ne.s32.totalorder %s145, %s146
    %p160 = scmp.eq.s32.totalorder %s16, 1
    %p161 = por %p159, %p160
    %p163 = scmp.ne.s32.totalorder %s146, %s162
    %p164 = scmp.eq.s32.totalorder %s16, 0
    %p165 = por %p163, %p164
    %p166 = scmp.le.s32.totalorder 1, %s10
    %p167 = scmp.lt.s32.totalorder %s10, 3
    %p168 = pnand %p166, %p167
    %p169 = pneg %p168
    // Predicated region
    $region9: #{sc_block_forward.57} parent=5 // pred_check
      _
    $region10: #{sc_block_forward.57} parent=5 // pred_check_branch
      %171 = sbr.rel (%p168) target = $region12
    $region11: #{sc_block_forward.57} parent=5 // pred_region
      %s172 = ssub.s32 %s10, 1
    $region12: #{sc_block_forward.57} parent=5 // pred_fallthru
      _
    %p173 = scmp.lt.s32.totalorder %s10, 2
    // Predicated region
    $region13: #{sc_block_forward.57} parent=5 // pred_check
      %p174 = pneg %p173
    $region14: #{sc_block_forward.57} parent=5 // pred_check_branch
      %176 = sbr.rel (%p174) target = $region16
    $region15: #{sc_block_forward.57} parent=5 // pred_region
      // Predicated region
      $region17: #{sc_block_forward.57} parent=15 // pred_check
        %p177 = pneg %p44
      $region18: #{sc_block_forward.57} parent=15 // pred_check_branch
        %179 = sbr.rel (%p177) target = $region20
      $region19: #{sc_block_forward.57} parent=15 // pred_region
        %s180 = smul.u32 2, %s18
        %p181 = scmp.lt.s32.totalorder %s17, 1
        %s182 = scalar_select %p181, %s17, 1
        %p183 = scmp.lt.s32.totalorder %s180, 1
        %s184 = scalar_select %p183, %s180, 1
        %s185 = smul.addr %s182, 2
        %s186 = sadd.s32 %s184, %s185
        %s187 = smul.addr %s186, 8
        %s188 = scalar_lea.vmem %s0, %s187
        %s189 = smul.u32 2, %s18
      $region20: #{sc_block_forward.57} parent=15 // pred_fallthru
        _
      // Predicated region
      $region21: #{sc_block_forward.57} parent=15 // pred_check
        %p190 = pneg %p70
      $region22: #{sc_block_forward.57} parent=15 // pred_check_branch
        %192 = sbr.rel (%p190) target = $region24
      $region23: #{sc_block_forward.57} parent=15 // pred_region
        %p193 = scmp.lt.s32.totalorder %s17, 1
        %s194 = scalar_select %p193, %s17, 1
        %s195 = scalar_lea.vmem %s1, %s194
      $region24: #{sc_block_forward.57} parent=15 // pred_fallthru
        _
      // Predicated region
      $region25: #{sc_block_forward.57} parent=15 // pred_check
        %p196 = pneg %p96
      $region26: #{sc_block_forward.57} parent=15 // pred_check_branch
        %198 = sbr.rel (%p196) target = $region28
      $region27: #{sc_block_forward.57} parent=15 // pred_region
        %p199 = scmp.lt.s32.totalorder %s17, 1
        %s200 = scalar_select %p199, %s17, 1
        %s201 = scalar_lea.vmem %s2, %s200
      $region28: #{sc_block_forward.57} parent=15 // pred_fallthru
        _
      // Predicated region
      $region29: #{sc_block_forward.57} parent=15 // pred_check
        %p202 = pneg %p124
      $region30: #{sc_block_forward.57} parent=15 // pred_check_branch
        %204 = sbr.rel (%p202) target = $region32
      $region31: #{sc_block_forward.57} parent=15 // pred_region
        %s205 = smul.u32 2, %s18
        %p206 = scmp.lt.s32.totalorder %s17, 1
        %s207 = scalar_select %p206, %s17, 1
        %p208 = scmp.lt.s32.totalorder %s205, 1
        %s209 = scalar_select %p208, %s205, 1
        %s210 = smul.addr %s207, 2
        %s211 = sadd.s32 %s209, %s210
        %s212 = smul.addr %s211, 8
        %s213 = scalar_lea.vmem %s3, %s212
        %s214 = smul.u32 2, %s18
      $region32: #{sc_block_forward.57} parent=15 // pred_fallthru
        _
    $region16: #{sc_block_forward.57} parent=5 // pred_fallthru
      _
    %p215 = scmp.le.s32.totalorder 1, %s10
    %p216 = scmp.lt.s32.totalorder %s10, 3
    %p217 = pnand %p215, %p216
    %p218 = pneg %p217
    // Predicated region
    $region33: #{sc_block_forward.57} parent=5 // pred_check
      _
    $region34: #{sc_block_forward.57} parent=5 // pred_check_branch
      %220 = sbr.rel (%p217) target = $region36
    $region35: #{sc_block_forward.57} parent=5 // pred_region
      %s221 = ssub.s32 %s10, 1
      %s222 = smul.u32 2, %s20
      %p223 = scmp.lt.s32.totalorder %s19, 1
      %s224 = scalar_select %p223, %s19, 1
      %p225 = scmp.lt.s32.totalorder %s222, 1
      %s226 = scalar_select %p225, %s222, 1
      %s227 = smul.addr %s224, 2
      %s228 = sadd.s32 %s226, %s227
      %s229 = smul.addr %s228, 8
      %s230 = scalar_lea.vmem %s0, %s229
      %p231 = pneg %p50
      %p232 = pneg %p47
      %p233 = scmp.lt.s32.totalorder %s19, 1
      %s234 = scalar_select %p233, %s19, 1
      %s235 = scalar_lea.vmem %s1, %s234
      %p236 = pneg %p76
      %p237 = pneg %p73
      %p238 = scmp.lt.s32.totalorder %s19, 1
      %s239 = scalar_select %p238, %s19, 1
      %s240 = scalar_lea.vmem %s2, %s239
      %p241 = pneg %p102
      %p242 = pneg %p99
      %s243 = smul.u32 2, %s20
      %p244 = scmp.lt.s32.totalorder %s19, 1
      %s245 = scalar_select %p244, %s19, 1
      %p246 = scmp.lt.s32.totalorder %s243, 1
      %s247 = scalar_select %p246, %s243, 1
      %s248 = smul.addr %s245, 2
      %s249 = sadd.s32 %s247, %s248
      %s250 = smul.addr %s249, 8
      %s251 = scalar_lea.vmem %s3, %s250
      %p252 = pneg %p130
      %p253 = pneg %p127
      %p254 = pneg %p158
      %p255 = pneg %p155
      %s256 = smul.u32 2, %s20
      %p257 = scmp.lt.s32.totalorder %s19, 1
      %s258 = scalar_select %p257, %s19, 1
      %p259 = scmp.lt.s32.totalorder %s256, 1
      %s260 = scalar_select %p259, %s256, 1
      %s261 = smul.addr %s258, 2
      %s262 = sadd.s32 %s260, %s261
      %s263 = smul.addr %s262, 8
      %s264 = scalar_lea.vmem %s4, %s263
      %s265 = smul.u32 2, %s20
      %p266 = scmp.lt.s32.totalorder %s19, 1
      %s267 = scalar_select %p266, %s19, 1
      %p268 = scmp.lt.s32.totalorder %s265, 1
      %s269 = scalar_select %p268, %s265, 1
      %s270 = smul.addr %s267, 2
      %s271 = sadd.s32 %s269, %s270
      %s272 = smul.addr %s271, 8
      %s273 = scalar_lea.vmem %s0, %s272
      %s274 = smul.u32 2, %s20
      %p275 = scmp.lt.s32.totalorder %s19, 1
      %s276 = scalar_select %p275, %s19, 1
      %s277 = scalar_lea.vmem %s1, %s276
      %p278 = scmp.lt.s32.totalorder %s19, 1
      %s279 = scalar_select %p278, %s19, 1
      %s280 = scalar_lea.vmem %s2, %s279
      %s281 = smul.u32 2, %s20
      %p282 = scmp.lt.s32.totalorder %s19, 1
      %s283 = scalar_select %p282, %s19, 1
      %p284 = scmp.lt.s32.totalorder %s281, 1
      %s285 = scalar_select %p284, %s281, 1
      %s286 = smul.addr %s283, 2
      %s287 = sadd.s32 %s285, %s286
      %s288 = smul.addr %s287, 8
      %s289 = scalar_lea.vmem %s3, %s288
      %s290 = smul.u32 2, %s20
      %s291 = smul.u32 2, %s20
      %p292 = scmp.lt.s32.totalorder %s19, 1
      %s293 = scalar_select %p292, %s19, 1
      %p294 = scmp.lt.s32.totalorder %s291, 1
      %s295 = scalar_select %p294, %s291, 1
      %s296 = smul.addr %s293, 2
      %s297 = sadd.s32 %s295, %s296
      %s298 = smul.addr %s297, 8
      %s299 = scalar_lea.vmem %s4, %s298
      %s300 = smul.u32 2, %s20
      %v301 = vld [vmem:[%s273] sm:$0xff]
      %v302 = vld [vmem:[%s273 + $0x8] sm:$0xff]
      %v303 = vld [vmem:[%s277] sm:$0x1]
      %v305 = vlaneseq
      %v306 = vshrl.u32 %v305, 7
      %v307 = vsub.s32 0, %v306
      %v308 = vrot.slane %v303, %v307
      %v310 = vmul.f32 %v301, %v308
      %v311 = vmul.f32 %v302, %v308
      %v312 = vld [vmem:[%s280] sm:$0x1]
      %v314 = vlaneseq
      %v315 = vshrl.u32 %v314, 7
      %v316 = vsub.s32 0, %v315
      %v317 = vrot.slane %v312, %v316
      %v319 = vadd.f32 %v310, %v317
      %v320 = vadd.f32 %v311, %v317
      %v321 = vld [vmem:[%s289] sm:$0xff]
      %v322 = vld [vmem:[%s289 + $0x8] sm:$0xff]
      %v323 = vadd.f32 %v319, %v321
      %v324 = vadd.f32 %v320, %v322
      %v325 = vmax.f32 %v323, 0.0
      %v326 = vmax.f32 %v324, 0.0
      %327 = vst [vmem:[%s299] sm:$0xff] %v325
      %328 = vst [vmem:[%s299 + $0x8] sm:$0xff] %v326
      %s329 = smul.u32 2, %s20
      %p330 = scmp.lt.s32.totalorder %s19, 1
      %s331 = scalar_select %p330, %s19, 1
      %p332 = scmp.lt.s32.totalorder %s329, 1
      %s333 = scalar_select %p332, %s329, 1
      %s334 = smul.addr %s331, 2
      %s335 = sadd.s32 %s333, %s334
      %s336 = smul.addr %s335, 8
      %s337 = scalar_lea.vmem %s4, %s336
      // Predicated region
      $region37: #{sc_block_forward.57} parent=35 // pred_check
        %p338 = pneg %p155
      $region38: #{sc_block_forward.57} parent=35 // pred_check_branch
        %340 = sbr.rel (%p338) target = $region40
      $region39: #{sc_block_forward.57} parent=35 // pred_region
        %s341 = smul.u32 2, %s20
      $region40: #{sc_block_forward.57} parent=35 // pred_fallthru
        _
    $region36: #{sc_block_forward.57} parent=5 // pred_fallthru
      _
    %p342 = scmp.le.s32.totalorder 2, %s10
    // Predicated region
    $region41: #{sc_block_forward.57} parent=5 // pred_check
      %p343 = pneg %p342
    $region42: #{sc_block_forward.57} parent=5 // pred_check_branch
      %345 = sbr.rel (%p343) target = $region44
    $region43: #{sc_block_forward.57} parent=5 // pred_region
      %s346 = ssub.s32 %s10, 2
      // Predicated region
      $region45: #{sc_block_forward.57} parent=43 // pred_check
        %p347 = pneg %p161
      $region46: #{sc_block_forward.57} parent=43 // pred_check_branch
        %349 = sbr.rel (%p347) target = $region48
      $region47: #{sc_block_forward.57} parent=43 // pred_region
        %s350 = smul.u32 2, %s22
        %p351 = scmp.lt.s32.totalorder %s21, 1
        %s352 = scalar_select %p351, %s21, 1
        %p353 = scmp.lt.s32.totalorder %s350, 1
        %s354 = scalar_select %p353, %s350, 1
        %s355 = smul.addr %s352, 2
        %s356 = sadd.s32 %s354, %s355
        %s357 = smul.addr %s356, 8
        %s358 = scalar_lea.vmem %s4, %s357
      $region48: #{sc_block_forward.57} parent=43 // pred_fallthru
        _
    $region44: #{sc_block_forward.57} parent=5 // pred_fallthru
      _
  $region6: #{sc_block_forward.57} parent=0 // loop_footer
    %s14 = sadd.s32 1, %s10
  $region7: #{sc_block_forward.57} parent=0 // loop_footer_branch
    %9 = sbr.rel target = $region3
  $region8: #{sc_block_forward.57} parent=0 // loop_exit
    _

// kernel: sc_block_forward.73
$region0: #{sc_block_forward.73}
  #allocation0 [shape = 'u32[]', space=smem, size = 0x4, offset = 0x4, fixed_abs, tag = 'smem constant byte address 0x4 - core index']
  #allocation1 [shape = 'u32[144,128]{1,0:T(1,128)}', space=vmem, size = 0x12000, scoped, tag = 'internal scratch']
  %s0 = inlined_call_operand.vmem [shape: f32[2,16,128], index: 0, kind: input, shape index: {}, may-alias: {0,1}]
  %s1 = inlined_call_operand.vmem [shape: f32[2,16,128], index: 1, kind: input, shape index: {}, may-alias: {0,1}]
  %s2 = inlined_call_operand.vmem [shape: f32[2,1,16], index: 2, kind: input, shape index: {}]
  %s3 = inlined_call_operand.vmem [shape: f32[2,16,16], index: 3, kind: output, shape index: {}]
  %s4 = sld [smem:[#allocation0]]
  $region45: #{sc_block_forward.73} parent=0
    _
  %s6 = ssub.s32 1, %s4
  %s7 = scalar_select 0, %s6, %s4
  loop: start=0, step=1, limit=4
  $region2: #{sc_block_forward.73} parent=0 // loop_pre_header
    _
  $region3: #{sc_block_forward.73} parent=0 // loop_header
    %s9 = sphi 0, %s13
    %p10 = scmp.ge.s32.totalorder %s9, 4
    %s16 = sphi 0, %s28
    %s17 = sphi 0, %s24
    %s18 = sphi 0, %s16
    %s19 = sphi 0, %s17
    %s20 = sphi 0, %s18
    %s21 = sphi 0, %s19
    %s33 = sphi 0, %s35
    %s36 = sphi 0, %s33
    %s37 = sphi 0, %s36
    %s53 = sphi 0, %s37
    %s59 = sphi 0, %s61
    %s62 = sphi 0, %s59
    %s63 = sphi 0, %s62
    %s79 = sphi 0, %s63
    %s85 = sphi 0, %s87
    %s88 = sphi 0, %s85
    %s89 = sphi 0, %s88
    %s105 = sphi 0, %s89
    %s113 = sphi 0, %s115
    %s116 = sphi 0, %s113
    %s117 = sphi 0, %s116
    %s133 = sphi 0, %s117
  $region4: #{sc_block_forward.73} parent=0 // loop_header_branch
    %12 = sbr.rel (%p10) target = $region8
  $region5: #{sc_block_forward.73} parent=0 // loop_body
    %s14 = ssub.s32 %s9, 1
    %s15 = ssub.s32 %s9, 2
    %s22 = sadd.s32 1, %s17
    %p23 = scmp.ge.s32.totalorder %s22, 1
    %s24 = scalar_select %p23, 0, %s22
    %s25 = sadd.s32 1, %s16
    %s26 = scalar_select %p23, %s25, %s16
    %p27 = scmp.ge.s32.totalorder %s26, 2
    %s28 = scalar_select %p27, 0, %s26
    %s29 = ssub.s32 %s16, %s28
    %s30 = ssub.s32 %s17, %s24
    %s31 = sor.u32 %s29, %s30
    %p32 = scmp.eq.s32.totalorder %s31, 0
    %s34 = sadd.s32 %s33, 1
    %s35 = scalar_select %p32, %s33, %s34
    %p38 = pneg %p32
    %p39 = scmp.eq.s32.totalorder %s9, 1
    %p40 = por %p38, %p39
    %p41 = scmp.ne.s32.totalorder %s33, %s36
    %p42 = scmp.eq.s32.totalorder %s9, 0
    %p43 = por %p41, %p42
    %p44 = scmp.ne.s32.totalorder %s33, %s36
    %p45 = scmp.eq.s32.totalorder %s14, 1
    %p46 = por %p44, %p45
    %p47 = scmp.ne.s32.totalorder %s36, %s37
    %p48 = scmp.eq.s32.totalorder %s14, 0
    %p49 = por %p47, %p48
    %p50 = scmp.ne.s32.totalorder %s36, %s37
    %p51 = scmp.eq.s32.totalorder %s15, 1
    %p52 = por %p50, %p51
    %p54 = scmp.ne.s32.totalorder %s37, %s53
    %p55 = scmp.eq.s32.totalorder %s15, 0
    %p56 = por %p54, %p55
    %s57 = ssub.s32 %s16, %s28
    %p58 = scmp.eq.s32.totalorder %s57, 0
    %s60 = sadd.s32 %s59, 1
    %s61 = scalar_select %p58, %s59, %s60
    %p64 = pneg %p58
    %p65 = scmp.eq.s32.totalorder %s9, 1
    %p66 = por %p64, %p65
    %p67 = scmp.ne.s32.totalorder %s59, %s62
    %p68 = scmp.eq.s32.totalorder %s9, 0
    %p69 = por %p67, %p68
    %p70 = scmp.ne.s32.totalorder %s59, %s62
    %p71 = scmp.eq.s32.totalorder %s14, 1
    %p72 = por %p70, %p71
    %p73 = scmp.ne.s32.totalorder %s62, %s63
    %p74 = scmp.eq.s32.totalorder %s14, 0
    %p75 = por %p73, %p74
    %p76 = scmp.ne.s32.totalorder %s62, %s63
    %p77 = scmp.eq.s32.totalorder %s15, 1
    %p78 = por %p76, %p77
    %p80 = scmp.ne.s32.totalorder %s63, %s79
    %p81 = scmp.eq.s32.totalorder %s15, 0
    %p82 = por %p80, %p81
    %s83 = ssub.s32 %s16, %s28
    %p84 = scmp.eq.s32.totalorder %s83, 0
    %s86 = sadd.s32 %s85, 1
    %s87 = scalar_select %p84, %s85, %s86
    %p90 = pneg %p84
    %p91 = scmp.eq.s32.totalorder %s9, 1
    %p92 = por %p90, %p91
    %p93 = scmp.ne.s32.totalorder %s85, %s88
    %p94 = scmp.eq.s32.totalorder %s9, 0
    %p95 = por %p93, %p94
    %p96 = scmp.ne.s32.totalorder %s85, %s88
    %p97 = scmp.eq.s32.totalorder %s14, 1
    %p98 = por %p96, %p97
    %p99 = scmp.ne.s32.totalorder %s88, %s89
    %p100 = scmp.eq.s32.totalorder %s14, 0
    %p101 = por %p99, %p100
    %p102 = scmp.ne.s32.totalorder %s88, %s89
    %p103 = scmp.eq.s32.totalorder %s15, 1
    %p104 = por %p102, %p103
    %p106 = scmp.ne.s32.totalorder %s89, %s105
    %p107 = scmp.eq.s32.totalorder %s15, 0
    %p108 = por %p106, %p107
    %s109 = ssub.s32 %s16, %s28
    %s110 = ssub.s32 %s17, %s24
    %s111 = sor.u32 %s109, %s110
    %p112 = scmp.eq.s32.totalorder %s111, 0
    %s114 = sadd.s32 %s113, 1
    %s115 = scalar_select %p112, %s113, %s114
    %p118 = pneg %p112
    %p119 = scmp.eq.s32.totalorder %s9, 1
    %p120 = por %p118, %p119
    %p121 = scmp.ne.s32.totalorder %s113, %s116
    %p122 = scmp.eq.s32.totalorder %s9, 0
    %p123 = por %p121, %p122
    %p124 = scmp.ne.s32.totalorder %s113, %s116
    %p125 = scmp.eq.s32.totalorder %s14, 1
    %p126 = por %p124, %p125
    %p127 = scmp.ne.s32.totalorder %s116, %s117
    %p128 = scmp.eq.s32.totalorder %s14, 0
    %p129 = por %p127, %p128
    %p130 = scmp.ne.s32.totalorder %s116, %s117
    %p131 = scmp.eq.s32.totalorder %s15, 1
    %p132 = por %p130, %p131
    %p134 = scmp.ne.s32.totalorder %s117, %s133
    %p135 = scmp.eq.s32.totalorder %s15, 0
    %p136 = por %p134, %p135
    %p137 = scmp.le.s32.totalorder 1, %s9
    %p138 = scmp.lt.s32.totalorder %s9, 3
    %p139 = pnand %p137, %p138
    %p140 = pneg %p139
    // Predicated region
    $region9: #{sc_block_forward.73} parent=5 // pred_check
      _
    $region10: #{sc_block_forward.73} parent=5 // pred_check_branch
      %142 = sbr.rel (%p139) target = $region12
    $region11: #{sc_block_forward.73} parent=5 // pred_region
      %s143 = ssub.s32 %s9, 1
    $region12: #{sc_block_forward.73} parent=5 // pred_fallthru
      _
    %p144 = scmp.lt.s32.totalorder %s9, 2
    // Predicated region
    $region13: #{sc_block_forward.73} parent=5 // pred_check
      %p145 = pneg %p144
    $region14: #{sc_block_forward.73} parent=5 // pred_check_branch
      %147 = sbr.rel (%p145) target = $region16
    $region15: #{sc_block_forward.73} parent=5 // pred_region
      // Predicated region
      $region17: #{sc_block_forward.73} parent=15 // pred_check
        %p148 = pneg %p43
      $region18: #{sc_block_forward.73} parent=15 // pred_check_branch
        %150 = sbr.rel (%p148) target = $region20
      $region19: #{sc_block_forward.73} parent=15 // pred_region
        %s151 = smul.u32 2, %s17
        %p152 = scmp.lt.s32.totalorder %s16, 1
        %s153 = scalar_select %p152, %s16, 1
        %p154 = scmp.lt.s32.totalorder %s151, 1
        %s155 = scalar_select %p154, %s151, 1
        %s156 = smul.addr %s153, 2
        %s157 = sadd.s32 %s155, %s156
        %s158 = smul.addr %s157, 8
        %s159 = scalar_lea.vmem %s0, %s158
        %s160 = smul.u32 2, %s17
      $region20: #{sc_block_forward.73} parent=15 // pred_fallthru
        _
      // Predicated region
      $region21: #{sc_block_forward.73} parent=15 // pred_check
        %p161 = pneg %p69
      $region22: #{sc_block_forward.73} parent=15 // pred_check_branch
        %163 = sbr.rel (%p161) target = $region24
      $region23: #{sc_block_forward.73} parent=15 // pred_region
        %p164 = scmp.lt.s32.totalorder %s16, 1
        %s165 = scalar_select %p164, %s16, 1
        %s166 = smul.addr %s165, 2
        %s167 = smul.addr %s166, 8
        %s168 = scalar_lea.vmem %s1, %s167
      $region24: #{sc_block_forward.73} parent=15 // pred_fallthru
        _
      // Predicated region
      $region25: #{sc_block_forward.73} parent=15 // pred_check
        %p169 = pneg %p95
      $region26: #{sc_block_forward.73} parent=15 // pred_check_branch
        %171 = sbr.rel (%p169) target = $region28
      $region27: #{sc_block_forward.73} parent=15 // pred_region
        %p172 = scmp.lt.s32.totalorder %s16, 1
        %s173 = scalar_select %p172, %s16, 1
        %s174 = scalar_lea.vmem %s2, %s173
      $region28: #{sc_block_forward.73} parent=15 // pred_fallthru
        _
    $region16: #{sc_block_forward.73} parent=5 // pred_fallthru
      _
    %p175 = scmp.le.s32.totalorder 1, %s9
    %p176 = scmp.lt.s32.totalorder %s9, 3
    %p177 = pnand %p175, %p176
    %p178 = pneg %p177
    // Predicated region
    $region29: #{sc_block_forward.73} parent=5 // pred_check
      _
    $region30: #{sc_block_forward.73} parent=5 // pred_check_branch
      %180 = sbr.rel (%p177) target = $region32
    $region31: #{sc_block_forward.73} parent=5 // pred_region
      %s181 = ssub.s32 %s9, 1
      %s182 = smul.u32 2, %s19
      %p183 = scmp.lt.s32.totalorder %s18, 1
      %s184 = scalar_select %p183, %s18, 1
      %p185 = scmp.lt.s32.totalorder %s182, 1
      %s186 = scalar_select %p185, %s182, 1
      %s187 = smul.addr %s184, 2
      %s188 = sadd.s32 %s186, %s187
      %s189 = smul.addr %s188, 8
      %s190 = scalar_lea.vmem %s0, %s189
      %p191 = pneg %p49
      %p192 = pneg %p46
      %p193 = scmp.lt.s32.totalorder %s18, 1
      %s194 = scalar_select %p193, %s18, 1
      %s195 = smul.addr %s194, 2
      %s196 = smul.addr %s195, 8
      %s197 = scalar_lea.vmem %s1, %s196
      %p198 = pneg %p75
      %p199 = pneg %p72
      %p200 = scmp.lt.s32.totalorder %s18, 1
      %s201 = scalar_select %p200, %s18, 1
      %s202 = scalar_lea.vmem %s2, %s201
      %p203 = pneg %p101
      %p204 = pneg %p98
      %p205 = pneg %p129
      %p206 = pneg %p126
      %s207 = smul.u32 2, %s19
      %p208 = scmp.lt.s32.totalorder %s18, 1
      %s209 = scalar_select %p208, %s18, 1
      %p210 = scmp.lt.s32.totalorder %s207, 1
      %s211 = scalar_select %p210, %s207, 1
      %s212 = smul.addr %s209, 2
      %s213 = sadd.s32 %s211, %s212
      %s214 = smul.addr %s213, 8
      %s215 = scalar_lea.vmem %s3, %s214
      %s216 = smul.u32 2, %s19
      %p217 = scmp.lt.s32.totalorder %s18, 1
      %s218 = scalar_select %p217, %s18, 1
      %p219 = scmp.lt.s32.totalorder %s216, 1
      %s220 = scalar_select %p219, %s216, 1
      %s221 = smul.addr %s218, 2
      %s222 = sadd.s32 %s220, %s221
      %s223 = smul.addr %s222, 8
      %s224 = scalar_lea.vmem %s0, %s223
      %s225 = smul.u32 2, %s19
      %p226 = scmp.lt.s32.totalorder %s18, 1
      %s227 = scalar_select %p226, %s18, 1
      %s228 = smul.addr %s227, 2
      %s229 = smul.addr %s228, 8
      %s230 = scalar_lea.vmem %s1, %s229
      %p231 = scmp.lt.s32.totalorder %s18, 1
      %s232 = scalar_select %p231, %s18, 1
      %s233 = scalar_lea.vmem %s2, %s232
      %s234 = smul.u32 2, %s19
      %p235 = scmp.lt.s32.totalorder %s18, 1
      %s236 = scalar_select %p235, %s18, 1
      %p237 = scmp.lt.s32.totalorder %s234, 1
      %s238 = scalar_select %p237, %s234, 1
      %s239 = smul.addr %s236, 2
      %s240 = sadd.s32 %s238, %s239
      %s241 = smul.addr %s240, 8
      %s242 = scalar_lea.vmem %s3, %s241
      %s243 = smul.u32 2, %s19
      %v244 = vld [vmem:[%s224] sm:$0xff]
      %v245 = vld [vmem:[%s224 + $0x8] sm:$0xff]
      %v246 = vld [vmem:[%s230] sm:$0xff]
      %v247 = vld [vmem:[%s230 + $0x8] sm:$0xff]
      %248 = vmatprep.subr.mxu0 0.0
      %249 = vmatpush1.xpose.msra.mxu0 %v246
      %250 = vmatprep.subr.mxu0 0.0
      %251 = vmatpush1.xpose.msra.mxu0 %v247
      %252 = vmatprep.subr.mxu0 0.0
      %253 = vmatpush1.xpose.msra.mxu0 0.0
      %254 = vmatprep.subr.mxu0 0.0
      %255 = vmatpush1.xpose.msra.mxu0 0.0
      %256 = vmatprep.subr.mxu0 0.0
      %257 = vmatpush1.xpose.msra.mxu0 0.0
      %258 = vmatprep.subr.mxu0 0.0
      %259 = vmatpush1.xpose.msra.mxu0 0.0
      %260 = vmatprep.subr.mxu0 0.0
      %261 = vmatpush1.xpose.msra.mxu0 0.0
      %262 = vmatprep.subr.mxu0 0.0
      %263 = vmatpush1.xpose.msra.mxu0 0.0
      %264 = vmatprep.subr.mxu0 0.0
      %265 = vmatpush1.xpose.msra.mxu0 0.0
      %266 = vmatprep.subr.mxu0 0.0
      %267 = vmatpush1.xpose.msra.mxu0 0.0
      %268 = vmatprep.subr.mxu0 0.0
      %269 = vmatpush1.xpose.msra.mxu0 0.0
      %270 = vmatprep.subr.mxu0 0.0
      %271 = vmatpush1.xpose.msra.mxu0 0.0
      %272 = vmatprep.subr.mxu0 0.0
      %273 = vmatpush1.xpose.msra.mxu0 0.0
      %274 = vmatprep.subr.mxu0 0.0
      %275 = vmatpush1.xpose.msra.mxu0 0.0
      %276 = vmatprep.subr.mxu0 0.0
      %277 = vmatpush1.xpose.msra.mxu0 0.0
      %278 = vmatprep.subr.mxu0 0.0
      %279 = vmatpush1.xpose.msra.mxu0 0.0
      %280 = vmatprep.subr.mxu0 0.0
      %281 = vmatpush1.xpose.msra.mxu0 0.0
      %282 = vmatprep.subr.mxu0 0.0
      %283 = vmatpush1.xpose.msra.mxu0 0.0
      %284 = vmatprep.subr.mxu0 0.0
      %285 = vmatpush1.xpose.msra.mxu0 0.0
      %286 = vmatprep.subr.mxu0 0.0
      %287 = vmatpush1.xpose.msra.mxu0 0.0
      %288 = vmatprep.subr.mxu0 0.0
      %289 = vmatpush1.xpose.msra.mxu0 0.0
      %290 = vmatprep.subr.mxu0 0.0
      %291 = vmatpush1.xpose.msra.mxu0 0.0
      %292 = vmatprep.subr.mxu0 0.0
      %293 = vmatpush1.xpose.msra.mxu0 0.0
      %294 = vmatprep.subr.mxu0 0.0
      %295 = vmatpush1.xpose.msra.mxu0 0.0
      %296 = vmatprep.subr.mxu0 0.0
      %297 = vmatpush1.xpose.msra.mxu0 0.0
      %298 = vmatprep.subr.mxu0 0.0
      %299 = vmatpush1.xpose.msra.mxu0 0.0
      %300 = vmatprep.subr.mxu0 0.0
      %301 = vmatpush1.xpose.msra.mxu0 0.0
      %302 = vmatprep.subr.mxu0 0.0
      %303 = vmatpush1.xpose.msra.mxu0 0.0
      %304 = vmatprep.subr.mxu0 0.0
      %305 = vmatpush1.xpose.msra.mxu0 0.0
      %306 = vmatprep.subr.mxu0 0.0
      %307 = vmatpush1.xpose.msra.mxu0 0.0
      %308 = vmatprep.subr.mxu0 0.0
      %309 = vmatpush1.xpose.msra.mxu0 0.0
      %310 = vmatprep.subr.mxu0 0.0
      %311 = vmatpush1.xpose.msra.mxu0 0.0
      %312 = vmatprep.mubr.f32.mxu0 0.0
      %313 = vmatmul.mubr.f32.gmra.mrb[0].mxu0 %v244
      %v314 = vpop.f32.mrb[0].mxu0
      %v315 = vadd.f32 0.0, %v314
      %v316 = vpop.f32.mrb[0].mxu0
      %317 = vmatprep.mubr.f32.mxu0 0.0
      %318 = vmatmul.mubr.f32.gmra.mrb[0].mxu0 %v245
      %v319 = vpop.f32.mrb[0].mxu0
      %v320 = vadd.f32 0.0, %v319
      %v321 = vpop.f32.mrb[0].mxu0
      %322 = vdwg.mxu0
      %v323 = vmul.f32 %v244, %v244
      %v324 = vmul.f32 %v245, %v245
      %325 = vadd.xlane.f32.xlu0 %v323
      %v326 = vpop.xlane.xlu0 %325
      %327 = vadd.xlane.f32.xlu0 %v324
      %v328 = vpop.xlane.xlu0 %327
      %v329 = vmul.f32 %v315, 2.0
      %v330 = vmul.f32 %v320, 2.0
      %v331 = vsub.f32 %v329, %v326
      %v332 = vsub.f32 %v330, %v328
      %v333 = vld [vmem:[%s233] sm:$0x1]
      %v335 = vlaneseq
      %v336 = vshrl.u32 %v335, 7
      %v337 = vsub.s32 0, %v336
      %v338 = vrot.slane %v333, %v337
      %v340 = vsub.f32 %v331, %v338
      %v341 = vsub.f32 %v332, %v338
      %vm342 = vcmask 130048
      %343 = vst.msk [vmem:[%s242] sm:$0xff] %vm342, %v340
      %344 = vst.msk [vmem:[%s242 + $0x8] sm:$0xff] %vm342, %v341
      %s345 = smul.u32 2, %s19
      %p346 = scmp.lt.s32.totalorder %s18, 1
      %s347 = scalar_select %p346, %s18, 1
      %p348 = scmp.lt.s32.totalorder %s345, 1
      %s349 = scalar_select %p348, %s345, 1
      %s350 = smul.addr %s347, 2
      %s351 = sadd.s32 %s349, %s350
      %s352 = smul.addr %s351, 8
      %s353 = scalar_lea.vmem %s3, %s352
      // Predicated region
      $region33: #{sc_block_forward.73} parent=31 // pred_check
        %p354 = pneg %p126
      $region34: #{sc_block_forward.73} parent=31 // pred_check_branch
        %356 = sbr.rel (%p354) target = $region36
      $region35: #{sc_block_forward.73} parent=31 // pred_region
        %s357 = smul.u32 2, %s19
      $region36: #{sc_block_forward.73} parent=31 // pred_fallthru
        _
    $region32: #{sc_block_forward.73} parent=5 // pred_fallthru
      _
    %p358 = scmp.le.s32.totalorder 2, %s9
    // Predicated region
    $region37: #{sc_block_forward.73} parent=5 // pred_check
      %p359 = pneg %p358
    $region38: #{sc_block_forward.73} parent=5 // pred_check_branch
      %361 = sbr.rel (%p359) target = $region40
    $region39: #{sc_block_forward.73} parent=5 // pred_region
      %s362 = ssub.s32 %s9, 2
      // Predicated region
      $region41: #{sc_block_forward.73} parent=39 // pred_check
        %p363 = pneg %p132
      $region42: #{sc_block_forward.73} parent=39 // pred_check_branch
        %365 = sbr.rel (%p363) target = $region44
      $region43: #{sc_block_forward.73} parent=39 // pred_region
        %s366 = smul.u32 2, %s21
        %p367 = scmp.lt.s32.totalorder %s20, 1
        %s368 = scalar_select %p367, %s20, 1
        %p369 = scmp.lt.s32.totalorder %s366, 1
        %s370 = scalar_select %p369, %s366, 1
        %s371 = smul.addr %s368, 2
        %s372 = sadd.s32 %s370, %s371
        %s373 = smul.addr %s372, 8
        %s374 = scalar_lea.vmem %s3, %s373
      $region44: #{sc_block_forward.73} parent=39 // pred_fallthru
        _
    $region40: #{sc_block_forward.73} parent=5 // pred_fallthru
      _
  $region6: #{sc_block_forward.73} parent=0 // loop_footer
    %s13 = sadd.s32 1, %s9
  $region7: #{sc_block_forward.73} parent=0 // loop_footer_branch
    %8 = sbr.rel target = $region3
  $region8: #{sc_block_forward.73} parent=0 // loop_exit
    _

// kernel: sc_block_forward.74
$region0: #{sc_block_forward.74}
  #allocation0 [shape = 'u32[]', space=smem, size = 0x4, offset = 0x4, fixed_abs, tag = 'smem constant byte address 0x4 - core index']
  #allocation1 [shape = 'u32[144,128]{1,0:T(1,128)}', space=vmem, size = 0x12000, scoped, tag = 'internal scratch']
  %s0 = inlined_call_operand.vmem [shape: f32[2,48,768], index: 0, kind: input, shape index: {}]
  %s1 = inlined_call_operand.vmem [shape: f32[768,128], index: 1, kind: input, shape index: {}]
  %s2 = inlined_call_operand.vmem [shape: f32[1,1,128], index: 2, kind: input, shape index: {}]
  %s3 = inlined_call_operand.vmem [shape: f32[2,48,128], index: 3, kind: output, shape index: {}]
  %s4 = sld [smem:[#allocation0]]
  $region45: #{sc_block_forward.74} parent=0
    _
  %s6 = ssub.s32 1, %s4
  %s7 = scalar_select 0, %s6, %s4
  loop: start=0, step=1, limit=4
  $region2: #{sc_block_forward.74} parent=0 // loop_pre_header
    _
  $region3: #{sc_block_forward.74} parent=0 // loop_header
    %s9 = sphi 0, %s13
    %p10 = scmp.ge.s32.totalorder %s9, 4
    %s16 = sphi 0, %s28
    %s17 = sphi 0, %s24
    %s18 = sphi 0, %s16
    %s19 = sphi 0, %s17
    %s20 = sphi 0, %s18
    %s21 = sphi 0, %s19
    %s33 = sphi 0, %s35
    %s36 = sphi 0, %s33
    %s37 = sphi 0, %s36
    %s53 = sphi 0, %s37
    %s57 = sphi 0, %s57
    %s59 = sphi 0, %s57
    %s60 = sphi 0, %s59
    %s74 = sphi 0, %s60
    %s78 = sphi 0, %s78
    %s80 = sphi 0, %s78
    %s81 = sphi 0, %s80
    %s95 = sphi 0, %s81
    %s103 = sphi 0, %s105
    %s106 = sphi 0, %s103
    %s107 = sphi 0, %s106
    %s123 = sphi 0, %s107
  $region4: #{sc_block_forward.74} parent=0 // loop_header_branch
    %12 = sbr.rel (%p10) target = $region8
  $region5: #{sc_block_forward.74} parent=0 // loop_body
    %s14 = ssub.s32 %s9, 1
    %s15 = ssub.s32 %s9, 2
    %s22 = sadd.s32 1, %s17
    %p23 = scmp.ge.s32.totalorder %s22, 1
    %s24 = scalar_select %p23, 0, %s22
    %s25 = sadd.s32 1, %s16
    %s26 = scalar_select %p23, %s25, %s16
    %p27 = scmp.ge.s32.totalorder %s26, 2
    %s28 = scalar_select %p27, 0, %s26
    %s29 = ssub.s32 %s16, %s28
    %s30 = ssub.s32 %s17, %s24
    %s31 = sor.u32 %s29, %s30
    %p32 = scmp.eq.s32.totalorder %s31, 0
    %s34 = sadd.s32 %s33, 1
    %s35 = scalar_select %p32, %s33, %s34
    %p38 = pneg %p32
    %p39 = scmp.eq.s32.totalorder %s9, 1
    %p40 = por %p38, %p39
    %p41 = scmp.ne.s32.totalorder %s33, %s36
    %p42 = scmp.eq.s32.totalorder %s9, 0
    %p43 = por %p41, %p42
    %p44 = scmp.ne.s32.totalorder %s33, %s36
    %p45 = scmp.eq.s32.totalorder %s14, 1
    %p46 = por %p44, %p45
    %p47 = scmp.ne.s32.totalorder %s36, %s37
    %p48 = scmp.eq.s32.totalorder %s14, 0
    %p49 = por %p47, %p48
    %p50 = scmp.ne.s32.totalorder %s36, %s37
    %p51 = scmp.eq.s32.totalorder %s15, 1
    %p52 = por %p50, %p51
    %p54 = scmp.ne.s32.totalorder %s37, %s53
    %p55 = scmp.eq.s32.totalorder %s15, 0
    %p56 = por %p54, %p55
    %s58 = sadd.s32 %s57, 1
    %p61 = scmp.eq.s32.totalorder %s9, 1
    %p62 = scmp.ne.s32.totalorder %s57, %s59
    %p63 = scmp.eq.s32.totalorder %s9, 0
    %p64 = por %p62, %p63
    %p65 = scmp.ne.s32.totalorder %s57, %s59
    %p66 = scmp.eq.s32.totalorder %s14, 1
    %p67 = por %p65, %p66
    %p68 = scmp.ne.s32.totalorder %s59, %s60
    %p69 = scmp.eq.s32.totalorder %s14, 0
    %p70 = por %p68, %p69
    %p71 = scmp.ne.s32.totalorder %s59, %s60
    %p72 = scmp.eq.s32.totalorder %s15, 1
    %p73 = por %p71, %p72
    %p75 = scmp.ne.s32.totalorder %s60, %s74
    %p76 = scmp.eq.s32.totalorder %s15, 0
    %p77 = por %p75, %p76
    %s79 = sadd.s32 %s78, 1
    %p82 = scmp.eq.s32.totalorder %s9, 1
    %p83 = scmp.ne.s32.totalorder %s78, %s80
    %p84 = scmp.eq.s32.totalorder %s9, 0
    %p85 = por %p83, %p84
    %p86 = scmp.ne.s32.totalorder %s78, %s80
    %p87 = scmp.eq.s32.totalorder %s14, 1
    %p88 = por %p86, %p87
    %p89 = scmp.ne.s32.totalorder %s80, %s81
    %p90 = scmp.eq.s32.totalorder %s14, 0
    %p91 = por %p89, %p90
    %p92 = scmp.ne.s32.totalorder %s80, %s81
    %p93 = scmp.eq.s32.totalorder %s15, 1
    %p94 = por %p92, %p93
    %p96 = scmp.ne.s32.totalorder %s81, %s95
    %p97 = scmp.eq.s32.totalorder %s15, 0
    %p98 = por %p96, %p97
    %s99 = ssub.s32 %s16, %s28
    %s100 = ssub.s32 %s17, %s24
    %s101 = sor.u32 %s99, %s100
    %p102 = scmp.eq.s32.totalorder %s101, 0
    %s104 = sadd.s32 %s103, 1
    %s105 = scalar_select %p102, %s103, %s104
    %p108 = pneg %p102
    %p109 = scmp.eq.s32.totalorder %s9, 1
    %p110 = por %p108, %p109
    %p111 = scmp.ne.s32.totalorder %s103, %s106
    %p112 = scmp.eq.s32.totalorder %s9, 0
    %p113 = por %p111, %p112
    %p114 = scmp.ne.s32.totalorder %s103, %s106
    %p115 = scmp.eq.s32.totalorder %s14, 1
    %p116 = por %p114, %p115
    %p117 = scmp.ne.s32.totalorder %s106, %s107
    %p118 = scmp.eq.s32.totalorder %s14, 0
    %p119 = por %p117, %p118
    %p120 = scmp.ne.s32.totalorder %s106, %s107
    %p121 = scmp.eq.s32.totalorder %s15, 1
    %p122 = por %p120, %p121
    %p124 = scmp.ne.s32.totalorder %s107, %s123
    %p125 = scmp.eq.s32.totalorder %s15, 0
    %p126 = por %p124, %p125
    %p127 = scmp.le.s32.totalorder 1, %s9
    %p128 = scmp.lt.s32.totalorder %s9, 3
    %p129 = pnand %p127, %p128
    %p130 = pneg %p129
    // Predicated region
    $region9: #{sc_block_forward.74} parent=5 // pred_check
      _
    $region10: #{sc_block_forward.74} parent=5 // pred_check_branch
      %132 = sbr.rel (%p129) target = $region12
    $region11: #{sc_block_forward.74} parent=5 // pred_region
      %s133 = ssub.s32 %s9, 1
      // Predicated region
      $region13: #{sc_block_forward.74} parent=11 // pred_check
        %p134 = pneg %p70
      $region14: #{sc_block_forward.74} parent=11 // pred_check_branch
        %136 = sbr.rel (%p134) target = $region16
      $region15: #{sc_block_forward.74} parent=11 // pred_region
        _
      $region16: #{sc_block_forward.74} parent=11 // pred_fallthru
        _
      // Predicated region
      $region17: #{sc_block_forward.74} parent=11 // pred_check
        %p137 = pneg %p91
      $region18: #{sc_block_forward.74} parent=11 // pred_check_branch
        %139 = sbr.rel (%p137) target = $region20
      $region19: #{sc_block_forward.74} parent=11 // pred_region
        _
      $region20: #{sc_block_forward.74} parent=11 // pred_fallthru
        _
    $region12: #{sc_block_forward.74} parent=5 // pred_fallthru
      _
    %p140 = scmp.lt.s32.totalorder %s9, 2
    // Predicated region
    $region21: #{sc_block_forward.74} parent=5 // pred_check
      %p141 = pneg %p140
    $region22: #{sc_block_forward.74} parent=5 // pred_check_branch
      %143 = sbr.rel (%p141) target = $region24
    $region23: #{sc_block_forward.74} parent=5 // pred_region
      // Predicated region
      $region25: #{sc_block_forward.74} parent=23 // pred_check
        %p144 = pneg %p43
      $region26: #{sc_block_forward.74} parent=23 // pred_check_branch
        %146 = sbr.rel (%p144) target = $region28
      $region27: #{sc_block_forward.74} parent=23 // pred_region
        %s147 = smul.u32 6, %s17
        %p148 = scmp.lt.s32.totalorder %s16, 1
        %s149 = scalar_select %p148, %s16, 1
        %p150 = scmp.lt.s32.totalorder %s147, 5
        %s151 = scalar_select %p150, %s147, 5
        %s152 = smul.addr %s151, 6
        %s153 = smul.addr %s149, 36
        %s154 = sadd.s32 %s152, %s153
        %s155 = smul.addr %s154, 8
        %s156 = scalar_lea.vmem %s0, %s155
        %s157 = smul.u32 6, %s17
      $region28: #{sc_block_forward.74} parent=23 // pred_fallthru
        _
    $region24: #{sc_block_forward.74} parent=5 // pred_fallthru
      _
    %p158 = scmp.le.s32.totalorder 1, %s9
    %p159 = scmp.lt.s32.totalorder %s9, 3
    %p160 = pnand %p158, %p159
    %p161 = pneg %p160
    // Predicated region
    $region29: #{sc_block_forward.74} parent=5 // pred_check
      _
    $region30: #{sc_block_forward.74} parent=5 // pred_check_branch
      %163 = sbr.rel (%p160) target = $region32
    $region31: #{sc_block_forward.74} parent=5 // pred_region
      %s164 = ssub.s32 %s9, 1
      %s165 = smul.u32 6, %s19
      %p166 = scmp.lt.s32.totalorder %s18, 1
      %s167 = scalar_select %p166, %s18, 1
      %p168 = scmp.lt.s32.totalorder %s165, 5
      %s169 = scalar_select %p168, %s165, 5
      %s170 = smul.addr %s169, 6
      %s171 = smul.addr %s167, 36
      %s172 = sadd.s32 %s170, %s171
      %s173 = smul.addr %s172, 8
      %s174 = scalar_lea.vmem %s0, %s173
      %p175 = pneg %p49
      %p176 = pneg %p46
      %p177 = pneg %p70
      %p178 = pneg %p67
      %p179 = pneg %p91
      %p180 = pneg %p88
      %p181 = pneg %p119
      %p182 = pneg %p116
      %s183 = smul.u32 6, %s19
      %p184 = scmp.lt.s32.totalorder %s18, 1
      %s185 = scalar_select %p184, %s18, 1
      %p186 = scmp.lt.s32.totalorder %s183, 5
      %s187 = scalar_select %p186, %s183, 5
      %s188 = smul.addr %s185, 6
      %s189 = sadd.s32 %s187, %s188
      %s190 = smul.addr %s189, 8
      %s191 = scalar_lea.vmem %s3, %s190
      %s192 = smul.u32 6, %s19
      %p193 = scmp.lt.s32.totalorder %s18, 1
      %s194 = scalar_select %p193, %s18, 1
      %p195 = scmp.lt.s32.totalorder %s192, 5
      %s196 = scalar_select %p195, %s192, 5
      %s197 = smul.addr %s196, 6
      %s198 = smul.addr %s194, 36
      %s199 = sadd.s32 %s197, %s198
      %s200 = smul.addr %s199, 8
      %s201 = scalar_lea.vmem %s0, %s200
      %s202 = smul.u32 6, %s19
      %s203 = smul.u32 6, %s19
      %p204 = scmp.lt.s32.totalorder %s18, 1
      %s205 = scalar_select %p204, %s18, 1
      %p206 = scmp.lt.s32.totalorder %s203, 5
      %s207 = scalar_select %p206, %s203, 5
      %s208 = smul.addr %s205, 6
      %s209 = sadd.s32 %s207, %s208
      %s210 = smul.addr %s209, 8
      %s211 = scalar_lea.vmem %s3, %s210
      %s212 = smul.u32 6, %s19
      %v213 = vld [vmem:[%s201] sm:$0xff]
      %v214 = vld [vmem:[%s201 + $0x8] sm:$0xff]
      %v215 = vld [vmem:[%s201 + $0x10] sm:$0xff]
      %v216 = vld [vmem:[%s201 + $0x18] sm:$0xff]
      %v217 = vld [vmem:[%s201 + $0x20] sm:$0xff]
      %v218 = vld [vmem:[%s201 + $0x28] sm:$0xff]
      %v219 = vld [vmem:[%s201 + $0x30] sm:$0xff]
      %v220 = vld [vmem:[%s201 + $0x38] sm:$0xff]
      %v221 = vld [vmem:[%s201 + $0x40] sm:$0xff]
      %v222 = vld [vmem:[%s201 + $0x48] sm:$0xff]
      %v223 = vld [vmem:[%s201 + $0x50] sm:$0xff]
      %v224 = vld [vmem:[%s201 + $0x58] sm:$0xff]
      %v225 = vld [vmem:[%s201 + $0x60] sm:$0xff]
      %v226 = vld [vmem:[%s201 + $0x68] sm:$0xff]
      %v227 = vld [vmem:[%s201 + $0x70] sm:$0xff]
      %v228 = vld [vmem:[%s201 + $0x78] sm:$0xff]
      %v229 = vld [vmem:[%s201 + $0x80] sm:$0xff]
      %v230 = vld [vmem:[%s201 + $0x88] sm:$0xff]
      %v231 = vld [vmem:[%s201 + $0x90] sm:$0xff]
      %v232 = vld [vmem:[%s201 + $0x98] sm:$0xff]
      %v233 = vld [vmem:[%s201 + $0xa0] sm:$0xff]
      %v234 = vld [vmem:[%s201 + $0xa8] sm:$0xff]
      %v235 = vld [vmem:[%s201 + $0xb0] sm:$0xff]
      %v236 = vld [vmem:[%s201 + $0xb8] sm:$0xff]
      %v237 = vld [vmem:[%s201 + $0xc0] sm:$0xff]
      %v238 = vld [vmem:[%s201 + $0xc8] sm:$0xff]
      %v239 = vld [vmem:[%s201 + $0xd0] sm:$0xff]
      %v240 = vld [vmem:[%s201 + $0xd8] sm:$0xff]
      %v241 = vld [vmem:[%s201 + $0xe0] sm:$0xff]
      %v242 = vld [vmem:[%s201 + $0xe8] sm:$0xff]
      %v243 = vld [vmem:[%s201 + $0xf0] sm:$0xff]
      %v244 = vld [vmem:[%s201 + $0xf8] sm:$0xff]
      %v245 = vld [vmem:[%s201 + $0x100] sm:$0xff]
      %v246 = vld [vmem:[%s201 + $0x108] sm:$0xff]
      %v247 = vld [vmem:[%s201 + $0x110] sm:$0xff]
      %v248 = vld [vmem:[%s201 + $0x118] sm:$0xff]
      %v249 = vld [vmem:[%s1] sm:$0xff]
      %v250 = vld [vmem:[%s1 + $0x8] sm:$0xff]
      %v251 = vld [vmem:[%s1 + $0x10] sm:$0xff]
      %v252 = vld [vmem:[%s1 + $0x18] sm:$0xff]
      %v253 = vld [vmem:[%s1 + $0x20] sm:$0xff]
      %v254 = vld [vmem:[%s1 + $0x28] sm:$0xff]
      %v255 = vld [vmem:[%s1 + $0x30] sm:$0xff]
      %v256 = vld [vmem:[%s1 + $0x38] sm:$0xff]
      %v257 = vld [vmem:[%s1 + $0x40] sm:$0xff]
      %v258 = vld [vmem:[%s1 + $0x48] sm:$0xff]
      %v259 = vld [vmem:[%s1 + $0x50] sm:$0xff]
      %v260 = vld [vmem:[%s1 + $0x58] sm:$0xff]
      %v261 = vld [vmem:[%s1 + $0x60] sm:$0xff]
      %v262 = vld [vmem:[%s1 + $0x68] sm:$0xff]
      %v263 = vld [vmem:[%s1 + $0x70] sm:$0xff]
      %v264 = vld [vmem:[%s1 + $0x78] sm:$0xff]
      %v265 = vld [vmem:[%s1 + $0x80] sm:$0xff]
      %v266 = vld [vmem:[%s1 + $0x88] sm:$0xff]
      %v267 = vld [vmem:[%s1 + $0x90] sm:$0xff]
      %v268 = vld [vmem:[%s1 + $0x98] sm:$0xff]
      %v269 = vld [vmem:[%s1 + $0xa0] sm:$0xff]
      %v270 = vld [vmem:[%s1 + $0xa8] sm:$0xff]
      %v271 = vld [vmem:[%s1 + $0xb0] sm:$0xff]
      %v272 = vld [vmem:[%s1 + $0xb8] sm:$0xff]
      %v273 = vld [vmem:[%s1 + $0xc0] sm:$0xff]
      %v274 = vld [vmem:[%s1 + $0xc8] sm:$0xff]
      %v275 = vld [vmem:[%s1 + $0xd0] sm:$0xff]
      %v276 = vld [vmem:[%s1 + $0xd8] sm:$0xff]
      %v277 = vld [vmem:[%s1 + $0xe0] sm:$0xff]
      %v278 = vld [vmem:[%s1 + $0xe8] sm:$0xff]
      %v279 = vld [vmem:[%s1 + $0xf0] sm:$0xff]
      %v280 = vld [vmem:[%s1 + $0xf8] sm:$0xff]
      %v281 = vld [vmem:[%s1 + $0x100] sm:$0xff]
      %v282 = vld [vmem:[%s1 + $0x108] sm:$0xff]
      %v283 = vld [vmem:[%s1 + $0x110] sm:$0xff]
      %v284 = vld [vmem:[%s1 + $0x118] sm:$0xff]
      %v285 = vld [vmem:[%s1 + $0x120] sm:$0xff]
      %v286 = vld [vmem:[%s1 + $0x128] sm:$0xff]
      %v287 = vld [vmem:[%s1 + $0x130] sm:$0xff]
      %v288 = vld [vmem:[%s1 + $0x138] sm:$0xff]
      %v289 = vld [vmem:[%s1 + $0x140] sm:$0xff]
      %v290 = vld [vmem:[%s1 + $0x148] sm:$0xff]
      %v291 = vld [vmem:[%s1 + $0x150] sm:$0xff]
      %v292 = vld [vmem:[%s1 + $0x158] sm:$0xff]
      %v293 = vld [vmem:[%s1 + $0x160] sm:$0xff]
      %v294 = vld [vmem:[%s1 + $0x168] sm:$0xff]
      %v295 = vld [vmem:[%s1 + $0x170] sm:$0xff]
      %v296 = vld [vmem:[%s1 + $0x178] sm:$0xff]
      %v297 = vld [vmem:[%s1 + $0x180] sm:$0xff]
      %v298 = vld [vmem:[%s1 + $0x188] sm:$0xff]
      %v299 = vld [vmem:[%s1 + $0x190] sm:$0xff]
      %v300 = vld [vmem:[%s1 + $0x198] sm:$0xff]
      %v301 = vld [vmem:[%s1 + $0x1a0] sm:$0xff]
      %v302 = vld [vmem:[%s1 + $0x1a8] sm:$0xff]
      %v303 = vld [vmem:[%s1 + $0x1b0] sm:$0xff]
      %v304 = vld [vmem:[%s1 + $0x1b8] sm:$0xff]
      %v305 = vld [vmem:[%s1 + $0x1c0] sm:$0xff]
      %v306 = vld [vmem:[%s1 + $0x1c8] sm:$0xff]
      %v307 = vld [vmem:[%s1 + $0x1d0] sm:$0xff]
      %v308 = vld [vmem:[%s1 + $0x1d8] sm:$0xff]
      %v309 = vld [vmem:[%s1 + $0x1e0] sm:$0xff]
      %v310 = vld [vmem:[%s1 + $0x1e8] sm:$0xff]
      %v311 = vld [vmem:[%s1 + $0x1f0] sm:$0xff]
      %v312 = vld [vmem:[%s1 + $0x1f8] sm:$0xff]
      %v313 = vld [vmem:[%s1 + $0x200] sm:$0xff]
      %v314 = vld [vmem:[%s1 + $0x208] sm:$0xff]
      %v315 = vld [vmem:[%s1 + $0x210] sm:$0xff]
      %v316 = vld [vmem:[%s1 + $0x218] sm:$0xff]
      %v317 = vld [vmem:[%s1 + $0x220] sm:$0xff]
      %v318 = vld [vmem:[%s1 + $0x228] sm:$0xff]
      %v319 = vld [vmem:[%s1 + $0x230] sm:$0xff]
      %v320 = vld [vmem:[%s1 + $0x238] sm:$0xff]
      %v321 = vld [vmem:[%s1 + $0x240] sm:$0xff]
      %v322 = vld [vmem:[%s1 + $0x248] sm:$0xff]
      %v323 = vld [vmem:[%s1 + $0x250] sm:$0xff]
      %v324 = vld [vmem:[%s1 + $0x258] sm:$0xff]
      %v325 = vld [vmem:[%s1 + $0x260] sm:$0xff]
      %v326 = vld [vmem:[%s1 + $0x268] sm:$0xff]
      %v327 = vld [vmem:[%s1 + $0x270] sm:$0xff]
      %v328 = vld [vmem:[%s1 + $0x278] sm:$0xff]
      %v329 = vld [vmem:[%s1 + $0x280] sm:$0xff]
      %v330 = vld [vmem:[%s1 + $0x288] sm:$0xff]
      %v331 = vld [vmem:[%s1 + $0x290] sm:$0xff]
      %v332 = vld [vmem:[%s1 + $0x298] sm:$0xff]
      %v333 = vld [vmem:[%s1 + $0x2a0] sm:$0xff]
      %v334 = vld [vmem:[%s1 + $0x2a8] sm:$0xff]
      %v335 = vld [vmem:[%s1 + $0x2b0] sm:$0xff]
      %v336 = vld [vmem:[%s1 + $0x2b8] sm:$0xff]
      %v337 = vld [vmem:[%s1 + $0x2c0] sm:$0xff]
      %v338 = vld [vmem:[%s1 + $0x2c8] sm:$0xff]
      %v339 = vld [vmem:[%s1 + $0x2d0] sm:$0xff]
      %v340 = vld [vmem:[%s1 + $0x2d8] sm:$0xff]
      %v341 = vld [vmem:[%s1 + $0x2e0] sm:$0xff]
      %v342 = vld [vmem:[%s1 + $0x2e8] sm:$0xff]
      %v343 = vld [vmem:[%s1 + $0x2f0] sm:$0xff]
      %v344 = vld [vmem:[%s1 + $0x2f8] sm:$0xff]
      %v345 = vld [vmem:[%s2] sm:$0x1]
      %v347 = vlaneseq
      %v348 = vshrl.u32 %v347, 7
      %v349 = vsub.s32 0, %v348
      %v350 = vrot.slane %v345, %v349
      %352 = vmatprep.subr.mxu0 0.0
      %353 = vmatpush1.msra.mxu0 %v249
      %354 = vmatprep.subr.mxu0 0.0
      %355 = vmatpush1.msra.mxu0 %v250
      %356 = vmatprep.subr.mxu0 0.0
      %357 = vmatpush1.msra.mxu0 %v251
      %358 = vmatprep.subr.mxu0 0.0
      %359 = vmatpush1.msra.mxu0 %v252
      %360 = vmatprep.subr.mxu0 0.0
      %361 = vmatpush1.msra.mxu0 %v253
      %362 = vmatprep.subr.mxu0 0.0
      %363 = vmatpush1.msra.mxu0 %v254
      %364 = vmatprep.subr.mxu0 0.0
      %365 = vmatpush1.msra.mxu0 %v255
      %366 = vmatprep.subr.mxu0 0.0
      %367 = vmatpush1.msra.mxu0 %v256
      %368 = vmatprep.subr.mxu0 0.0
      %369 = vmatpush1.msra.mxu0 %v257
      %370 = vmatprep.subr.mxu0 0.0
      %371 = vmatpush1.msra.mxu0 %v258
      %372 = vmatprep.subr.mxu0 0.0
      %373 = vmatpush1.msra.mxu0 %v259
      %374 = vmatprep.subr.mxu0 0.0
      %375 = vmatpush1.msra.mxu0 %v260
      %376 = vmatprep.subr.mxu0 0.0
      %377 = vmatpush1.msra.mxu0 %v261
      %378 = vmatprep.subr.mxu0 0.0
      %379 = vmatpush1.msra.mxu0 %v262
      %380 = vmatprep.subr.mxu0 0.0
      %381 = vmatpush1.msra.mxu0 %v263
      %382 = vmatprep.subr.mxu0 0.0
      %383 = vmatpush1.msra.mxu0 %v264
      %384 = vmatprep.subr.mxu0 0.0
      %385 = vmatpush1.msra.mxu0 %v265
      %386 = vmatprep.subr.mxu0 0.0
      %387 = vmatpush1.msra.mxu0 %v266
      %388 = vmatprep.subr.mxu0 0.0
      %389 = vmatpush1.msra.mxu0 %v267
      %390 = vmatprep.subr.mxu0 0.0
      %391 = vmatpush1.msra.mxu0 %v268
      %392 = vmatprep.subr.mxu0 0.0
      %393 = vmatpush1.msra.mxu0 %v269
      %394 = vmatprep.subr.mxu0 0.0
      %395 = vmatpush1.msra.mxu0 %v270
      %396 = vmatprep.subr.mxu0 0.0
      %397 = vmatpush1.msra.mxu0 %v271
      %398 = vmatprep.subr.mxu0 0.0
      %399 = vmatpush1.msra.mxu0 %v272
      %400 = vmatprep.subr.mxu0 0.0
      %401 = vmatpush1.msra.mxu0 %v273
      %402 = vmatprep.subr.mxu0 0.0
      %403 = vmatpush1.msra.mxu0 %v274
      %404 = vmatprep.subr.mxu0 0.0
      %405 = vmatpush1.msra.mxu0 %v275
      %406 = vmatprep.subr.mxu0 0.0
      %407 = vmatpush1.msra.mxu0 %v276
      %408 = vmatprep.subr.mxu0 0.0
      %409 = vmatpush1.msra.mxu0 %v277
      %410 = vmatprep.subr.mxu0 0.0
      %411 = vmatpush1.msra.mxu0 %v278
      %412 = vmatprep.subr.mxu0 0.0
      %413 = vmatpush1.msra.mxu0 %v279
      %414 = vmatprep.subr.mxu0 0.0
      %415 = vmatpush1.msra.mxu0 %v280
      %416 = vmatprep.mubr.f32.mxu0 %v214
      %417 = vmatmul.mubr.f32.gmra.mrb[0].mxu0 %v213
      %v418 = vpop.f32.mrb[0].mxu0
      %v419 = vadd.f32 %v350, %v418
      %v420 = vpop.f32.mrb[0].mxu0
      %421 = vmatprep.mubr.f32.mxu0 %v220
      %422 = vmatmul.mubr.f32.gmra.mrb[0].mxu0 %v219
      %v423 = vpop.f32.mrb[0].mxu0
      %v424 = vadd.f32 %v350, %v423
      %v425 = vpop.f32.mrb[0].mxu0
      %426 = vmatprep.mubr.f32.mxu0 %v226
      %427 = vmatmul.mubr.f32.gmra.mrb[0].mxu0 %v225
      %v428 = vpop.f32.mrb[0].mxu0
      %v429 = vadd.f32 %v350, %v428
      %v430 = vpop.f32.mrb[0].mxu0
      %431 = vmatprep.mubr.f32.mxu0 %v232
      %432 = vmatmul.mubr.f32.gmra.mrb[0].mxu0 %v231
      %v433 = vpop.f32.mrb[0].mxu0
      %v434 = vadd.f32 %v350, %v433
      %v435 = vpop.f32.mrb[0].mxu0
      %436 = vmatprep.mubr.f32.mxu0 %v238
      %437 = vmatmul.mubr.f32.gmra.mrb[0].mxu0 %v237
      %v438 = vpop.f32.mrb[0].mxu0
      %v439 = vadd.f32 %v350, %v438
      %v440 = vpop.f32.mrb[0].mxu0
      %441 = vmatprep.mubr.f32.mxu0 %v244
      %442 = vmatmul.mubr.f32.gmra.mrb[0].mxu0 %v243
      %v443 = vpop.f32.mrb[0].mxu0
      %v444 = vadd.f32 %v350, %v443
      %v445 = vpop.f32.mrb[0].mxu0
      %446 = vdwg.mxu0
      %447 = vmatprep.subr.mxu0 0.0
      %448 = vmatpush1.msra.mxu0 %v281
      %449 = vmatprep.subr.mxu0 0.0
      %450 = vmatpush1.msra.mxu0 %v282
      %451 = vmatprep.subr.mxu0 0.0
      %452 = vmatpush1.msra.mxu0 %v283
      %453 = vmatprep.subr.mxu0 0.0
      %454 = vmatpush1.msra.mxu0 %v284
      %455 = vmatprep.subr.mxu0 0.0
      %456 = vmatpush1.msra.mxu0 %v285
      %457 = vmatprep.subr.mxu0 0.0
      %458 = vmatpush1.msra.mxu0 %v286
      %459 = vmatprep.subr.mxu0 0.0
      %460 = vmatpush1.msra.mxu0 %v287
      %461 = vmatprep.subr.mxu0 0.0
      %462 = vmatpush1.msra.mxu0 %v288
      %463 = vmatprep.subr.mxu0 0.0
      %464 = vmatpush1.msra.mxu0 %v289
      %465 = vmatprep.subr.mxu0 0.0
      %466 = vmatpush1.msra.mxu0 %v290
      %467 = vmatprep.subr.mxu0 0.0
      %468 = vmatpush1.msra.mxu0 %v291
      %469 = vmatprep.subr.mxu0 0.0
      %470 = vmatpush1.msra.mxu0 %v292
      %471 = vmatprep.subr.mxu0 0.0
      %472 = vmatpush1.msra.mxu0 %v293
      %473 = vmatprep.subr.mxu0 0.0
      %474 = vmatpush1.msra.mxu0 %v294
      %475 = vmatprep.subr.mxu0 0.0
      %476 = vmatpush1.msra.mxu0 %v295
      %477 = vmatprep.subr.mxu0 0.0
      %478 = vmatpush1.msra.mxu0 %v296
      %479 = vmatprep.subr.mxu0 0.0
      %480 = vmatpush1.msra.mxu0 %v297
      %481 = vmatprep.subr.mxu0 0.0
      %482 = vmatpush1.msra.mxu0 %v298
      %483 = vmatprep.subr.mxu0 0.0
      %484 = vmatpush1.msra.mxu0 %v299
      %485 = vmatprep.subr.mxu0 0.0
      %486 = vmatpush1.msra.mxu0 %v300
      %487 = vmatprep.subr.mxu0 0.0
      %488 = vmatpush1.msra.mxu0 %v301
      %489 = vmatprep.subr.mxu0 0.0
      %490 = vmatpush1.msra.mxu0 %v302
      %491 = vmatprep.subr.mxu0 0.0
      %492 = vmatpush1.msra.mxu0 %v303
      %493 = vmatprep.subr.mxu0 0.0
      %494 = vmatpush1.msra.mxu0 %v304
      %495 = vmatprep.subr.mxu0 0.0
      %496 = vmatpush1.msra.mxu0 %v305
      %497 = vmatprep.subr.mxu0 0.0
      %498 = vmatpush1.msra.mxu0 %v306
      %499 = vmatprep.subr.mxu0 0.0
      %500 = vmatpush1.msra.mxu0 %v307
      %501 = vmatprep.subr.mxu0 0.0
      %502 = vmatpush1.msra.mxu0 %v308
      %503 = vmatprep.subr.mxu0 0.0
      %504 = vmatpush1.msra.mxu0 %v309
      %505 = vmatprep.subr.mxu0 0.0
      %506 = vmatpush1.msra.mxu0 %v310
      %507 = vmatprep.subr.mxu0 0.0
      %508 = vmatpush1.msra.mxu0 %v311
      %509 = vmatprep.subr.mxu0 0.0
      %510 = vmatpush1.msra.mxu0 %v312
      %511 = vmatprep.mubr.f32.mxu0 %v216
      %512 = vmatmul.mubr.f32.gmra.mrb[0].mxu0 %v215
      %v513 = vpop.f32.mrb[0].mxu0
      %v514 = vadd.f32 %v419, %v513
      %v515 = vpop.f32.mrb[0].mxu0
      %516 = vmatprep.mubr.f32.mxu0 %v222
      %517 = vmatmul.mubr.f32.gmra.mrb[0].mxu0 %v221
      %v518 = vpop.f32.mrb[0].mxu0
      %v519 = vadd.f32 %v424, %v518
      %v520 = vpop.f32.mrb[0].mxu0
      %521 = vmatprep.mubr.f32.mxu0 %v228
      %522 = vmatmul.mubr.f32.gmra.mrb[0].mxu0 %v227
      %v523 = vpop.f32.mrb[0].mxu0
      %v524 = vadd.f32 %v429, %v523
      %v525 = vpop.f32.mrb[0].mxu0
      %526 = vmatprep.mubr.f32.mxu0 %v234
      %527 = vmatmul.mubr.f32.gmra.mrb[0].mxu0 %v233
      %v528 = vpop.f32.mrb[0].mxu0
      %v529 = vadd.f32 %v434, %v528
      %v530 = vpop.f32.mrb[0].mxu0
      %531 = vmatprep.mubr.f32.mxu0 %v240
      %532 = vmatmul.mubr.f32.gmra.mrb[0].mxu0 %v239
      %v533 = vpop.f32.mrb[0].mxu0
      %v534 = vadd.f32 %v439, %v533
      %v535 = vpop.f32.mrb[0].mxu0
      %536 = vmatprep.mubr.f32.mxu0 %v246
      %537 = vmatmul.mubr.f32.gmra.mrb[0].mxu0 %v245
      %v538 = vpop.f32.mrb[0].mxu0
      %v539 = vadd.f32 %v444, %v538
      %v540 = vpop.f32.mrb[0].mxu0
      %541 = vdwg.mxu0
      %542 = vmatprep.subr.mxu0 0.0
      %543 = vmatpush1.msra.mxu0 %v313
      %544 = vmatprep.subr.mxu0 0.0
      %545 = vmatpush1.msra.mxu0 %v314
      %546 = vmatprep.subr.mxu0 0.0
      %547 = vmatpush1.msra.mxu0 %v315
      %548 = vmatprep.subr.mxu0 0.0
      %549 = vmatpush1.msra.mxu0 %v316
      %550 = vmatprep.subr.mxu0 0.0
      %551 = vmatpush1.msra.mxu0 %v317
      %552 = vmatprep.subr.mxu0 0.0
      %553 = vmatpush1.msra.mxu0 %v318
      %554 = vmatprep.subr.mxu0 0.0
      %555 = vmatpush1.msra.mxu0 %v319
      %556 = vmatprep.subr.mxu0 0.0
      %557 = vmatpush1.msra.mxu0 %v320
      %558 = vmatprep.subr.mxu0 0.0
      %559 = vmatpush1.msra.mxu0 %v321
      %560 = vmatprep.subr.mxu0 0.0
      %561 = vmatpush1.msra.mxu0 %v322
      %562 = vmatprep.subr.mxu0 0.0
      %563 = vmatpush1.msra.mxu0 %v323
      %564 = vmatprep.subr.mxu0 0.0
      %565 = vmatpush1.msra.mxu0 %v324
      %566 = vmatprep.subr.mxu0 0.0
      %567 = vmatpush1.msra.mxu0 %v325
      %568 = vmatprep.subr.mxu0 0.0
      %569 = vmatpush1.msra.mxu0 %v326
      %570 = vmatprep.subr.mxu0 0.0
      %571 = vmatpush1.msra.mxu0 %v327
      %572 = vmatprep.subr.mxu0 0.0
      %573 = vmatpush1.msra.mxu0 %v328
      %574 = vmatprep.subr.mxu0 0.0
      %575 = vmatpush1.msra.mxu0 %v329
      %576 = vmatprep.subr.mxu0 0.0
      %577 = vmatpush1.msra.mxu0 %v330
      %578 = vmatprep.subr.mxu0 0.0
      %579 = vmatpush1.msra.mxu0 %v331
      %580 = vmatprep.subr.mxu0 0.0
      %581 = vmatpush1.msra.mxu0 %v332
      %582 = vmatprep.subr.mxu0 0.0
      %583 = vmatpush1.msra.mxu0 %v333
      %584 = vmatprep.subr.mxu0 0.0
      %585 = vmatpush1.msra.mxu0 %v334
      %586 = vmatprep.subr.mxu0 0.0
      %587 = vmatpush1.msra.mxu0 %v335
      %588 = vmatprep.subr.mxu0 0.0
      %589 = vmatpush1.msra.mxu0 %v336
      %590 = vmatprep.subr.mxu0 0.0
      %591 = vmatpush1.msra.mxu0 %v337
      %592 = vmatprep.subr.mxu0 0.0
      %593 = vmatpush1.msra.mxu0 %v338
      %594 = vmatprep.subr.mxu0 0.0
      %595 = vmatpush1.msra.mxu0 %v339
      %596 = vmatprep.subr.mxu0 0.0
      %597 = vmatpush1.msra.mxu0 %v340
      %598 = vmatprep.subr.mxu0 0.0
      %599 = vmatpush1.msra.mxu0 %v341
      %600 = vmatprep.subr.mxu0 0.0
      %601 = vmatpush1.msra.mxu0 %v342
      %602 = vmatprep.subr.mxu0 0.0
      %603 = vmatpush1.msra.mxu0 %v343
      %604 = vmatprep.subr.mxu0 0.0
      %605 = vmatpush1.msra.mxu0 %v344
      %606 = vmatprep.mubr.f32.mxu0 %v218
      %607 = vmatmul.mubr.f32.gmra.mrb[0].mxu0 %v217
      %v608 = vpop.f32.mrb[0].mxu0
      %v609 = vadd.f32 %v514, %v608
      %v610 = vpop.f32.mrb[0].mxu0
      %611 = vmatprep.mubr.f32.mxu0 %v224
      %612 = vmatmul.mubr.f32.gmra.mrb[0].mxu0 %v223
      %v613 = vpop.f32.mrb[0].mxu0
      %v614 = vadd.f32 %v519, %v613
      %v615 = vpop.f32.mrb[0].mxu0
      %616 = vmatprep.mubr.f32.mxu0 %v230
      %617 = vmatmul.mubr.f32.gmra.mrb[0].mxu0 %v229
      %v618 = vpop.f32.mrb[0].mxu0
      %v619 = vadd.f32 %v524, %v618
      %v620 = vpop.f32.mrb[0].mxu0
      %621 = vmatprep.mubr.f32.mxu0 %v236
      %622 = vmatmul.mubr.f32.gmra.mrb[0].mxu0 %v235
      %v623 = vpop.f32.mrb[0].mxu0
      %v624 = vadd.f32 %v529, %v623
      %v625 = vpop.f32.mrb[0].mxu0
      %626 = vmatprep.mubr.f32.mxu0 %v242
      %627 = vmatmul.mubr.f32.gmra.mrb[0].mxu0 %v241
      %v628 = vpop.f32.mrb[0].mxu0
      %v629 = vadd.f32 %v534, %v628
      %v630 = vpop.f32.mrb[0].mxu0
      %631 = vmatprep.mubr.f32.mxu0 %v248
      %632 = vmatmul.mubr.f32.gmra.mrb[0].mxu0 %v247
      %v633 = vpop.f32.mrb[0].mxu0
      %v634 = vadd.f32 %v539, %v633
      %v635 = vpop.f32.mrb[0].mxu0
      %636 = vdwg.mxu0
      %637 = vst [vmem:[%s211] sm:$0xff] %v609
      %638 = vst [vmem:[%s211 + $0x8] sm:$0xff] %v614
      %639 = vst [vmem:[%s211 + $0x10] sm:$0xff] %v619
      %640 = vst [vmem:[%s211 + $0x18] sm:$0xff] %v624
      %641 = vst [vmem:[%s211 + $0x20] sm:$0xff] %v629
      %642 = vst [vmem:[%s211 + $0x28] sm:$0xff] %v634
      %s643 = smul.u32 6, %s19
      %p644 = scmp.lt.s32.totalorder %s18, 1
      %s645 = scalar_select %p644, %s18, 1
      %p646 = scmp.lt.s32.totalorder %s643, 5
      %s647 = scalar_select %p646, %s643, 5
      %s648 = smul.addr %s645, 6
      %s649 = sadd.s32 %s647, %s648
      %s650 = smul.addr %s649, 8
      %s651 = scalar_lea.vmem %s3, %s650
      // Predicated region
      $region33: #{sc_block_forward.74} parent=31 // pred_check
        %p652 = pneg %p116
      $region34: #{sc_block_forward.74} parent=31 // pred_check_branch
        %654 = sbr.rel (%p652) target = $region36
      $region35: #{sc_block_forward.74} parent=31 // pred_region
        %s655 = smul.u32 6, %s19
      $region36: #{sc_block_forward.74} parent=31 // pred_fallthru
        _
    $region32: #{sc_block_forward.74} parent=5 // pred_fallthru
      _
    %p656 = scmp.le.s32.totalorder 2, %s9
    // Predicated region
    $region37: #{sc_block_forward.74} parent=5 // pred_check
      %p657 = pneg %p656
    $region38: #{sc_block_forward.74} parent=5 // pred_check_branch
      %659 = sbr.rel (%p657) target = $region40
    $region39: #{sc_block_forward.74} parent=5 // pred_region
      %s660 = ssub.s32 %s9, 2
      // Predicated region
      $region41: #{sc_block_forward.74} parent=39 // pred_check
        %p661 = pneg %p122
      $region42: #{sc_block_forward.74} parent=39 // pred_check_branch
        %663 = sbr.rel (%p661) target = $region44
      $region43: #{sc_block_forward.74} parent=39 // pred_region
        %s664 = smul.u32 6, %s21
        %p665 = scmp.lt.s32.totalorder %s20, 1
        %s666 = scalar_select %p665, %s20, 1
        %p667 = scmp.lt.s32.totalorder %s664, 5
        %s668 = scalar_select %p667, %s664, 5
        %s669 = smul.addr %s666, 6
        %s670 = sadd.s32 %s668, %s669
        %s671 = smul.addr %s670, 8
        %s672 = scalar_lea.vmem %s3, %s671
      $region44: #{sc_block_forward.74} parent=39 // pred_fallthru
        _
    $region40: #{sc_block_forward.74} parent=5 // pred_fallthru
      _
  $region6: #{sc_block_forward.74} parent=0 // loop_footer
    %s13 = sadd.s32 1, %s9
  $region7: #{sc_block_forward.74} parent=0 // loop_footer_branch
    %8 = sbr.rel target = $region3
  $region8: #{sc_block_forward.74} parent=0 // loop_exit
    _

// kernel: sc_block_forward.75
$region0: #{sc_block_forward.75}
  #allocation0 [shape = 'u32[]', space=smem, size = 0x4, offset = 0x4, fixed_abs, tag = 'smem constant byte address 0x4 - core index']
  #allocation1 [shape = 'u32[144,128]{1,0:T(1,128)}', space=vmem, size = 0x12000, scoped, tag = 'internal scratch']
  %s0 = inlined_call_operand.vmem [shape: f32[2,16,384], index: 0, kind: input, shape index: {}]
  %s1 = inlined_call_operand.vmem [shape: f32[2,1,384], index: 1, kind: input, shape index: {}]
  %s2 = inlined_call_operand.vmem [shape: f32[2,1,384], index: 2, kind: input, shape index: {}]
  %s3 = inlined_call_operand.vmem [shape: f32[384,128], index: 3, kind: input, shape index: {}]
  %s4 = inlined_call_operand.vmem [shape: f32[1,1,128], index: 4, kind: input, shape index: {}]
  %s5 = inlined_call_operand.vmem [shape: f32[2,16,128], index: 5, kind: output, shape index: {}]
  %s6 = sld [smem:[#allocation0]]
  $region53: #{sc_block_forward.75} parent=0
    _
  %s8 = ssub.s32 1, %s6
  %s9 = scalar_select 0, %s8, %s6
  loop: start=0, step=1, limit=4
  $region2: #{sc_block_forward.75} parent=0 // loop_pre_header
    _
  $region3: #{sc_block_forward.75} parent=0 // loop_header
    %s11 = sphi 0, %s15
    %p12 = scmp.ge.s32.totalorder %s11, 4
    %s18 = sphi 0, %s30
    %s19 = sphi 0, %s26
    %s20 = sphi 0, %s18
    %s21 = sphi 0, %s19
    %s22 = sphi 0, %s20
    %s23 = sphi 0, %s21
    %s35 = sphi 0, %s37
    %s38 = sphi 0, %s35
    %s39 = sphi 0, %s38
    %s55 = sphi 0, %s39
    %s61 = sphi 0, %s63
    %s64 = sphi 0, %s61
    %s65 = sphi 0, %s64
    %s81 = sphi 0, %s65
    %s87 = sphi 0, %s89
    %s90 = sphi 0, %s87
    %s91 = sphi 0, %s90
    %s107 = sphi 0, %s91
    %s111 = sphi 0, %s111
    %s113 = sphi 0, %s111
    %s114 = sphi 0, %s113
    %s128 = sphi 0, %s114
    %s132 = sphi 0, %s132
    %s134 = sphi 0, %s132
    %s135 = sphi 0, %s134
    %s149 = sphi 0, %s135
    %s157 = sphi 0, %s159
    %s160 = sphi 0, %s157
    %s161 = sphi 0, %s160
    %s177 = sphi 0, %s161
  $region4: #{sc_block_forward.75} parent=0 // loop_header_branch
    %14 = sbr.rel (%p12) target = $region8
  $region5: #{sc_block_forward.75} parent=0 // loop_body
    %s16 = ssub.s32 %s11, 1
    %s17 = ssub.s32 %s11, 2
    %s24 = sadd.s32 1, %s19
    %p25 = scmp.ge.s32.totalorder %s24, 1
    %s26 = scalar_select %p25, 0, %s24
    %s27 = sadd.s32 1, %s18
    %s28 = scalar_select %p25, %s27, %s18
    %p29 = scmp.ge.s32.totalorder %s28, 2
    %s30 = scalar_select %p29, 0, %s28
    %s31 = ssub.s32 %s18, %s30
    %s32 = ssub.s32 %s19, %s26
    %s33 = sor.u32 %s31, %s32
    %p34 = scmp.eq.s32.totalorder %s33, 0
    %s36 = sadd.s32 %s35, 1
    %s37 = scalar_select %p34, %s35, %s36
    %p40 = pneg %p34
    %p41 = scmp.eq.s32.totalorder %s11, 1
    %p42 = por %p40, %p41
    %p43 = scmp.ne.s32.totalorder %s35, %s38
    %p44 = scmp.eq.s32.totalorder %s11, 0
    %p45 = por %p43, %p44
    %p46 = scmp.ne.s32.totalorder %s35, %s38
    %p47 = scmp.eq.s32.totalorder %s16, 1
    %p48 = por %p46, %p47
    %p49 = scmp.ne.s32.totalorder %s38, %s39
    %p50 = scmp.eq.s32.totalorder %s16, 0
    %p51 = por %p49, %p50
    %p52 = scmp.ne.s32.totalorder %s38, %s39
    %p53 = scmp.eq.s32.totalorder %s17, 1
    %p54 = por %p52, %p53
    %p56 = scmp.ne.s32.totalorder %s39, %s55
    %p57 = scmp.eq.s32.totalorder %s17, 0
    %p58 = por %p56, %p57
    %s59 = ssub.s32 %s18, %s30
    %p60 = scmp.eq.s32.totalorder %s59, 0
    %s62 = sadd.s32 %s61, 1
    %s63 = scalar_select %p60, %s61, %s62
    %p66 = pneg %p60
    %p67 = scmp.eq.s32.totalorder %s11, 1
    %p68 = por %p66, %p67
    %p69 = scmp.ne.s32.totalorder %s61, %s64
    %p70 = scmp.eq.s32.totalorder %s11, 0
    %p71 = por %p69, %p70
    %p72 = scmp.ne.s32.totalorder %s61, %s64
    %p73 = scmp.eq.s32.totalorder %s16, 1
    %p74 = por %p72, %p73
    %p75 = scmp.ne.s32.totalorder %s64, %s65
    %p76 = scmp.eq.s32.totalorder %s16, 0
    %p77 = por %p75, %p76
    %p78 = scmp.ne.s32.totalorder %s64, %s65
    %p79 = scmp.eq.s32.totalorder %s17, 1
    %p80 = por %p78, %p79
    %p82 = scmp.ne.s32.totalorder %s65, %s81
    %p83 = scmp.eq.s32.totalorder %s17, 0
    %p84 = por %p82, %p83
    %s85 = ssub.s32 %s18, %s30
    %p86 = scmp.eq.s32.totalorder %s85, 0
    %s88 = sadd.s32 %s87, 1
    %s89 = scalar_select %p86, %s87, %s88
    %p92 = pneg %p86
    %p93 = scmp.eq.s32.totalorder %s11, 1
    %p94 = por %p92, %p93
    %p95 = scmp.ne.s32.totalorder %s87, %s90
    %p96 = scmp.eq.s32.totalorder %s11, 0
    %p97 = por %p95, %p96
    %p98 = scmp.ne.s32.totalorder %s87, %s90
    %p99 = scmp.eq.s32.totalorder %s16, 1
    %p100 = por %p98, %p99
    %p101 = scmp.ne.s32.totalorder %s90, %s91
    %p102 = scmp.eq.s32.totalorder %s16, 0
    %p103 = por %p101, %p102
    %p104 = scmp.ne.s32.totalorder %s90, %s91
    %p105 = scmp.eq.s32.totalorder %s17, 1
    %p106 = por %p104, %p105
    %p108 = scmp.ne.s32.totalorder %s91, %s107
    %p109 = scmp.eq.s32.totalorder %s17, 0
    %p110 = por %p108, %p109
    %s112 = sadd.s32 %s111, 1
    %p115 = scmp.eq.s32.totalorder %s11, 1
    %p116 = scmp.ne.s32.totalorder %s111, %s113
    %p117 = scmp.eq.s32.totalorder %s11, 0
    %p118 = por %p116, %p117
    %p119 = scmp.ne.s32.totalorder %s111, %s113
    %p120 = scmp.eq.s32.totalorder %s16, 1
    %p121 = por %p119, %p120
    %p122 = scmp.ne.s32.totalorder %s113, %s114
    %p123 = scmp.eq.s32.totalorder %s16, 0
    %p124 = por %p122, %p123
    %p125 = scmp.ne.s32.totalorder %s113, %s114
    %p126 = scmp.eq.s32.totalorder %s17, 1
    %p127 = por %p125, %p126
    %p129 = scmp.ne.s32.totalorder %s114, %s128
    %p130 = scmp.eq.s32.totalorder %s17, 0
    %p131 = por %p129, %p130
    %s133 = sadd.s32 %s132, 1
    %p136 = scmp.eq.s32.totalorder %s11, 1
    %p137 = scmp.ne.s32.totalorder %s132, %s134
    %p138 = scmp.eq.s32.totalorder %s11, 0
    %p139 = por %p137, %p138
    %p140 = scmp.ne.s32.totalorder %s132, %s134
    %p141 = scmp.eq.s32.totalorder %s16, 1
    %p142 = por %p140, %p141
    %p143 = scmp.ne.s32.totalorder %s134, %s135
    %p144 = scmp.eq.s32.totalorder %s16, 0
    %p145 = por %p143, %p144
    %p146 = scmp.ne.s32.totalorder %s134, %s135
    %p147 = scmp.eq.s32.totalorder %s17, 1
    %p148 = por %p146, %p147
    %p150 = scmp.ne.s32.totalorder %s135, %s149
    %p151 = scmp.eq.s32.totalorder %s17, 0
    %p152 = por %p150, %p151
    %s153 = ssub.s32 %s18, %s30
    %s154 = ssub.s32 %s19, %s26
    %s155 = sor.u32 %s153, %s154
    %p156 = scmp.eq.s32.totalorder %s155, 0
    %s158 = sadd.s32 %s157, 1
    %s159 = scalar_select %p156, %s157, %s158
    %p162 = pneg %p156
    %p163 = scmp.eq.s32.totalorder %s11, 1
    %p164 = por %p162, %p163
    %p165 = scmp.ne.s32.totalorder %s157, %s160
    %p166 = scmp.eq.s32.totalorder %s11, 0
    %p167 = por %p165, %p166
    %p168 = scmp.ne.s32.totalorder %s157, %s160
    %p169 = scmp.eq.s32.totalorder %s16, 1
    %p170 = por %p168, %p169
    %p171 = scmp.ne.s32.totalorder %s160, %s161
    %p172 = scmp.eq.s32.totalorder %s16, 0
    %p173 = por %p171, %p172
    %p174 = scmp.ne.s32.totalorder %s160, %s161
    %p175 = scmp.eq.s32.totalorder %s17, 1
    %p176 = por %p174, %p175
    %p178 = scmp.ne.s32.totalorder %s161, %s177
    %p179 = scmp.eq.s32.totalorder %s17, 0
    %p180 = por %p178, %p179
    %p181 = scmp.le.s32.totalorder 1, %s11
    %p182 = scmp.lt.s32.totalorder %s11, 3
    %p183 = pnand %p181, %p182
    %p184 = pneg %p183
    // Predicated region
    $region9: #{sc_block_forward.75} parent=5 // pred_check
      _
    $region10: #{sc_block_forward.75} parent=5 // pred_check_branch
      %186 = sbr.rel (%p183) target = $region12
    $region11: #{sc_block_forward.75} parent=5 // pred_region
      %s187 = ssub.s32 %s11, 1
      // Predicated region
      $region13: #{sc_block_forward.75} parent=11 // pred_check
        %p188 = pneg %p124
      $region14: #{sc_block_forward.75} parent=11 // pred_check_branch
        %190 = sbr.rel (%p188) target = $region16
      $region15: #{sc_block_forward.75} parent=11 // pred_region
        _
      $region16: #{sc_block_forward.75} parent=11 // pred_fallthru
        _
      // Predicated region
      $region17: #{sc_block_forward.75} parent=11 // pred_check
        %p191 = pneg %p145
      $region18: #{sc_block_forward.75} parent=11 // pred_check_branch
        %193 = sbr.rel (%p191) target = $region20
      $region19: #{sc_block_forward.75} parent=11 // pred_region
        _
      $region20: #{sc_block_forward.75} parent=11 // pred_fallthru
        _
    $region12: #{sc_block_forward.75} parent=5 // pred_fallthru
      _
    %p194 = scmp.lt.s32.totalorder %s11, 2
    // Predicated region
    $region21: #{sc_block_forward.75} parent=5 // pred_check
      %p195 = pneg %p194
    $region22: #{sc_block_forward.75} parent=5 // pred_check_branch
      %197 = sbr.rel (%p195) target = $region24
    $region23: #{sc_block_forward.75} parent=5 // pred_region
      // Predicated region
      $region25: #{sc_block_forward.75} parent=23 // pred_check
        %p198 = pneg %p45
      $region26: #{sc_block_forward.75} parent=23 // pred_check_branch
        %200 = sbr.rel (%p198) target = $region28
      $region27: #{sc_block_forward.75} parent=23 // pred_region
        %s201 = smul.u32 2, %s19
        %p202 = scmp.lt.s32.totalorder %s18, 1
        %s203 = scalar_select %p202, %s18, 1
        %p204 = scmp.lt.s32.totalorder %s201, 1
        %s205 = scalar_select %p204, %s201, 1
        %s206 = smul.addr %s205, 3
        %s207 = smul.addr %s203, 6
        %s208 = sadd.s32 %s206, %s207
        %s209 = smul.addr %s208, 8
        %s210 = scalar_lea.vmem %s0, %s209
        %s211 = smul.u32 2, %s19
      $region28: #{sc_block_forward.75} parent=23 // pred_fallthru
        _
      // Predicated region
      $region29: #{sc_block_forward.75} parent=23 // pred_check
        %p212 = pneg %p71
      $region30: #{sc_block_forward.75} parent=23 // pred_check_branch
        %214 = sbr.rel (%p212) target = $region32
      $region31: #{sc_block_forward.75} parent=23 // pred_region
        %p215 = scmp.lt.s32.totalorder %s18, 1
        %s216 = scalar_select %p215, %s18, 1
        %s217 = smul.addr %s216, 3
        %s218 = scalar_lea.vmem %s1, %s217
      $region32: #{sc_block_forward.75} parent=23 // pred_fallthru
        _
      // Predicated region
      $region33: #{sc_block_forward.75} parent=23 // pred_check
        %p219 = pneg %p97
      $region34: #{sc_block_forward.75} parent=23 // pred_check_branch
        %221 = sbr.rel (%p219) target = $region36
      $region35: #{sc_block_forward.75} parent=23 // pred_region
        %p222 = scmp.lt.s32.totalorder %s18, 1
        %s223 = scalar_select %p222, %s18, 1
        %s224 = smul.addr %s223, 3
        %s225 = scalar_lea.vmem %s2, %s224
      $region36: #{sc_block_forward.75} parent=23 // pred_fallthru
        _
    $region24: #{sc_block_forward.75} parent=5 // pred_fallthru
      _
    %p226 = scmp.le.s32.totalorder 1, %s11
    %p227 = scmp.lt.s32.totalorder %s11, 3
    %p228 = pnand %p226, %p227
    %p229 = pneg %p228
    // Predicated region
    $region37: #{sc_block_forward.75} parent=5 // pred_check
      _
    $region38: #{sc_block_forward.75} parent=5 // pred_check_branch
      %231 = sbr.rel (%p228) target = $region40
    $region39: #{sc_block_forward.75} parent=5 // pred_region
      %s232 = ssub.s32 %s11, 1
      %s233 = smul.u32 2, %s21
      %p234 = scmp.lt.s32.totalorder %s20, 1
      %s235 = scalar_select %p234, %s20, 1
      %p236 = scmp.lt.s32.totalorder %s233, 1
      %s237 = scalar_select %p236, %s233, 1
      %s238 = smul.addr %s237, 3
      %s239 = smul.addr %s235, 6
      %s240 = sadd.s32 %s238, %s239
      %s241 = smul.addr %s240, 8
      %s242 = scalar_lea.vmem %s0, %s241
      %p243 = pneg %p51
      %p244 = pneg %p48
      %p245 = scmp.lt.s32.totalorder %s20, 1
      %s246 = scalar_select %p245, %s20, 1
      %s247 = smul.addr %s246, 3
      %s248 = scalar_lea.vmem %s1, %s247
      %p249 = pneg %p77
      %p250 = pneg %p74
      %p251 = scmp.lt.s32.totalorder %s20, 1
      %s252 = scalar_select %p251, %s20, 1
      %s253 = smul.addr %s252, 3
      %s254 = scalar_lea.vmem %s2, %s253
      %p255 = pneg %p103
      %p256 = pneg %p100
      %p257 = pneg %p124
      %p258 = pneg %p121
      %p259 = pneg %p145
      %p260 = pneg %p142
      %p261 = pneg %p173
      %p262 = pneg %p170
      %s263 = smul.u32 2, %s21
      %p264 = scmp.lt.s32.totalorder %s20, 1
      %s265 = scalar_select %p264, %s20, 1
      %p266 = scmp.lt.s32.totalorder %s263, 1
      %s267 = scalar_select %p266, %s263, 1
      %s268 = smul.addr %s265, 2
      %s269 = sadd.s32 %s267, %s268
      %s270 = smul.addr %s269, 8
      %s271 = scalar_lea.vmem %s5, %s270
      %s272 = smul.u32 2, %s21
      %p273 = scmp.lt.s32.totalorder %s20, 1
      %s274 = scalar_select %p273, %s20, 1
      %p275 = scmp.lt.s32.totalorder %s272, 1
      %s276 = scalar_select %p275, %s272, 1
      %s277 = smul.addr %s276, 3
      %s278 = smul.addr %s274, 6
      %s279 = sadd.s32 %s277, %s278
      %s280 = smul.addr %s279, 8
      %s281 = scalar_lea.vmem %s0, %s280
      %s282 = smul.u32 2, %s21
      %p283 = scmp.lt.s32.totalorder %s20, 1
      %s284 = scalar_select %p283, %s20, 1
      %s285 = smul.addr %s284, 3
      %s286 = scalar_lea.vmem %s1, %s285
      %p287 = scmp.lt.s32.totalorder %s20, 1
      %s288 = scalar_select %p287, %s20, 1
      %s289 = smul.addr %s288, 3
      %s290 = scalar_lea.vmem %s2, %s289
      %s291 = smul.u32 2, %s21
      %p292 = scmp.lt.s32.totalorder %s20, 1
      %s293 = scalar_select %p292, %s20, 1
      %p294 = scmp.lt.s32.totalorder %s291, 1
      %s295 = scalar_select %p294, %s291, 1
      %s296 = smul.addr %s293, 2
      %s297 = sadd.s32 %s295, %s296
      %s298 = smul.addr %s297, 8
      %s299 = scalar_lea.vmem %s5, %s298
      %s300 = smul.u32 2, %s21
      %v301 = vld [vmem:[%s281] sm:$0xff]
      %v302 = vld [vmem:[%s281 + $0x8] sm:$0xff]
      %v303 = vld [vmem:[%s281 + $0x10] sm:$0xff]
      %v304 = vld [vmem:[%s281 + $0x18] sm:$0xff]
      %v305 = vld [vmem:[%s281 + $0x20] sm:$0xff]
      %v306 = vld [vmem:[%s281 + $0x28] sm:$0xff]
      %v307 = vld [vmem:[%s286] sm:$0x7]
      %v309 = vlaneseq
      %v310 = vshrl.u32 %v309, 7
      %v311 = vsub.s32 0, %v310
      %v312 = vrot.slane %v307, %v311
      %v313 = vlaneseq
      %v314 = vshrl.u32 %v313, 7
      %v315 = vsub.s32 1, %v314
      %v316 = vrot.slane %v307, %v315
      %v317 = vlaneseq
      %v318 = vshrl.u32 %v317, 7
      %v319 = vsub.s32 2, %v318
      %v320 = vrot.slane %v307, %v319
      %v324 = vmul.f32 %v301, %v312
      %v325 = vmul.f32 %v302, %v316
      %v326 = vmul.f32 %v303, %v320
      %v327 = vmul.f32 %v304, %v312
      %v328 = vmul.f32 %v305, %v316
      %v329 = vmul.f32 %v306, %v320
      %v330 = vld [vmem:[%s290] sm:$0x7]
      %v332 = vlaneseq
      %v333 = vshrl.u32 %v332, 7
      %v334 = vsub.s32 0, %v333
      %v335 = vrot.slane %v330, %v334
      %v336 = vlaneseq
      %v337 = vshrl.u32 %v336, 7
      %v338 = vsub.s32 1, %v337
      %v339 = vrot.slane %v330, %v338
      %v340 = vlaneseq
      %v341 = vshrl.u32 %v340, 7
      %v342 = vsub.s32 2, %v341
      %v343 = vrot.slane %v330, %v342
      %v347 = vadd.f32 %v324, %v335
      %v348 = vadd.f32 %v325, %v339
      %v349 = vadd.f32 %v326, %v343
      %v350 = vadd.f32 %v327, %v335
      %v351 = vadd.f32 %v328, %v339
      %v352 = vadd.f32 %v329, %v343
      %v353 = vmax.f32 %v347, 0.0
      %v354 = vmax.f32 %v348, 0.0
      %v355 = vmax.f32 %v349, 0.0
      %v356 = vmax.f32 %v350, 0.0
      %v357 = vmax.f32 %v351, 0.0
      %v358 = vmax.f32 %v352, 0.0
      %v359 = vld [vmem:[%s3] sm:$0xff]
      %v360 = vld [vmem:[%s3 + $0x8] sm:$0xff]
      %v361 = vld [vmem:[%s3 + $0x10] sm:$0xff]
      %v362 = vld [vmem:[%s3 + $0x18] sm:$0xff]
      %v363 = vld [vmem:[%s3 + $0x20] sm:$0xff]
      %v364 = vld [vmem:[%s3 + $0x28] sm:$0xff]
      %v365 = vld [vmem:[%s3 + $0x30] sm:$0xff]
      %v366 = vld [vmem:[%s3 + $0x38] sm:$0xff]
      %v367 = vld [vmem:[%s3 + $0x40] sm:$0xff]
      %v368 = vld [vmem:[%s3 + $0x48] sm:$0xff]
      %v369 = vld [vmem:[%s3 + $0x50] sm:$0xff]
      %v370 = vld [vmem:[%s3 + $0x58] sm:$0xff]
      %v371 = vld [vmem:[%s3 + $0x60] sm:$0xff]
      %v372 = vld [vmem:[%s3 + $0x68] sm:$0xff]
      %v373 = vld [vmem:[%s3 + $0x70] sm:$0xff]
      %v374 = vld [vmem:[%s3 + $0x78] sm:$0xff]
      %v375 = vld [vmem:[%s3 + $0x80] sm:$0xff]
      %v376 = vld [vmem:[%s3 + $0x88] sm:$0xff]
      %v377 = vld [vmem:[%s3 + $0x90] sm:$0xff]
      %v378 = vld [vmem:[%s3 + $0x98] sm:$0xff]
      %v379 = vld [vmem:[%s3 + $0xa0] sm:$0xff]
      %v380 = vld [vmem:[%s3 + $0xa8] sm:$0xff]
      %v381 = vld [vmem:[%s3 + $0xb0] sm:$0xff]
      %v382 = vld [vmem:[%s3 + $0xb8] sm:$0xff]
      %v383 = vld [vmem:[%s3 + $0xc0] sm:$0xff]
      %v384 = vld [vmem:[%s3 + $0xc8] sm:$0xff]
      %v385 = vld [vmem:[%s3 + $0xd0] sm:$0xff]
      %v386 = vld [vmem:[%s3 + $0xd8] sm:$0xff]
      %v387 = vld [vmem:[%s3 + $0xe0] sm:$0xff]
      %v388 = vld [vmem:[%s3 + $0xe8] sm:$0xff]
      %v389 = vld [vmem:[%s3 + $0xf0] sm:$0xff]
      %v390 = vld [vmem:[%s3 + $0xf8] sm:$0xff]
      %v391 = vld [vmem:[%s3 + $0x100] sm:$0xff]
      %v392 = vld [vmem:[%s3 + $0x108] sm:$0xff]
      %v393 = vld [vmem:[%s3 + $0x110] sm:$0xff]
      %v394 = vld [vmem:[%s3 + $0x118] sm:$0xff]
      %v395 = vld [vmem:[%s3 + $0x120] sm:$0xff]
      %v396 = vld [vmem:[%s3 + $0x128] sm:$0xff]
      %v397 = vld [vmem:[%s3 + $0x130] sm:$0xff]
      %v398 = vld [vmem:[%s3 + $0x138] sm:$0xff]
      %v399 = vld [vmem:[%s3 + $0x140] sm:$0xff]
      %v400 = vld [vmem:[%s3 + $0x148] sm:$0xff]
      %v401 = vld [vmem:[%s3 + $0x150] sm:$0xff]
      %v402 = vld [vmem:[%s3 + $0x158] sm:$0xff]
      %v403 = vld [vmem:[%s3 + $0x160] sm:$0xff]
      %v404 = vld [vmem:[%s3 + $0x168] sm:$0xff]
      %v405 = vld [vmem:[%s3 + $0x170] sm:$0xff]
      %v406 = vld [vmem:[%s3 + $0x178] sm:$0xff]
      %v407 = vld [vmem:[%s4] sm:$0x1]
      %v409 = vlaneseq
      %v410 = vshrl.u32 %v409, 7
      %v411 = vsub.s32 0, %v410
      %v412 = vrot.slane %v407, %v411
      %414 = vmatprep.subr.mxu0 0.0
      %415 = vmatpush1.msra.mxu0 %v359
      %416 = vmatprep.subr.mxu0 0.0
      %417 = vmatpush1.msra.mxu0 %v360
      %418 = vmatprep.subr.mxu0 0.0
      %419 = vmatpush1.msra.mxu0 %v361
      %420 = vmatprep.subr.mxu0 0.0
      %421 = vmatpush1.msra.mxu0 %v362
      %422 = vmatprep.subr.mxu0 0.0
      %423 = vmatpush1.msra.mxu0 %v363
      %424 = vmatprep.subr.mxu0 0.0
      %425 = vmatpush1.msra.mxu0 %v364
      %426 = vmatprep.subr.mxu0 0.0
      %427 = vmatpush1.msra.mxu0 %v365
      %428 = vmatprep.subr.mxu0 0.0
      %429 = vmatpush1.msra.mxu0 %v366
      %430 = vmatprep.subr.mxu0 0.0
      %431 = vmatpush1.msra.mxu0 %v367
      %432 = vmatprep.subr.mxu0 0.0
      %433 = vmatpush1.msra.mxu0 %v368
      %434 = vmatprep.subr.mxu0 0.0
      %435 = vmatpush1.msra.mxu0 %v369
      %436 = vmatprep.subr.mxu0 0.0
      %437 = vmatpush1.msra.mxu0 %v370
      %438 = vmatprep.subr.mxu0 0.0
      %439 = vmatpush1.msra.mxu0 %v371
      %440 = vmatprep.subr.mxu0 0.0
      %441 = vmatpush1.msra.mxu0 %v372
      %442 = vmatprep.subr.mxu0 0.0
      %443 = vmatpush1.msra.mxu0 %v373
      %444 = vmatprep.subr.mxu0 0.0
      %445 = vmatpush1.msra.mxu0 %v374
      %446 = vmatprep.subr.mxu0 0.0
      %447 = vmatpush1.msra.mxu0 %v375
      %448 = vmatprep.subr.mxu0 0.0
      %449 = vmatpush1.msra.mxu0 %v376
      %450 = vmatprep.subr.mxu0 0.0
      %451 = vmatpush1.msra.mxu0 %v377
      %452 = vmatprep.subr.mxu0 0.0
      %453 = vmatpush1.msra.mxu0 %v378
      %454 = vmatprep.subr.mxu0 0.0
      %455 = vmatpush1.msra.mxu0 %v379
      %456 = vmatprep.subr.mxu0 0.0
      %457 = vmatpush1.msra.mxu0 %v380
      %458 = vmatprep.subr.mxu0 0.0
      %459 = vmatpush1.msra.mxu0 %v381
      %460 = vmatprep.subr.mxu0 0.0
      %461 = vmatpush1.msra.mxu0 %v382
      %462 = vmatprep.subr.mxu0 0.0
      %463 = vmatpush1.msra.mxu0 %v383
      %464 = vmatprep.subr.mxu0 0.0
      %465 = vmatpush1.msra.mxu0 %v384
      %466 = vmatprep.subr.mxu0 0.0
      %467 = vmatpush1.msra.mxu0 %v385
      %468 = vmatprep.subr.mxu0 0.0
      %469 = vmatpush1.msra.mxu0 %v386
      %470 = vmatprep.subr.mxu0 0.0
      %471 = vmatpush1.msra.mxu0 %v387
      %472 = vmatprep.subr.mxu0 0.0
      %473 = vmatpush1.msra.mxu0 %v388
      %474 = vmatprep.subr.mxu0 0.0
      %475 = vmatpush1.msra.mxu0 %v389
      %476 = vmatprep.subr.mxu0 0.0
      %477 = vmatpush1.msra.mxu0 %v390
      %478 = vmatprep.mubr.f32.mxu0 %v354
      %479 = vmatmul.mubr.f32.gmra.mrb[0].mxu0 %v353
      %v480 = vpop.f32.mrb[0].mxu0
      %v481 = vadd.f32 %v412, %v480
      %v482 = vpop.f32.mrb[0].mxu0
      %483 = vmatprep.mubr.f32.mxu0 %v357
      %484 = vmatmul.mubr.f32.gmra.mrb[0].mxu0 %v356
      %v485 = vpop.f32.mrb[0].mxu0
      %v486 = vadd.f32 %v412, %v485
      %v487 = vpop.f32.mrb[0].mxu0
      %488 = vdwg.mxu0
      %489 = vmatprep.subr.mxu0 0.0
      %490 = vmatpush1.msra.mxu0 %v391
      %491 = vmatprep.subr.mxu0 0.0
      %492 = vmatpush1.msra.mxu0 %v392
      %493 = vmatprep.subr.mxu0 0.0
      %494 = vmatpush1.msra.mxu0 %v393
      %495 = vmatprep.subr.mxu0 0.0
      %496 = vmatpush1.msra.mxu0 %v394
      %497 = vmatprep.subr.mxu0 0.0
      %498 = vmatpush1.msra.mxu0 %v395
      %499 = vmatprep.subr.mxu0 0.0
      %500 = vmatpush1.msra.mxu0 %v396
      %501 = vmatprep.subr.mxu0 0.0
      %502 = vmatpush1.msra.mxu0 %v397
      %503 = vmatprep.subr.mxu0 0.0
      %504 = vmatpush1.msra.mxu0 %v398
      %505 = vmatprep.subr.mxu0 0.0
      %506 = vmatpush1.msra.mxu0 %v399
      %507 = vmatprep.subr.mxu0 0.0
      %508 = vmatpush1.msra.mxu0 %v400
      %509 = vmatprep.subr.mxu0 0.0
      %510 = vmatpush1.msra.mxu0 %v401
      %511 = vmatprep.subr.mxu0 0.0
      %512 = vmatpush1.msra.mxu0 %v402
      %513 = vmatprep.subr.mxu0 0.0
      %514 = vmatpush1.msra.mxu0 %v403
      %515 = vmatprep.subr.mxu0 0.0
      %516 = vmatpush1.msra.mxu0 %v404
      %517 = vmatprep.subr.mxu0 0.0
      %518 = vmatpush1.msra.mxu0 %v405
      %519 = vmatprep.subr.mxu0 0.0
      %520 = vmatpush1.msra.mxu0 %v406
      %521 = vmatprep.subr.mxu0 0.0
      %522 = vmatpush1.msra.mxu0 0.0
      %523 = vmatprep.subr.mxu0 0.0
      %524 = vmatpush1.msra.mxu0 0.0
      %525 = vmatprep.subr.mxu0 0.0
      %526 = vmatpush1.msra.mxu0 0.0
      %527 = vmatprep.subr.mxu0 0.0
      %528 = vmatpush1.msra.mxu0 0.0
      %529 = vmatprep.subr.mxu0 0.0
      %530 = vmatpush1.msra.mxu0 0.0
      %531 = vmatprep.subr.mxu0 0.0
      %532 = vmatpush1.msra.mxu0 0.0
      %533 = vmatprep.subr.mxu0 0.0
      %534 = vmatpush1.msra.mxu0 0.0
      %535 = vmatprep.subr.mxu0 0.0
      %536 = vmatpush1.msra.mxu0 0.0
      %537 = vmatprep.subr.mxu0 0.0
      %538 = vmatpush1.msra.mxu0 0.0
      %539 = vmatprep.subr.mxu0 0.0
      %540 = vmatpush1.msra.mxu0 0.0
      %541 = vmatprep.subr.mxu0 0.0
      %542 = vmatpush1.msra.mxu0 0.0
      %543 = vmatprep.subr.mxu0 0.0
      %544 = vmatpush1.msra.mxu0 0.0
      %545 = vmatprep.subr.mxu0 0.0
      %546 = vmatpush1.msra.mxu0 0.0
      %547 = vmatprep.subr.mxu0 0.0
      %548 = vmatpush1.msra.mxu0 0.0
      %549 = vmatprep.subr.mxu0 0.0
      %550 = vmatpush1.msra.mxu0 0.0
      %551 = vmatprep.subr.mxu0 0.0
      %552 = vmatpush1.msra.mxu0 0.0
      %553 = vmatprep.mubr.f32.mxu0 0.0
      %554 = vmatmul.mubr.f32.gmra.mrb[0].mxu0 %v355
      %v555 = vpop.f32.mrb[0].mxu0
      %v556 = vadd.f32 %v481, %v555
      %v557 = vpop.f32.mrb[0].mxu0
      %558 = vmatprep.mubr.f32.mxu0 0.0
      %559 = vmatmul.mubr.f32.gmra.mrb[0].mxu0 %v358
      %v560 = vpop.f32.mrb[0].mxu0
      %v561 = vadd.f32 %v486, %v560
      %v562 = vpop.f32.mrb[0].mxu0
      %563 = vdwg.mxu0
      %564 = vst [vmem:[%s299] sm:$0xff] %v556
      %565 = vst [vmem:[%s299 + $0x8] sm:$0xff] %v561
      %s566 = smul.u32 2, %s21
      %p567 = scmp.lt.s32.totalorder %s20, 1
      %s568 = scalar_select %p567, %s20, 1
      %p569 = scmp.lt.s32.totalorder %s566, 1
      %s570 = scalar_select %p569, %s566, 1
      %s571 = smul.addr %s568, 2
      %s572 = sadd.s32 %s570, %s571
      %s573 = smul.addr %s572, 8
      %s574 = scalar_lea.vmem %s5, %s573
      // Predicated region
      $region41: #{sc_block_forward.75} parent=39 // pred_check
        %p575 = pneg %p170
      $region42: #{sc_block_forward.75} parent=39 // pred_check_branch
        %577 = sbr.rel (%p575) target = $region44
      $region43: #{sc_block_forward.75} parent=39 // pred_region
        %s578 = smul.u32 2, %s21
      $region44: #{sc_block_forward.75} parent=39 // pred_fallthru
        _
    $region40: #{sc_block_forward.75} parent=5 // pred_fallthru
      _
    %p579 = scmp.le.s32.totalorder 2, %s11
    // Predicated region
    $region45: #{sc_block_forward.75} parent=5 // pred_check
      %p580 = pneg %p579
    $region46: #{sc_block_forward.75} parent=5 // pred_check_branch
      %582 = sbr.rel (%p580) target = $region48
    $region47: #{sc_block_forward.75} parent=5 // pred_region
      %s583 = ssub.s32 %s11, 2
      // Predicated region
      $region49: #{sc_block_forward.75} parent=47 // pred_check
        %p584 = pneg %p176
      $region50: #{sc_block_forward.75} parent=47 // pred_check_branch
        %586 = sbr.rel (%p584) target = $region52
      $region51: #{sc_block_forward.75} parent=47 // pred_region
        %s587 = smul.u32 2, %s23
        %p588 = scmp.lt.s32.totalorder %s22, 1
        %s589 = scalar_select %p588, %s22, 1
        %p590 = scmp.lt.s32.totalorder %s587, 1
        %s591 = scalar_select %p590, %s587, 1
        %s592 = smul.addr %s589, 2
        %s593 = sadd.s32 %s591, %s592
        %s594 = smul.addr %s593, 8
        %s595 = scalar_lea.vmem %s5, %s594
      $region52: #{sc_block_forward.75} parent=47 // pred_fallthru
        _
    $region48: #{sc_block_forward.75} parent=5 // pred_fallthru
      _
  $region6: #{sc_block_forward.75} parent=0 // loop_footer
    %s15 = sadd.s32 1, %s11
  $region7: #{sc_block_forward.75} parent=0 // loop_footer_branch
    %10 = sbr.rel target = $region3
  $region8: #{sc_block_forward.75} parent=0 // loop_exit
    _

// kernel: sc_block_forward.98
$region0: #{sc_block_forward.98}
  #allocation0 [shape = 'u32[]', space=smem, size = 0x4, offset = 0x4, fixed_abs, tag = 'smem constant byte address 0x4 - core index']
  #allocation1 [shape = 'u32[144,128]{1,0:T(1,128)}', space=vmem, size = 0x12000, scoped, tag = 'internal scratch']
  %s0 = inlined_call_operand.vmem [shape: f32[2,16,128], index: 0, kind: input, shape index: {}]
  %s1 = inlined_call_operand.vmem [shape: f32[2,1,128], index: 1, kind: input, shape index: {}]
  %s2 = inlined_call_operand.vmem [shape: f32[2,1,128], index: 2, kind: input, shape index: {}]
  %s3 = inlined_call_operand.vmem [shape: f32[2,16,128], index: 3, kind: input, shape index: {}]
  %s4 = inlined_call_operand.vmem [shape: f32[2,16,128], index: 4, kind: output, shape index: {}]
  %s5 = sld [smem:[#allocation0]]
  $region49: #{sc_block_forward.98} parent=0
    _
  %s7 = ssub.s32 1, %s5
  %s8 = scalar_select 0, %s7, %s5
  loop: start=0, step=1, limit=4
  $region2: #{sc_block_forward.98} parent=0 // loop_pre_header
    _
  $region3: #{sc_block_forward.98} parent=0 // loop_header
    %s10 = sphi 0, %s14
    %p11 = scmp.ge.s32.totalorder %s10, 4
    %s17 = sphi 0, %s29
    %s18 = sphi 0, %s25
    %s19 = sphi 0, %s17
    %s20 = sphi 0, %s18
    %s21 = sphi 0, %s19
    %s22 = sphi 0, %s20
    %s34 = sphi 0, %s36
    %s37 = sphi 0, %s34
    %s38 = sphi 0, %s37
    %s54 = sphi 0, %s38
    %s60 = sphi 0, %s62
    %s63 = sphi 0, %s60
    %s64 = sphi 0, %s63
    %s80 = sphi 0, %s64
    %s86 = sphi 0, %s88
    %s89 = sphi 0, %s86
    %s90 = sphi 0, %s89
    %s106 = sphi 0, %s90
    %s114 = sphi 0, %s116
    %s117 = sphi 0, %s114
    %s118 = sphi 0, %s117
    %s134 = sphi 0, %s118
    %s142 = sphi 0, %s144
    %s145 = sphi 0, %s142
    %s146 = sphi 0, %s145
    %s162 = sphi 0, %s146
  $region4: #{sc_block_forward.98} parent=0 // loop_header_branch
    %13 = sbr.rel (%p11) target = $region8
  $region5: #{sc_block_forward.98} parent=0 // loop_body
    %s15 = ssub.s32 %s10, 1
    %s16 = ssub.s32 %s10, 2
    %s23 = sadd.s32 1, %s18
    %p24 = scmp.ge.s32.totalorder %s23, 1
    %s25 = scalar_select %p24, 0, %s23
    %s26 = sadd.s32 1, %s17
    %s27 = scalar_select %p24, %s26, %s17
    %p28 = scmp.ge.s32.totalorder %s27, 2
    %s29 = scalar_select %p28, 0, %s27
    %s30 = ssub.s32 %s17, %s29
    %s31 = ssub.s32 %s18, %s25
    %s32 = sor.u32 %s30, %s31
    %p33 = scmp.eq.s32.totalorder %s32, 0
    %s35 = sadd.s32 %s34, 1
    %s36 = scalar_select %p33, %s34, %s35
    %p39 = pneg %p33
    %p40 = scmp.eq.s32.totalorder %s10, 1
    %p41 = por %p39, %p40
    %p42 = scmp.ne.s32.totalorder %s34, %s37
    %p43 = scmp.eq.s32.totalorder %s10, 0
    %p44 = por %p42, %p43
    %p45 = scmp.ne.s32.totalorder %s34, %s37
    %p46 = scmp.eq.s32.totalorder %s15, 1
    %p47 = por %p45, %p46
    %p48 = scmp.ne.s32.totalorder %s37, %s38
    %p49 = scmp.eq.s32.totalorder %s15, 0
    %p50 = por %p48, %p49
    %p51 = scmp.ne.s32.totalorder %s37, %s38
    %p52 = scmp.eq.s32.totalorder %s16, 1
    %p53 = por %p51, %p52
    %p55 = scmp.ne.s32.totalorder %s38, %s54
    %p56 = scmp.eq.s32.totalorder %s16, 0
    %p57 = por %p55, %p56
    %s58 = ssub.s32 %s17, %s29
    %p59 = scmp.eq.s32.totalorder %s58, 0
    %s61 = sadd.s32 %s60, 1
    %s62 = scalar_select %p59, %s60, %s61
    %p65 = pneg %p59
    %p66 = scmp.eq.s32.totalorder %s10, 1
    %p67 = por %p65, %p66
    %p68 = scmp.ne.s32.totalorder %s60, %s63
    %p69 = scmp.eq.s32.totalorder %s10, 0
    %p70 = por %p68, %p69
    %p71 = scmp.ne.s32.totalorder %s60, %s63
    %p72 = scmp.eq.s32.totalorder %s15, 1
    %p73 = por %p71, %p72
    %p74 = scmp.ne.s32.totalorder %s63, %s64
    %p75 = scmp.eq.s32.totalorder %s15, 0
    %p76 = por %p74, %p75
    %p77 = scmp.ne.s32.totalorder %s63, %s64
    %p78 = scmp.eq.s32.totalorder %s16, 1
    %p79 = por %p77, %p78
    %p81 = scmp.ne.s32.totalorder %s64, %s80
    %p82 = scmp.eq.s32.totalorder %s16, 0
    %p83 = por %p81, %p82
    %s84 = ssub.s32 %s17, %s29
    %p85 = scmp.eq.s32.totalorder %s84, 0
    %s87 = sadd.s32 %s86, 1
    %s88 = scalar_select %p85, %s86, %s87
    %p91 = pneg %p85
    %p92 = scmp.eq.s32.totalorder %s10, 1
    %p93 = por %p91, %p92
    %p94 = scmp.ne.s32.totalorder %s86, %s89
    %p95 = scmp.eq.s32.totalorder %s10, 0
    %p96 = por %p94, %p95
    %p97 = scmp.ne.s32.totalorder %s86, %s89
    %p98 = scmp.eq.s32.totalorder %s15, 1
    %p99 = por %p97, %p98
    %p100 = scmp.ne.s32.totalorder %s89, %s90
    %p101 = scmp.eq.s32.totalorder %s15, 0
    %p102 = por %p100, %p101
    %p103 = scmp.ne.s32.totalorder %s89, %s90
    %p104 = scmp.eq.s32.totalorder %s16, 1
    %p105 = por %p103, %p104
    %p107 = scmp.ne.s32.totalorder %s90, %s106
    %p108 = scmp.eq.s32.totalorder %s16, 0
    %p109 = por %p107, %p108
    %s110 = ssub.s32 %s17, %s29
    %s111 = ssub.s32 %s18, %s25
    %s112 = sor.u32 %s110, %s111
    %p113 = scmp.eq.s32.totalorder %s112, 0
    %s115 = sadd.s32 %s114, 1
    %s116 = scalar_select %p113, %s114, %s115
    %p119 = pneg %p113
    %p120 = scmp.eq.s32.totalorder %s10, 1
    %p121 = por %p119, %p120
    %p122 = scmp.ne.s32.totalorder %s114, %s117
    %p123 = scmp.eq.s32.totalorder %s10, 0
    %p124 = por %p122, %p123
    %p125 = scmp.ne.s32.totalorder %s114, %s117
    %p126 = scmp.eq.s32.totalorder %s15, 1
    %p127 = por %p125, %p126
    %p128 = scmp.ne.s32.totalorder %s117, %s118
    %p129 = scmp.eq.s32.totalorder %s15, 0
    %p130 = por %p128, %p129
    %p131 = scmp.ne.s32.totalorder %s117, %s118
    %p132 = scmp.eq.s32.totalorder %s16, 1
    %p133 = por %p131, %p132
    %p135 = scmp.ne.s32.totalorder %s118, %s134
    %p136 = scmp.eq.s32.totalorder %s16, 0
    %p137 = por %p135, %p136
    %s138 = ssub.s32 %s17, %s29
    %s139 = ssub.s32 %s18, %s25
    %s140 = sor.u32 %s138, %s139
    %p141 = scmp.eq.s32.totalorder %s140, 0
    %s143 = sadd.s32 %s142, 1
    %s144 = scalar_select %p141, %s142, %s143
    %p147 = pneg %p141
    %p148 = scmp.eq.s32.totalorder %s10, 1
    %p149 = por %p147, %p148
    %p150 = scmp.ne.s32.totalorder %s142, %s145
    %p151 = scmp.eq.s32.totalorder %s10, 0
    %p152 = por %p150, %p151
    %p153 = scmp.ne.s32.totalorder %s142, %s145
    %p154 = scmp.eq.s32.totalorder %s15, 1
    %p155 = por %p153, %p154
    %p156 = scmp.ne.s32.totalorder %s145, %s146
    %p157 = scmp.eq.s32.totalorder %s15, 0
    %p158 = por %p156, %p157
    %p159 = scmp.ne.s32.totalorder %s145, %s146
    %p160 = scmp.eq.s32.totalorder %s16, 1
    %p161 = por %p159, %p160
    %p163 = scmp.ne.s32.totalorder %s146, %s162
    %p164 = scmp.eq.s32.totalorder %s16, 0
    %p165 = por %p163, %p164
    %p166 = scmp.le.s32.totalorder 1, %s10
    %p167 = scmp.lt.s32.totalorder %s10, 3
    %p168 = pnand %p166, %p167
    %p169 = pneg %p168
    // Predicated region
    $region9: #{sc_block_forward.98} parent=5 // pred_check
      _
    $region10: #{sc_block_forward.98} parent=5 // pred_check_branch
      %171 = sbr.rel (%p168) target = $region12
    $region11: #{sc_block_forward.98} parent=5 // pred_region
      %s172 = ssub.s32 %s10, 1
    $region12: #{sc_block_forward.98} parent=5 // pred_fallthru
      _
    %p173 = scmp.lt.s32.totalorder %s10, 2
    // Predicated region
    $region13: #{sc_block_forward.98} parent=5 // pred_check
      %p174 = pneg %p173
    $region14: #{sc_block_forward.98} parent=5 // pred_check_branch
      %176 = sbr.rel (%p174) target = $region16
    $region15: #{sc_block_forward.98} parent=5 // pred_region
      // Predicated region
      $region17: #{sc_block_forward.98} parent=15 // pred_check
        %p177 = pneg %p44
      $region18: #{sc_block_forward.98} parent=15 // pred_check_branch
        %179 = sbr.rel (%p177) target = $region20
      $region19: #{sc_block_forward.98} parent=15 // pred_region
        %s180 = smul.u32 2, %s18
        %p181 = scmp.lt.s32.totalorder %s17, 1
        %s182 = scalar_select %p181, %s17, 1
        %p183 = scmp.lt.s32.totalorder %s180, 1
        %s184 = scalar_select %p183, %s180, 1
        %s185 = smul.addr %s182, 2
        %s186 = sadd.s32 %s184, %s185
        %s187 = smul.addr %s186, 8
        %s188 = scalar_lea.vmem %s0, %s187
        %s189 = smul.u32 2, %s18
      $region20: #{sc_block_forward.98} parent=15 // pred_fallthru
        _
      // Predicated region
      $region21: #{sc_block_forward.98} parent=15 // pred_check
        %p190 = pneg %p70
      $region22: #{sc_block_forward.98} parent=15 // pred_check_branch
        %192 = sbr.rel (%p190) target = $region24
      $region23: #{sc_block_forward.98} parent=15 // pred_region
        %p193 = scmp.lt.s32.totalorder %s17, 1
        %s194 = scalar_select %p193, %s17, 1
        %s195 = scalar_lea.vmem %s1, %s194
      $region24: #{sc_block_forward.98} parent=15 // pred_fallthru
        _
      // Predicated region
      $region25: #{sc_block_forward.98} parent=15 // pred_check
        %p196 = pneg %p96
      $region26: #{sc_block_forward.98} parent=15 // pred_check_branch
        %198 = sbr.rel (%p196) target = $region28
      $region27: #{sc_block_forward.98} parent=15 // pred_region
        %p199 = scmp.lt.s32.totalorder %s17, 1
        %s200 = scalar_select %p199, %s17, 1
        %s201 = scalar_lea.vmem %s2, %s200
      $region28: #{sc_block_forward.98} parent=15 // pred_fallthru
        _
      // Predicated region
      $region29: #{sc_block_forward.98} parent=15 // pred_check
        %p202 = pneg %p124
      $region30: #{sc_block_forward.98} parent=15 // pred_check_branch
        %204 = sbr.rel (%p202) target = $region32
      $region31: #{sc_block_forward.98} parent=15 // pred_region
        %s205 = smul.u32 2, %s18
        %p206 = scmp.lt.s32.totalorder %s17, 1
        %s207 = scalar_select %p206, %s17, 1
        %p208 = scmp.lt.s32.totalorder %s205, 1
        %s209 = scalar_select %p208, %s205, 1
        %s210 = smul.addr %s207, 2
        %s211 = sadd.s32 %s209, %s210
        %s212 = smul.addr %s211, 8
        %s213 = scalar_lea.vmem %s3, %s212
        %s214 = smul.u32 2, %s18
      $region32: #{sc_block_forward.98} parent=15 // pred_fallthru
        _
    $region16: #{sc_block_forward.98} parent=5 // pred_fallthru
      _
    %p215 = scmp.le.s32.totalorder 1, %s10
    %p216 = scmp.lt.s32.totalorder %s10, 3
    %p217 = pnand %p215, %p216
    %p218 = pneg %p217
    // Predicated region
    $region33: #{sc_block_forward.98} parent=5 // pred_check
      _
    $region34: #{sc_block_forward.98} parent=5 // pred_check_branch
      %220 = sbr.rel (%p217) target = $region36
    $region35: #{sc_block_forward.98} parent=5 // pred_region
      %s221 = ssub.s32 %s10, 1
      %s222 = smul.u32 2, %s20
      %p223 = scmp.lt.s32.totalorder %s19, 1
      %s224 = scalar_select %p223, %s19, 1
      %p225 = scmp.lt.s32.totalorder %s222, 1
      %s226 = scalar_select %p225, %s222, 1
      %s227 = smul.addr %s224, 2
      %s228 = sadd.s32 %s226, %s227
      %s229 = smul.addr %s228, 8
      %s230 = scalar_lea.vmem %s0, %s229
      %p231 = pneg %p50
      %p232 = pneg %p47
      %p233 = scmp.lt.s32.totalorder %s19, 1
      %s234 = scalar_select %p233, %s19, 1
      %s235 = scalar_lea.vmem %s1, %s234
      %p236 = pneg %p76
      %p237 = pneg %p73
      %p238 = scmp.lt.s32.totalorder %s19, 1
      %s239 = scalar_select %p238, %s19, 1
      %s240 = scalar_lea.vmem %s2, %s239
      %p241 = pneg %p102
      %p242 = pneg %p99
      %s243 = smul.u32 2, %s20
      %p244 = scmp.lt.s32.totalorder %s19, 1
      %s245 = scalar_select %p244, %s19, 1
      %p246 = scmp.lt.s32.totalorder %s243, 1
      %s247 = scalar_select %p246, %s243, 1
      %s248 = smul.addr %s245, 2
      %s249 = sadd.s32 %s247, %s248
      %s250 = smul.addr %s249, 8
      %s251 = scalar_lea.vmem %s3, %s250
      %p252 = pneg %p130
      %p253 = pneg %p127
      %p254 = pneg %p158
      %p255 = pneg %p155
      %s256 = smul.u32 2, %s20
      %p257 = scmp.lt.s32.totalorder %s19, 1
      %s258 = scalar_select %p257, %s19, 1
      %p259 = scmp.lt.s32.totalorder %s256, 1
      %s260 = scalar_select %p259, %s256, 1
      %s261 = smul.addr %s258, 2
      %s262 = sadd.s32 %s260, %s261
      %s263 = smul.addr %s262, 8
      %s264 = scalar_lea.vmem %s4, %s263
      %s265 = smul.u32 2, %s20
      %p266 = scmp.lt.s32.totalorder %s19, 1
      %s267 = scalar_select %p266, %s19, 1
      %p268 = scmp.lt.s32.totalorder %s265, 1
      %s269 = scalar_select %p268, %s265, 1
      %s270 = smul.addr %s267, 2
      %s271 = sadd.s32 %s269, %s270
      %s272 = smul.addr %s271, 8
      %s273 = scalar_lea.vmem %s0, %s272
      %s274 = smul.u32 2, %s20
      %p275 = scmp.lt.s32.totalorder %s19, 1
      %s276 = scalar_select %p275, %s19, 1
      %s277 = scalar_lea.vmem %s1, %s276
      %p278 = scmp.lt.s32.totalorder %s19, 1
      %s279 = scalar_select %p278, %s19, 1
      %s280 = scalar_lea.vmem %s2, %s279
      %s281 = smul.u32 2, %s20
      %p282 = scmp.lt.s32.totalorder %s19, 1
      %s283 = scalar_select %p282, %s19, 1
      %p284 = scmp.lt.s32.totalorder %s281, 1
      %s285 = scalar_select %p284, %s281, 1
      %s286 = smul.addr %s283, 2
      %s287 = sadd.s32 %s285, %s286
      %s288 = smul.addr %s287, 8
      %s289 = scalar_lea.vmem %s3, %s288
      %s290 = smul.u32 2, %s20
      %s291 = smul.u32 2, %s20
      %p292 = scmp.lt.s32.totalorder %s19, 1
      %s293 = scalar_select %p292, %s19, 1
      %p294 = scmp.lt.s32.totalorder %s291, 1
      %s295 = scalar_select %p294, %s291, 1
      %s296 = smul.addr %s293, 2
      %s297 = sadd.s32 %s295, %s296
      %s298 = smul.addr %s297, 8
      %s299 = scalar_lea.vmem %s4, %s298
      %s300 = smul.u32 2, %s20
      %v301 = vld [vmem:[%s273] sm:$0xff]
      %v302 = vld [vmem:[%s273 + $0x8] sm:$0xff]
      %v303 = vld [vmem:[%s277] sm:$0x1]
      %v305 = vlaneseq
      %v306 = vshrl.u32 %v305, 7
      %v307 = vsub.s32 0, %v306
      %v308 = vrot.slane %v303, %v307
      %v310 = vmul.f32 %v301, %v308
      %v311 = vmul.f32 %v302, %v308
      %v312 = vld [vmem:[%s280] sm:$0x1]
      %v314 = vlaneseq
      %v315 = vshrl.u32 %v314, 7
      %v316 = vsub.s32 0, %v315
      %v317 = vrot.slane %v312, %v316
      %v319 = vadd.f32 %v310, %v317
      %v320 = vadd.f32 %v311, %v317
      %v321 = vmax.f32 %v319, 0.0
      %v322 = vmax.f32 %v320, 0.0
      %v323 = vld [vmem:[%s289] sm:$0xff]
      %v324 = vld [vmem:[%s289 + $0x8] sm:$0xff]
      %v325 = vadd.f32 %v321, %v323
      %v326 = vadd.f32 %v322, %v324
      %327 = vst [vmem:[%s299] sm:$0xff] %v325
      %328 = vst [vmem:[%s299 + $0x8] sm:$0xff] %v326
      %s329 = smul.u32 2, %s20
      %p330 = scmp.lt.s32.totalorder %s19, 1
      %s331 = scalar_select %p330, %s19, 1
      %p332 = scmp.lt.s32.totalorder %s329, 1
      %s333 = scalar_select %p332, %s329, 1
      %s334 = smul.addr %s331, 2
      %s335 = sadd.s32 %s333, %s334
      %s336 = smul.addr %s335, 8
      %s337 = scalar_lea.vmem %s4, %s336
      // Predicated region
      $region37: #{sc_block_forward.98} parent=35 // pred_check
        %p338 = pneg %p155
      $region38: #{sc_block_forward.98} parent=35 // pred_check_branch
        %340 = sbr.rel (%p338) target = $region40
      $region39: #{sc_block_forward.98} parent=35 // pred_region
        %s341 = smul.u32 2, %s20
      $region40: #{sc_block_forward.98} parent=35 // pred_fallthru
        _
    $region36: #{sc_block_forward.98} parent=5 // pred_fallthru
      _
    %p342 = scmp.le.s32.totalorder 2, %s10
    // Predicated region
    $region41: #{sc_block_forward.98} parent=5 // pred_check
      %p343 = pneg %p342
    $region42: #{sc_block_forward.98} parent=5 // pred_check_branch
      %345 = sbr.rel (%p343) target = $region44
    $region43: #{sc_block_forward.98} parent=5 // pred_region
      %s346 = ssub.s32 %s10, 2
      // Predicated region
      $region45: #{sc_block_forward.98} parent=43 // pred_check
        %p347 = pneg %p161
      $region46: #{sc_block_forward.98} parent=43 // pred_check_branch
        %349 = sbr.rel (%p347) target = $region48
      $region47: #{sc_block_forward.98} parent=43 // pred_region
        %s350 = smul.u32 2, %s22
        %p351 = scmp.lt.s32.totalorder %s21, 1
        %s352 = scalar_select %p351, %s21, 1
        %p353 = scmp.lt.s32.totalorder %s350, 1
        %s354 = scalar_select %p353, %s350, 1
        %s355 = smul.addr %s352, 2
        %s356 = sadd.s32 %s354, %s355
        %s357 = smul.addr %s356, 8
        %s358 = scalar_lea.vmem %s4, %s357
      $region48: #{sc_block_forward.98} parent=43 // pred_fallthru
        _
    $region44: #{sc_block_forward.98} parent=5 // pred_fallthru
      _
  $region6: #{sc_block_forward.98} parent=0 // loop_footer
    %s14 = sadd.s32 1, %s10
  $region7: #{sc_block_forward.98} parent=0 // loop_footer_branch
    %9 = sbr.rel target = $region3
  $region8: #{sc_block_forward.98} parent=0 // loop_exit
    _

// kernel: sc_block_forward.97
$region0: #{sc_block_forward.97}
  #allocation0 [shape = 'u32[]', space=smem, size = 0x4, offset = 0x4, fixed_abs, tag = 'smem constant byte address 0x4 - core index']
  #allocation1 [shape = 'u32[144,128]{1,0:T(1,128)}', space=vmem, size = 0x12000, scoped, tag = 'internal scratch']
  %s0 = inlined_call_operand.vmem [shape: f32[2,16,128], index: 0, kind: input, shape index: {}]
  %s1 = inlined_call_operand.vmem [shape: f32[2,1,128], index: 1, kind: input, shape index: {}]
  %s2 = inlined_call_operand.vmem [shape: f32[2,1,128], index: 2, kind: input, shape index: {}]
  %s3 = inlined_call_operand.vmem [shape: f32[128,128], index: 3, kind: input, shape index: {}]
  %s4 = inlined_call_operand.vmem [shape: f32[1,1,128], index: 4, kind: input, shape index: {}]
  %s5 = inlined_call_operand.vmem [shape: f32[2,16,128], index: 5, kind: output, shape index: {}]
  %s6 = sld [smem:[#allocation0]]
  $region53: #{sc_block_forward.97} parent=0
    _
  %s8 = ssub.s32 1, %s6
  %s9 = scalar_select 0, %s8, %s6
  loop: start=0, step=1, limit=4
  $region2: #{sc_block_forward.97} parent=0 // loop_pre_header
    _
  $region3: #{sc_block_forward.97} parent=0 // loop_header
    %s11 = sphi 0, %s15
    %p12 = scmp.ge.s32.totalorder %s11, 4
    %s18 = sphi 0, %s30
    %s19 = sphi 0, %s26
    %s20 = sphi 0, %s18
    %s21 = sphi 0, %s19
    %s22 = sphi 0, %s20
    %s23 = sphi 0, %s21
    %s35 = sphi 0, %s37
    %s38 = sphi 0, %s35
    %s39 = sphi 0, %s38
    %s55 = sphi 0, %s39
    %s61 = sphi 0, %s63
    %s64 = sphi 0, %s61
    %s65 = sphi 0, %s64
    %s81 = sphi 0, %s65
    %s87 = sphi 0, %s89
    %s90 = sphi 0, %s87
    %s91 = sphi 0, %s90
    %s107 = sphi 0, %s91
    %s111 = sphi 0, %s111
    %s113 = sphi 0, %s111
    %s114 = sphi 0, %s113
    %s128 = sphi 0, %s114
    %s132 = sphi 0, %s132
    %s134 = sphi 0, %s132
    %s135 = sphi 0, %s134
    %s149 = sphi 0, %s135
    %s157 = sphi 0, %s159
    %s160 = sphi 0, %s157
    %s161 = sphi 0, %s160
    %s177 = sphi 0, %s161
  $region4: #{sc_block_forward.97} parent=0 // loop_header_branch
    %14 = sbr.rel (%p12) target = $region8
  $region5: #{sc_block_forward.97} parent=0 // loop_body
    %s16 = ssub.s32 %s11, 1
    %s17 = ssub.s32 %s11, 2
    %s24 = sadd.s32 1, %s19
    %p25 = scmp.ge.s32.totalorder %s24, 1
    %s26 = scalar_select %p25, 0, %s24
    %s27 = sadd.s32 1, %s18
    %s28 = scalar_select %p25, %s27, %s18
    %p29 = scmp.ge.s32.totalorder %s28, 2
    %s30 = scalar_select %p29, 0, %s28
    %s31 = ssub.s32 %s18, %s30
    %s32 = ssub.s32 %s19, %s26
    %s33 = sor.u32 %s31, %s32
    %p34 = scmp.eq.s32.totalorder %s33, 0
    %s36 = sadd.s32 %s35, 1
    %s37 = scalar_select %p34, %s35, %s36
    %p40 = pneg %p34
    %p41 = scmp.eq.s32.totalorder %s11, 1
    %p42 = por %p40, %p41
    %p43 = scmp.ne.s32.totalorder %s35, %s38
    %p44 = scmp.eq.s32.totalorder %s11, 0
    %p45 = por %p43, %p44
    %p46 = scmp.ne.s32.totalorder %s35, %s38
    %p47 = scmp.eq.s32.totalorder %s16, 1
    %p48 = por %p46, %p47
    %p49 = scmp.ne.s32.totalorder %s38, %s39
    %p50 = scmp.eq.s32.totalorder %s16, 0
    %p51 = por %p49, %p50
    %p52 = scmp.ne.s32.totalorder %s38, %s39
    %p53 = scmp.eq.s32.totalorder %s17, 1
    %p54 = por %p52, %p53
    %p56 = scmp.ne.s32.totalorder %s39, %s55
    %p57 = scmp.eq.s32.totalorder %s17, 0
    %p58 = por %p56, %p57
    %s59 = ssub.s32 %s18, %s30
    %p60 = scmp.eq.s32.totalorder %s59, 0
    %s62 = sadd.s32 %s61, 1
    %s63 = scalar_select %p60, %s61, %s62
    %p66 = pneg %p60
    %p67 = scmp.eq.s32.totalorder %s11, 1
    %p68 = por %p66, %p67
    %p69 = scmp.ne.s32.totalorder %s61, %s64
    %p70 = scmp.eq.s32.totalorder %s11, 0
    %p71 = por %p69, %p70
    %p72 = scmp.ne.s32.totalorder %s61, %s64
    %p73 = scmp.eq.s32.totalorder %s16, 1
    %p74 = por %p72, %p73
    %p75 = scmp.ne.s32.totalorder %s64, %s65
    %p76 = scmp.eq.s32.totalorder %s16, 0
    %p77 = por %p75, %p76
    %p78 = scmp.ne.s32.totalorder %s64, %s65
    %p79 = scmp.eq.s32.totalorder %s17, 1
    %p80 = por %p78, %p79
    %p82 = scmp.ne.s32.totalorder %s65, %s81
    %p83 = scmp.eq.s32.totalorder %s17, 0
    %p84 = por %p82, %p83
    %s85 = ssub.s32 %s18, %s30
    %p86 = scmp.eq.s32.totalorder %s85, 0
    %s88 = sadd.s32 %s87, 1
    %s89 = scalar_select %p86, %s87, %s88
    %p92 = pneg %p86
    %p93 = scmp.eq.s32.totalorder %s11, 1
    %p94 = por %p92, %p93
    %p95 = scmp.ne.s32.totalorder %s87, %s90
    %p96 = scmp.eq.s32.totalorder %s11, 0
    %p97 = por %p95, %p96
    %p98 = scmp.ne.s32.totalorder %s87, %s90
    %p99 = scmp.eq.s32.totalorder %s16, 1
    %p100 = por %p98, %p99
    %p101 = scmp.ne.s32.totalorder %s90, %s91
    %p102 = scmp.eq.s32.totalorder %s16, 0
    %p103 = por %p101, %p102
    %p104 = scmp.ne.s32.totalorder %s90, %s91
    %p105 = scmp.eq.s32.totalorder %s17, 1
    %p106 = por %p104, %p105
    %p108 = scmp.ne.s32.totalorder %s91, %s107
    %p109 = scmp.eq.s32.totalorder %s17, 0
    %p110 = por %p108, %p109
    %s112 = sadd.s32 %s111, 1
    %p115 = scmp.eq.s32.totalorder %s11, 1
    %p116 = scmp.ne.s32.totalorder %s111, %s113
    %p117 = scmp.eq.s32.totalorder %s11, 0
    %p118 = por %p116, %p117
    %p119 = scmp.ne.s32.totalorder %s111, %s113
    %p120 = scmp.eq.s32.totalorder %s16, 1
    %p121 = por %p119, %p120
    %p122 = scmp.ne.s32.totalorder %s113, %s114
    %p123 = scmp.eq.s32.totalorder %s16, 0
    %p124 = por %p122, %p123
    %p125 = scmp.ne.s32.totalorder %s113, %s114
    %p126 = scmp.eq.s32.totalorder %s17, 1
    %p127 = por %p125, %p126
    %p129 = scmp.ne.s32.totalorder %s114, %s128
    %p130 = scmp.eq.s32.totalorder %s17, 0
    %p131 = por %p129, %p130
    %s133 = sadd.s32 %s132, 1
    %p136 = scmp.eq.s32.totalorder %s11, 1
    %p137 = scmp.ne.s32.totalorder %s132, %s134
    %p138 = scmp.eq.s32.totalorder %s11, 0
    %p139 = por %p137, %p138
    %p140 = scmp.ne.s32.totalorder %s132, %s134
    %p141 = scmp.eq.s32.totalorder %s16, 1
    %p142 = por %p140, %p141
    %p143 = scmp.ne.s32.totalorder %s134, %s135
    %p144 = scmp.eq.s32.totalorder %s16, 0
    %p145 = por %p143, %p144
    %p146 = scmp.ne.s32.totalorder %s134, %s135
    %p147 = scmp.eq.s32.totalorder %s17, 1
    %p148 = por %p146, %p147
    %p150 = scmp.ne.s32.totalorder %s135, %s149
    %p151 = scmp.eq.s32.totalorder %s17, 0
    %p152 = por %p150, %p151
    %s153 = ssub.s32 %s18, %s30
    %s154 = ssub.s32 %s19, %s26
    %s155 = sor.u32 %s153, %s154
    %p156 = scmp.eq.s32.totalorder %s155, 0
    %s158 = sadd.s32 %s157, 1
    %s159 = scalar_select %p156, %s157, %s158
    %p162 = pneg %p156
    %p163 = scmp.eq.s32.totalorder %s11, 1
    %p164 = por %p162, %p163
    %p165 = scmp.ne.s32.totalorder %s157, %s160
    %p166 = scmp.eq.s32.totalorder %s11, 0
    %p167 = por %p165, %p166
    %p168 = scmp.ne.s32.totalorder %s157, %s160
    %p169 = scmp.eq.s32.totalorder %s16, 1
    %p170 = por %p168, %p169
    %p171 = scmp.ne.s32.totalorder %s160, %s161
    %p172 = scmp.eq.s32.totalorder %s16, 0
    %p173 = por %p171, %p172
    %p174 = scmp.ne.s32.totalorder %s160, %s161
    %p175 = scmp.eq.s32.totalorder %s17, 1
    %p176 = por %p174, %p175
    %p178 = scmp.ne.s32.totalorder %s161, %s177
    %p179 = scmp.eq.s32.totalorder %s17, 0
    %p180 = por %p178, %p179
    %p181 = scmp.le.s32.totalorder 1, %s11
    %p182 = scmp.lt.s32.totalorder %s11, 3
    %p183 = pnand %p181, %p182
    %p184 = pneg %p183
    // Predicated region
    $region9: #{sc_block_forward.97} parent=5 // pred_check
      _
    $region10: #{sc_block_forward.97} parent=5 // pred_check_branch
      %186 = sbr.rel (%p183) target = $region12
    $region11: #{sc_block_forward.97} parent=5 // pred_region
      %s187 = ssub.s32 %s11, 1
      // Predicated region
      $region13: #{sc_block_forward.97} parent=11 // pred_check
        %p188 = pneg %p124
      $region14: #{sc_block_forward.97} parent=11 // pred_check_branch
        %190 = sbr.rel (%p188) target = $region16
      $region15: #{sc_block_forward.97} parent=11 // pred_region
        _
      $region16: #{sc_block_forward.97} parent=11 // pred_fallthru
        _
      // Predicated region
      $region17: #{sc_block_forward.97} parent=11 // pred_check
        %p191 = pneg %p145
      $region18: #{sc_block_forward.97} parent=11 // pred_check_branch
        %193 = sbr.rel (%p191) target = $region20
      $region19: #{sc_block_forward.97} parent=11 // pred_region
        _
      $region20: #{sc_block_forward.97} parent=11 // pred_fallthru
        _
    $region12: #{sc_block_forward.97} parent=5 // pred_fallthru
      _
    %p194 = scmp.lt.s32.totalorder %s11, 2
    // Predicated region
    $region21: #{sc_block_forward.97} parent=5 // pred_check
      %p195 = pneg %p194
    $region22: #{sc_block_forward.97} parent=5 // pred_check_branch
      %197 = sbr.rel (%p195) target = $region24
    $region23: #{sc_block_forward.97} parent=5 // pred_region
      // Predicated region
      $region25: #{sc_block_forward.97} parent=23 // pred_check
        %p198 = pneg %p45
      $region26: #{sc_block_forward.97} parent=23 // pred_check_branch
        %200 = sbr.rel (%p198) target = $region28
      $region27: #{sc_block_forward.97} parent=23 // pred_region
        %s201 = smul.u32 2, %s19
        %p202 = scmp.lt.s32.totalorder %s18, 1
        %s203 = scalar_select %p202, %s18, 1
        %p204 = scmp.lt.s32.totalorder %s201, 1
        %s205 = scalar_select %p204, %s201, 1
        %s206 = smul.addr %s203, 2
        %s207 = sadd.s32 %s205, %s206
        %s208 = smul.addr %s207, 8
        %s209 = scalar_lea.vmem %s0, %s208
        %s210 = smul.u32 2, %s19
      $region28: #{sc_block_forward.97} parent=23 // pred_fallthru
        _
      // Predicated region
      $region29: #{sc_block_forward.97} parent=23 // pred_check
        %p211 = pneg %p71
      $region30: #{sc_block_forward.97} parent=23 // pred_check_branch
        %213 = sbr.rel (%p211) target = $region32
      $region31: #{sc_block_forward.97} parent=23 // pred_region
        %p214 = scmp.lt.s32.totalorder %s18, 1
        %s215 = scalar_select %p214, %s18, 1
        %s216 = scalar_lea.vmem %s1, %s215
      $region32: #{sc_block_forward.97} parent=23 // pred_fallthru
        _
      // Predicated region
      $region33: #{sc_block_forward.97} parent=23 // pred_check
        %p217 = pneg %p97
      $region34: #{sc_block_forward.97} parent=23 // pred_check_branch
        %219 = sbr.rel (%p217) target = $region36
      $region35: #{sc_block_forward.97} parent=23 // pred_region
        %p220 = scmp.lt.s32.totalorder %s18, 1
        %s221 = scalar_select %p220, %s18, 1
        %s222 = scalar_lea.vmem %s2, %s221
      $region36: #{sc_block_forward.97} parent=23 // pred_fallthru
        _
    $region24: #{sc_block_forward.97} parent=5 // pred_fallthru
      _
    %p223 = scmp.le.s32.totalorder 1, %s11
    %p224 = scmp.lt.s32.totalorder %s11, 3
    %p225 = pnand %p223, %p224
    %p226 = pneg %p225
    // Predicated region
    $region37: #{sc_block_forward.97} parent=5 // pred_check
      _
    $region38: #{sc_block_forward.97} parent=5 // pred_check_branch
      %228 = sbr.rel (%p225) target = $region40
    $region39: #{sc_block_forward.97} parent=5 // pred_region
      %s229 = ssub.s32 %s11, 1
      %s230 = smul.u32 2, %s21
      %p231 = scmp.lt.s32.totalorder %s20, 1
      %s232 = scalar_select %p231, %s20, 1
      %p233 = scmp.lt.s32.totalorder %s230, 1
      %s234 = scalar_select %p233, %s230, 1
      %s235 = smul.addr %s232, 2
      %s236 = sadd.s32 %s234, %s235
      %s237 = smul.addr %s236, 8
      %s238 = scalar_lea.vmem %s0, %s237
      %p239 = pneg %p51
      %p240 = pneg %p48
      %p241 = scmp.lt.s32.totalorder %s20, 1
      %s242 = scalar_select %p241, %s20, 1
      %s243 = scalar_lea.vmem %s1, %s242
      %p244 = pneg %p77
      %p245 = pneg %p74
      %p246 = scmp.lt.s32.totalorder %s20, 1
      %s247 = scalar_select %p246, %s20, 1
      %s248 = scalar_lea.vmem %s2, %s247
      %p249 = pneg %p103
      %p250 = pneg %p100
      %p251 = pneg %p124
      %p252 = pneg %p121
      %p253 = pneg %p145
      %p254 = pneg %p142
      %p255 = pneg %p173
      %p256 = pneg %p170
      %s257 = smul.u32 2, %s21
      %p258 = scmp.lt.s32.totalorder %s20, 1
      %s259 = scalar_select %p258, %s20, 1
      %p260 = scmp.lt.s32.totalorder %s257, 1
      %s261 = scalar_select %p260, %s257, 1
      %s262 = smul.addr %s259, 2
      %s263 = sadd.s32 %s261, %s262
      %s264 = smul.addr %s263, 8
      %s265 = scalar_lea.vmem %s5, %s264
      %s266 = smul.u32 2, %s21
      %p267 = scmp.lt.s32.totalorder %s20, 1
      %s268 = scalar_select %p267, %s20, 1
      %p269 = scmp.lt.s32.totalorder %s266, 1
      %s270 = scalar_select %p269, %s266, 1
      %s271 = smul.addr %s268, 2
      %s272 = sadd.s32 %s270, %s271
      %s273 = smul.addr %s272, 8
      %s274 = scalar_lea.vmem %s0, %s273
      %s275 = smul.u32 2, %s21
      %p276 = scmp.lt.s32.totalorder %s20, 1
      %s277 = scalar_select %p276, %s20, 1
      %s278 = scalar_lea.vmem %s1, %s277
      %p279 = scmp.lt.s32.totalorder %s20, 1
      %s280 = scalar_select %p279, %s20, 1
      %s281 = scalar_lea.vmem %s2, %s280
      %s282 = smul.u32 2, %s21
      %p283 = scmp.lt.s32.totalorder %s20, 1
      %s284 = scalar_select %p283, %s20, 1
      %p285 = scmp.lt.s32.totalorder %s282, 1
      %s286 = scalar_select %p285, %s282, 1
      %s287 = smul.addr %s284, 2
      %s288 = sadd.s32 %s286, %s287
      %s289 = smul.addr %s288, 8
      %s290 = scalar_lea.vmem %s5, %s289
      %s291 = smul.u32 2, %s21
      %v292 = vld [vmem:[%s274] sm:$0xff]
      %v293 = vld [vmem:[%s274 + $0x8] sm:$0xff]
      %v294 = vld [vmem:[%s278] sm:$0x1]
      %v296 = vlaneseq
      %v297 = vshrl.u32 %v296, 7
      %v298 = vsub.s32 0, %v297
      %v299 = vrot.slane %v294, %v298
      %v301 = vmul.f32 %v292, %v299
      %v302 = vmul.f32 %v293, %v299
      %v303 = vld [vmem:[%s281] sm:$0x1]
      %v305 = vlaneseq
      %v306 = vshrl.u32 %v305, 7
      %v307 = vsub.s32 0, %v306
      %v308 = vrot.slane %v303, %v307
      %v310 = vadd.f32 %v301, %v308
      %v311 = vadd.f32 %v302, %v308
      %v312 = vld [vmem:[%s3] sm:$0xff]
      %v313 = vld [vmem:[%s3 + $0x8] sm:$0xff]
      %v314 = vld [vmem:[%s3 + $0x10] sm:$0xff]
      %v315 = vld [vmem:[%s3 + $0x18] sm:$0xff]
      %v316 = vld [vmem:[%s3 + $0x20] sm:$0xff]
      %v317 = vld [vmem:[%s3 + $0x28] sm:$0xff]
      %v318 = vld [vmem:[%s3 + $0x30] sm:$0xff]
      %v319 = vld [vmem:[%s3 + $0x38] sm:$0xff]
      %v320 = vld [vmem:[%s3 + $0x40] sm:$0xff]
      %v321 = vld [vmem:[%s3 + $0x48] sm:$0xff]
      %v322 = vld [vmem:[%s3 + $0x50] sm:$0xff]
      %v323 = vld [vmem:[%s3 + $0x58] sm:$0xff]
      %v324 = vld [vmem:[%s3 + $0x60] sm:$0xff]
      %v325 = vld [vmem:[%s3 + $0x68] sm:$0xff]
      %v326 = vld [vmem:[%s3 + $0x70] sm:$0xff]
      %v327 = vld [vmem:[%s3 + $0x78] sm:$0xff]
      %v328 = vld [vmem:[%s4] sm:$0x1]
      %v330 = vlaneseq
      %v331 = vshrl.u32 %v330, 7
      %v332 = vsub.s32 0, %v331
      %v333 = vrot.slane %v328, %v332
      %335 = vmatprep.subr.mxu0 0.0
      %336 = vmatpush1.msra.mxu0 %v312
      %337 = vmatprep.subr.mxu0 0.0
      %338 = vmatpush1.msra.mxu0 %v313
      %339 = vmatprep.subr.mxu0 0.0
      %340 = vmatpush1.msra.mxu0 %v314
      %341 = vmatprep.subr.mxu0 0.0
      %342 = vmatpush1.msra.mxu0 %v315
      %343 = vmatprep.subr.mxu0 0.0
      %344 = vmatpush1.msra.mxu0 %v316
      %345 = vmatprep.subr.mxu0 0.0
      %346 = vmatpush1.msra.mxu0 %v317
      %347 = vmatprep.subr.mxu0 0.0
      %348 = vmatpush1.msra.mxu0 %v318
      %349 = vmatprep.subr.mxu0 0.0
      %350 = vmatpush1.msra.mxu0 %v319
      %351 = vmatprep.subr.mxu0 0.0
      %352 = vmatpush1.msra.mxu0 %v320
      %353 = vmatprep.subr.mxu0 0.0
      %354 = vmatpush1.msra.mxu0 %v321
      %355 = vmatprep.subr.mxu0 0.0
      %356 = vmatpush1.msra.mxu0 %v322
      %357 = vmatprep.subr.mxu0 0.0
      %358 = vmatpush1.msra.mxu0 %v323
      %359 = vmatprep.subr.mxu0 0.0
      %360 = vmatpush1.msra.mxu0 %v324
      %361 = vmatprep.subr.mxu0 0.0
      %362 = vmatpush1.msra.mxu0 %v325
      %363 = vmatprep.subr.mxu0 0.0
      %364 = vmatpush1.msra.mxu0 %v326
      %365 = vmatprep.subr.mxu0 0.0
      %366 = vmatpush1.msra.mxu0 %v327
      %367 = vmatprep.subr.mxu0 0.0
      %368 = vmatpush1.msra.mxu0 0.0
      %369 = vmatprep.subr.mxu0 0.0
      %370 = vmatpush1.msra.mxu0 0.0
      %371 = vmatprep.subr.mxu0 0.0
      %372 = vmatpush1.msra.mxu0 0.0
      %373 = vmatprep.subr.mxu0 0.0
      %374 = vmatpush1.msra.mxu0 0.0
      %375 = vmatprep.subr.mxu0 0.0
      %376 = vmatpush1.msra.mxu0 0.0
      %377 = vmatprep.subr.mxu0 0.0
      %378 = vmatpush1.msra.mxu0 0.0
      %379 = vmatprep.subr.mxu0 0.0
      %380 = vmatpush1.msra.mxu0 0.0
      %381 = vmatprep.subr.mxu0 0.0
      %382 = vmatpush1.msra.mxu0 0.0
      %383 = vmatprep.subr.mxu0 0.0
      %384 = vmatpush1.msra.mxu0 0.0
      %385 = vmatprep.subr.mxu0 0.0
      %386 = vmatpush1.msra.mxu0 0.0
      %387 = vmatprep.subr.mxu0 0.0
      %388 = vmatpush1.msra.mxu0 0.0
      %389 = vmatprep.subr.mxu0 0.0
      %390 = vmatpush1.msra.mxu0 0.0
      %391 = vmatprep.subr.mxu0 0.0
      %392 = vmatpush1.msra.mxu0 0.0
      %393 = vmatprep.subr.mxu0 0.0
      %394 = vmatpush1.msra.mxu0 0.0
      %395 = vmatprep.subr.mxu0 0.0
      %396 = vmatpush1.msra.mxu0 0.0
      %397 = vmatprep.subr.mxu0 0.0
      %398 = vmatpush1.msra.mxu0 0.0
      %399 = vmatprep.mubr.f32.mxu0 0.0
      %400 = vmatmul.mubr.f32.gmra.mrb[0].mxu0 %v310
      %v401 = vpop.f32.mrb[0].mxu0
      %v402 = vadd.f32 %v333, %v401
      %v403 = vpop.f32.mrb[0].mxu0
      %404 = vmatprep.mubr.f32.mxu0 0.0
      %405 = vmatmul.mubr.f32.gmra.mrb[0].mxu0 %v311
      %v406 = vpop.f32.mrb[0].mxu0
      %v407 = vadd.f32 %v333, %v406
      %v408 = vpop.f32.mrb[0].mxu0
      %409 = vdwg.mxu0
      %410 = vst [vmem:[%s290] sm:$0xff] %v402
      %411 = vst [vmem:[%s290 + $0x8] sm:$0xff] %v407
      %s412 = smul.u32 2, %s21
      %p413 = scmp.lt.s32.totalorder %s20, 1
      %s414 = scalar_select %p413, %s20, 1
      %p415 = scmp.lt.s32.totalorder %s412, 1
      %s416 = scalar_select %p415, %s412, 1
      %s417 = smul.addr %s414, 2
      %s418 = sadd.s32 %s416, %s417
      %s419 = smul.addr %s418, 8
      %s420 = scalar_lea.vmem %s5, %s419
      // Predicated region
      $region41: #{sc_block_forward.97} parent=39 // pred_check
        %p421 = pneg %p170
      $region42: #{sc_block_forward.97} parent=39 // pred_check_branch
        %423 = sbr.rel (%p421) target = $region44
      $region43: #{sc_block_forward.97} parent=39 // pred_region
        %s424 = smul.u32 2, %s21
      $region44: #{sc_block_forward.97} parent=39 // pred_fallthru
        _
    $region40: #{sc_block_forward.97} parent=5 // pred_fallthru
      _
    %p425 = scmp.le.s32.totalorder 2, %s11
    // Predicated region
    $region45: #{sc_block_forward.97} parent=5 // pred_check
      %p426 = pneg %p425
    $region46: #{sc_block_forward.97} parent=5 // pred_check_branch
      %428 = sbr.rel (%p426) target = $region48
    $region47: #{sc_block_forward.97} parent=5 // pred_region
      %s429 = ssub.s32 %s11, 2
      // Predicated region
      $region49: #{sc_block_forward.97} parent=47 // pred_check
        %p430 = pneg %p176
      $region50: #{sc_block_forward.97} parent=47 // pred_check_branch
        %432 = sbr.rel (%p430) target = $region52
      $region51: #{sc_block_forward.97} parent=47 // pred_region
        %s433 = smul.u32 2, %s23
        %p434 = scmp.lt.s32.totalorder %s22, 1
        %s435 = scalar_select %p434, %s22, 1
        %p436 = scmp.lt.s32.totalorder %s433, 1
        %s437 = scalar_select %p436, %s433, 1
        %s438 = smul.addr %s435, 2
        %s439 = sadd.s32 %s437, %s438
        %s440 = smul.addr %s439, 8
        %s441 = scalar_lea.vmem %s5, %s440
      $region52: #{sc_block_forward.97} parent=47 // pred_fallthru
        _
    $region48: #{sc_block_forward.97} parent=5 // pred_fallthru
      _
  $region6: #{sc_block_forward.97} parent=0 // loop_footer
    %s15 = sadd.s32 1, %s11
  $region7: #{sc_block_forward.97} parent=0 // loop_footer_branch
    %10 = sbr.rel target = $region3
  $region8: #{sc_block_forward.97} parent=0 // loop_exit
    _

</llo_original>
